<compile_context>
chip_gen: v7x
topology: tpu7x:2x2x1
jax: 0.10.0
libtpu: 0.0.40
codegen_flags: <defaults>
</compile_context>

<pallas_src>
import functools

import jax
import jax.numpy as jnp
from jax import lax
from jax.experimental import pallas as pl
from jax.experimental.pallas import tpu as pltpu

K = 7        # spectral kernel taps
PAD = 3      # spectral zero padding
STRIDE1 = 2  # spectral stride of c1

# Padded per-depth channel-storage widths (multiples of 16 keep every static
# row offset aligned for both f32 (8-row tiles) and bf16 (16-row packed tiles)).
C1P = 32     # x1_0 storage (24 real channels)
CP = 16      # x1_1 / x1_2 / x1_3 storage (12 real channels)


def _round_up(a, b):
    return (a + b - 1) // b * b


# ------------------------------ fused kernel --------------------------------
def _spectral_block_kernel(x_ref, w1_ref, b1_ref, wa_ref, b2_ref, wb_ref,
                           b3_ref, w4c_ref, b4_ref, alpha_ref, o_ref, *, d_out):
    # x_ref : (D_in*c0p, TILE_L)  VMEM, row = depth*c0p + channel (no depth pad)
    # w*_ref: banded (block-Toeplitz) weight matrices, VMEM
    #   w1 : (d_out*C1P, D_in*c0p)                 layer 1 (stride 2)
    #   wa : (3*d_out*CP, d_out*C1P)  rows = [c2 | c3@x1_0 | c4@x1_0]
    #   wb : (2*d_out*CP, d_out*CP)   rows = [c3@x1_1 | c4@x1_1]
    #   w4c: (d_out*CP,   d_out*CP)   c4 @ x1_2
    # b*_ref: (d_out*C_pad, 1) f32 biases (tiled over depth), VMEM
    # alpha_ref: (4,) f32 PReLU slopes, SMEM
    # o_ref : (d_out, 60, TILE_L) VMEM output block
    cdt = o_ref.dtype
    dp = d_out * CP          # rows of one 12-channel layer output (16/depth)

    def prelu(y, a):
        return jnp.where(y >= 0.0, y, a * y)

    x = x_ref[...]                                               # (D_in*c0p, L)

    # --- layer 1: Conv3d(c_in -> 24, stride=(2,1,1)) + PReLU, ONE matmul ----
    y0 = jnp.dot(w1_ref[...], x, preferred_element_type=jnp.float32) + b1_ref[...]
    f0 = prelu(y0, alpha_ref[0]).astype(cdt)                     # (d_out*C1P, L)

    # --- single stationary-weight pass for everything contracting x1_0 ------
    g0 = jnp.dot(wa_ref[...], f0, preferred_element_type=jnp.float32)

    # --- layer 2: Conv3d(24 -> 12) + PReLU -----------------------------------
    f1 = prelu(g0[0:dp, :] + b2_ref[...], alpha_ref[1]).astype(cdt)

    # --- single pass for everything contracting x1_1 -------------------------
    g1 = jnp.dot(wb_ref[...], f1, preferred_element_type=jnp.float32)

    # --- layer 3: Conv3d(cat(x1_0, x1_1): 36 -> 12) + PReLU ------------------
    f2 = prelu(g0[dp:2 * dp, :] + g1[0:dp, :] + b3_ref[...],
               alpha_ref[2]).astype(cdt)

    # --- layer 4: Conv3d(cat(x1_0, x1_1, x1_2): 48 -> 12) + PReLU ------------
    y3 = (g0[2 * dp:3 * dp, :] + g1[dp:2 * dp, :]
          + jnp.dot(w4c_ref[...], f2, preferred_element_type=jnp.float32)
          + b4_ref[...])
    f3 = prelu(y3, alpha_ref[3]).astype(cdt)

    # --- scatter the channel concatenation (all offsets static & aligned) ----
    for d in range(d_out):
        o_ref[d, 0:24, :] = f0[d * C1P:d * C1P + 24, :]
        o_ref[d, 24:36, :] = f1[d * CP:d * CP + 12, :]
        o_ref[d, 36:48, :] = f2[d * CP:d * CP + 12, :]
        o_ref[d, 48:60, :] = f3[d * CP:d * CP + 12, :]


# ------------------------------ host-side glue -------------------------------
def _toeplitz_w(w_oik, cin_lo, cin_hi, c_pad, o_pad, d_src, d_dst, stride, dtype):
    """Banded weight so the whole depth-conv becomes one matmul.

    Returns W of shape (d_dst*o_pad, d_src*c_pad) with
      W[do*o_pad + o, dr*c_pad + c] = w[o, c, t],  t = dr + PAD - stride*do,
    when 0 <= t < K (zero otherwise).  Zero columns absorb both the channel
    padding and the spectral zero padding, so the input needs no depth pad.
    """
    w = w_oik[:, cin_lo:cin_hi, :]                        # (O, I, K)
    o_dim, i_dim, k_dim = w.shape
    do = jnp.arange(d_dst)[:, None]                       # (d_dst, 1)
    dr = jnp.arange(d_src)[None, :]                       # (1, d_src)
    t = dr + PAD - stride * do                            # tap index per (do, dr)
    valid = (t >= 0) & (t < k_dim)
    t_c = jnp.clip(t, 0, k_dim - 1)
    w_t = jnp.transpose(w, (2, 0, 1))                     # (K, O, I)
    g = w_t[t_c]                                          # (d_dst, d_src, O, I)
    g = jnp.where(valid[:, :, None, None], g, 0.0)
    g = jnp.transpose(g, (0, 2, 1, 3))                    # (d_dst, O, d_src, I)
    g = jnp.pad(g, ((0, 0), (0, o_pad - o_dim), (0, 0), (0, c_pad - i_dim)))
    return g.reshape(d_dst * o_pad, d_src * c_pad).astype(dtype)


def _prep_b(b, o_pad, d_dst):
    bp = jnp.pad(b, (0, o_pad - b.shape[0]))
    return jnp.tile(bp, d_dst).reshape(d_dst * o_pad, 1).astype(jnp.float32)


def spectral_block_apply(params, x_ncdhw, *, compute_dtype=jnp.bfloat16,
                         tile_l=2048):
    """SpectralBlock forward: (N, C_in, D, H, W) -> (N, 60, D_out, H, W)."""
    n, c_in, d_in, h, w = x_ncdhw.shape
    c0p = max(8, _round_up(c_in, 8))
    d1 = (d_in + 2 * PAD - K) // STRIDE1 + 1
    l_total = n * h * w

    # --- lane-tile sizing: biggest tile that fits a ~20 MiB VMEM budget ------
    itemsize = jnp.dtype(compute_dtype).itemsize
    bytes_per_lane = (itemsize * (2 * d_in * c0p              # x block (x2 buf)
                                  + 2 * d1 * 64               # out block (x2 buf)
                                  + d1 * (C1P + 3 * CP))      # f0..f3 values
                      + 4 * d1 * (C1P + 2 * CP))              # f32 matmul temps
    vmem_budget = 20 * 1024 * 1024
    tile_l = max(128, (int(tile_l) // 128) * 128)
    tile_l = min(tile_l, max(128, (vmem_budget // bytes_per_lane) // 128 * 128))
    if l_total <= tile_l:
        tile_l = _round_up(l_total, 128)
    l_pad = _round_up(l_total, tile_l)
    num_tiles = l_pad // tile_l

    # --- depth-major (D, C, L) activation layout, flattened to (D*c0p, L) ----
    # (no spectral padding: it lives in the zero weight columns instead)
    x = jnp.transpose(x_ncdhw, (2, 1, 0, 3, 4)).reshape(d_in, c_in, l_total)
    x = jnp.pad(x, ((0, 0), (0, c0p - c_in), (0, l_pad - l_total)))
    x = x.reshape(d_in * c0p, l_pad).astype(compute_dtype)

    p1, p2, p3, p4 = params['c1'], params['c2'], params['c3'], params['c4']
    w1 = _toeplitz_w(p1['w'], 0, c_in, c0p, C1P, d_in, d1, STRIDE1, compute_dtype)
    w2 = _toeplitz_w(p2['w'], 0, 24, C1P, CP, d1, d1, 1, compute_dtype)
    w3a = _toeplitz_w(p3['w'], 0, 24, C1P, CP, d1, d1, 1, compute_dtype)
    w3b = _toeplitz_w(p3['w'], 24, 36, CP, CP, d1, d1, 1, compute_dtype)
    w4a = _toeplitz_w(p4['w'], 0, 24, C1P, CP, d1, d1, 1, compute_dtype)
    w4b = _toeplitz_w(p4['w'], 24, 36, CP, CP, d1, d1, 1, compute_dtype)
    w4c = _toeplitz_w(p4['w'], 36, 48, CP, CP, d1, d1, 1, compute_dtype)
    wa = jnp.concatenate([w2, w3a, w4a], axis=0)   # (3*d1*CP, d1*C1P)
    wb = jnp.concatenate([w3b, w4b], axis=0)       # (2*d1*CP, d1*CP)

    b1 = _prep_b(p1['b'], C1P, d1)
    b2 = _prep_b(p2['b'], CP, d1)
    b3 = _prep_b(p3['b'], CP, d1)
    b4 = _prep_b(p4['b'], CP, d1)
    # nn.PReLU() default = ONE shared slope per layer.
    alphas = jnp.stack([p1['a'], p2['a'], p3['a'], p4['a']]).astype(jnp.float32)

    kernel = functools.partial(_spectral_block_kernel, d_out=d1)

    def _full(a):  # small resident operand (weights / biases)
        return pl.BlockSpec(a.shape, lambda i: (0, 0))

    out = pl.pallas_call(
        kernel,
        out_shape=jax.ShapeDtypeStruct((d1, 60, l_pad), compute_dtype),
        grid=(num_tiles,),
        in_specs=[
            pl.BlockSpec((d_in * c0p, tile_l), lambda i: (0, i)),   # x
            _full(w1), _full(b1), _full(wa), _full(b2),
            _full(wb), _full(b3), _full(w4c), _full(b4),
            pl.BlockSpec(memory_space=pltpu.MemorySpace.SMEM),      # PReLU slopes
        ],
        out_specs=pl.BlockSpec((d1, 60, tile_l), lambda i: (0, 0, i)),
        compiler_params=pltpu.CompilerParams(
            dimension_semantics=("parallel",),   # L-tiles shard across TCs
            vmem_limit_bytes=32 * 1024 * 1024,
        ),
    )(x, w1, b1, wa, b2, wb, b3, w4c, b4, alphas)

    out = out[:, :, :l_total].reshape(d1, 60, n, h, w)
    return jnp.transpose(out, (2, 1, 0, 3, 4))              # (N, 60, D_out, H, W)


# ------------------------ deterministic parameter init -----------------------
def init_params(key):
    specs = {'c1': (1, 24), 'c2': (24, 12), 'c3': (36, 12), 'c4': (48, 12)}
    params = {}
    for i, (name, (cin, cout)) in enumerate(specs.items()):
        kw, kb = jax.random.split(jax.random.fold_in(key, i))
        bound = 1.0 / (cin * K) ** 0.5            # PyTorch-style U(-1/sqrt(fan_in), .)
        params[name] = {
            'w': jax.random.uniform(kw, (cout, cin, K), jnp.float32, -bound, bound),
            'b': jax.random.uniform(kb, (cout,), jnp.float32, -bound, bound),
            'a': jnp.float32(0.25),               # nn.PReLU() default shared slope
        }
    return params


# ---------------------------- pure-JAX reference -----------------------------
def reference(params, x):
    def conv_prelu(x, p, stride):
        w5 = p['w'][:, :, :, None, None]          # (O, I, 7, 1, 1)
        y = lax.conv_general_dilated(
            x, w5, window_strides=(stride, 1, 1),
            padding=[(PAD, PAD), (0, 0), (0, 0)],
            dimension_numbers=('NCDHW', 'OIDHW', 'NCDHW'),
            precision=lax.Precision.HIGHEST)
        y = y + p['b'][None, :, None, None, None]
        return jnp.where(y >= 0, y, p['a'] * y)

    x1_0 = conv_prelu(x, params['c1'], STRIDE1)
    x1_1 = conv_prelu(x1_0, params['c2'], 1)
    x1_2 = conv_prelu(jnp.concatenate([x1_0, x1_1], 1), params['c3'], 1)
    x1_3 = conv_prelu(jnp.concatenate([x1_0, x1_1, x1_2], 1), params['c4'], 1)
    return jnp.concatenate([x1_0, x1_1, x1_2, x1_3], 1)


if __name__ == "__main__":
    key = jax.random.PRNGKey(0)
    params = init_params(key)
    # NCDHW input: batch=2, in_channels=1, spectral depth=16, H=W=12
    x = jax.random.normal(jax.random.fold_in(key, 100), (2, 1, 16, 12, 12),
                          jnp.float32)

    ref = reference(params, x)

    # f32 path with a forced 128-lane tile -> exercises the multi-step L grid;
    # tight tolerance catches any layout / stride / tap-offset bug.
    f32_fn = jax.jit(functools.partial(spectral_block_apply,
                                       compute_dtype=jnp.float32, tile_l=128))
    out_f32 = jax.block_until_ready(f32_fn(params, x))
    assert out_f32.shape == (2, 60, 8, 12, 12), out_f32.shape
    err_f32 = float(jnp.max(jnp.abs(out_f32.astype(jnp.float32) - ref)))
    assert err_f32 < 1e-4, f"f32 max abs err vs reference: {err_f32}"

    # bf16 performance path (default tile size); tolerance reflects bf16
    # quantization of activations/weights through 4 cascaded conv layers.
    bf16_fn = jax.jit(functools.partial(spectral_block_apply,
                                        compute_dtype=jnp.bfloat16))
    out_bf16 = jax.block_until_ready(bf16_fn(params, x))
    assert out_bf16.shape == (2, 60, 8, 12, 12), out_bf16.shape
    err_bf16 = float(jnp.max(jnp.abs(out_bf16.astype(jnp.float32) - ref)))
    assert err_bf16 < 5e-2, f"bf16 max abs err vs reference: {err_bf16}"

    print("KERNEL_OK")
</pallas_src>

<mosaic_0001>
module attributes {stable_mosaic.version = 11 : i64} {
  func.func @_spectral_block_kernel(%arg0: i32, %arg1: memref<128x128xf32, #tpu.memory_space<vmem>>, %arg2: memref<256x128xf32, #tpu.memory_space<vmem>>, %arg3: memref<256x1xf32, #tpu.memory_space<vmem>>, %arg4: memref<384x256xf32, #tpu.memory_space<vmem>>, %arg5: memref<128x1xf32, #tpu.memory_space<vmem>>, %arg6: memref<256x128xf32, #tpu.memory_space<vmem>>, %arg7: memref<128x1xf32, #tpu.memory_space<vmem>>, %arg8: memref<128x128xf32, #tpu.memory_space<vmem>>, %arg9: memref<128x1xf32, #tpu.memory_space<vmem>>, %arg10: memref<4xf32, #tpu.memory_space<smem>>, %arg11: memref<8x60x128xf32, #tpu.memory_space<vmem>>) attributes {dimension_semantics = [#tpu.dimension_semantics<parallel>], iteration_bounds = array<i64: 3>, scalar_prefetch = 0 : i64, scratch_operands = 0 : i64, tpu.core_type = #tpu.core_type<tc>, window_params = [{transform_indices = @transform_0, window_bounds = array<i64: 128, 128>}, {pipeline_mode = #tpu.pipeline_mode<synchronous>, transform_indices = @transform_1, window_bounds = array<i64: 256, 128>}, {pipeline_mode = #tpu.pipeline_mode<synchronous>, transform_indices = @transform_2, window_bounds = array<i64: 256, 1>}, {pipeline_mode = #tpu.pipeline_mode<synchronous>, transform_indices = @transform_3, window_bounds = array<i64: 384, 256>}, {pipeline_mode = #tpu.pipeline_mode<synchronous>, transform_indices = @transform_4, window_bounds = array<i64: 128, 1>}, {pipeline_mode = #tpu.pipeline_mode<synchronous>, transform_indices = @transform_5, window_bounds = array<i64: 256, 128>}, {pipeline_mode = #tpu.pipeline_mode<synchronous>, transform_indices = @transform_6, window_bounds = array<i64: 128, 1>}, {pipeline_mode = #tpu.pipeline_mode<synchronous>, transform_indices = @transform_7, window_bounds = array<i64: 128, 128>}, {pipeline_mode = #tpu.pipeline_mode<synchronous>, transform_indices = @transform_8, window_bounds = array<i64: 128, 1>}, {transform_indices = @transform_9, window_bounds = array<i64: 4>}, {transform_indices = @transform_10, window_bounds = array<i64: 8, 60, 128>}]} {
    %c0 = arith.constant 0 : index
    %c0_0 = arith.constant 0 : index
    %0 = vector.load %arg1[%c0, %c0_0] : memref<128x128xf32, #tpu.memory_space<vmem>>, vector<128x128xf32>
    %c0_1 = arith.constant 0 : index
    %c0_2 = arith.constant 0 : index
    %1 = vector.load %arg2[%c0_1, %c0_2] : memref<256x128xf32, #tpu.memory_space<vmem>>, vector<256x128xf32>
    %cst = arith.constant dense<0.000000e+00> : vector<256x128xf32>
    %2 = tpu.matmul %1, %0, %cst {dimension_numbers = #tpu.dot_dimension_numbers<[1], [0], [0], [1], [0, 0, 1, 1], [], []>} : vector<256x128xf32>, vector<128x128xf32>, vector<256x128xf32> -> vector<256x128xf32>
    %c0_3 = arith.constant 0 : index
    %c0_4 = arith.constant 0 : index
    %3 = vector.load %arg3[%c0_3, %c0_4] : memref<256x1xf32, #tpu.memory_space<vmem>>, vector<256x1xf32>
    %4 = vector.broadcast %3 : vector<256x1xf32> to vector<256x128xf32>
    %5 = arith.addf %2, %4 : vector<256x128xf32>
    %c0_5 = arith.constant 0 : index
    %6 = memref.load %arg10[%c0_5] : memref<4xf32, #tpu.memory_space<smem>>
    %cst_6 = arith.constant 0.000000e+00 : f32
    %7 = vector.broadcast %cst_6 : f32 to vector<256x128xf32>
    %8 = arith.cmpf oge, %5, %7 : vector<256x128xf32>
    %9 = vector.broadcast %6 : f32 to vector<256x128xf32>
    %10 = arith.mulf %9, %5 : vector<256x128xf32>
    %11 = arith.select %8, %5, %10 : vector<256x128xi1>, vector<256x128xf32>
    %c0_7 = arith.constant 0 : index
    %c0_8 = arith.constant 0 : index
    %12 = vector.load %arg4[%c0_7, %c0_8] : memref<384x256xf32, #tpu.memory_space<vmem>>, vector<384x256xf32>
    %cst_9 = arith.constant dense<0.000000e+00> : vector<384x128xf32>
    %13 = tpu.matmul %12, %11, %cst_9 {dimension_numbers = #tpu.dot_dimension_numbers<[1], [0], [0], [1], [0, 0, 1, 1], [], []>} : vector<384x256xf32>, vector<256x128xf32>, vector<384x128xf32> -> vector<384x128xf32>
    %14 = vector.extract_strided_slice %13 {offsets = [0, 0], sizes = [128, 128], strides = [1, 1]} : vector<384x128xf32> to vector<128x128xf32>
    %c0_10 = arith.constant 0 : index
    %c0_11 = arith.constant 0 : index
    %15 = vector.load %arg5[%c0_10, %c0_11] : memref<128x1xf32, #tpu.memory_space<vmem>>, vector<128x1xf32>
    %16 = vector.broadcast %15 : vector<128x1xf32> to vector<128x128xf32>
    %17 = arith.addf %14, %16 : vector<128x128xf32>
    %c1 = arith.constant 1 : index
    %18 = memref.load %arg10[%c1] : memref<4xf32, #tpu.memory_space<smem>>
    %cst_12 = arith.constant 0.000000e+00 : f32
    %19 = vector.broadcast %cst_12 : f32 to vector<128x128xf32>
    %20 = arith.cmpf oge, %17, %19 : vector<128x128xf32>
    %21 = vector.broadcast %18 : f32 to vector<128x128xf32>
    %22 = arith.mulf %21, %17 : vector<128x128xf32>
    %23 = arith.select %20, %17, %22 : vector<128x128xi1>, vector<128x128xf32>
    %c0_13 = arith.constant 0 : index
    %c0_14 = arith.constant 0 : index
    %24 = vector.load %arg6[%c0_13, %c0_14] : memref<256x128xf32, #tpu.memory_space<vmem>>, vector<256x128xf32>
    %cst_15 = arith.constant dense<0.000000e+00> : vector<256x128xf32>
    %25 = tpu.matmul %24, %23, %cst_15 {dimension_numbers = #tpu.dot_dimension_numbers<[1], [0], [0], [1], [0, 0, 1, 1], [], []>} : vector<256x128xf32>, vector<128x128xf32>, vector<256x128xf32> -> vector<256x128xf32>
    %26 = vector.extract_strided_slice %13 {offsets = [128, 0], sizes = [128, 128], strides = [1, 1]} : vector<384x128xf32> to vector<128x128xf32>
    %27 = vector.extract_strided_slice %25 {offsets = [0, 0], sizes = [128, 128], strides = [1, 1]} : vector<256x128xf32> to vector<128x128xf32>
    %28 = arith.addf %26, %27 : vector<128x128xf32>
    %c0_16 = arith.constant 0 : index
    %c0_17 = arith.constant 0 : index
    %29 = vector.load %arg7[%c0_16, %c0_17] : memref<128x1xf32, #tpu.memory_space<vmem>>, vector<128x1xf32>
    %30 = vector.broadcast %29 : vector<128x1xf32> to vector<128x128xf32>
    %31 = arith.addf %28, %30 : vector<128x128xf32>
    %c2 = arith.constant 2 : index
    %32 = memref.load %arg10[%c2] : memref<4xf32, #tpu.memory_space<smem>>
    %cst_18 = arith.constant 0.000000e+00 : f32
    %33 = vector.broadcast %cst_18 : f32 to vector<128x128xf32>
    %34 = arith.cmpf oge, %31, %33 : vector<128x128xf32>
    %35 = vector.broadcast %32 : f32 to vector<128x128xf32>
    %36 = arith.mulf %35, %31 : vector<128x128xf32>
    %37 = arith.select %34, %31, %36 : vector<128x128xi1>, vector<128x128xf32>
    %38 = vector.extract_strided_slice %13 {offsets = [256, 0], sizes = [128, 128], strides = [1, 1]} : vector<384x128xf32> to vector<128x128xf32>
    %39 = vector.extract_strided_slice %25 {offsets = [128, 0], sizes = [128, 128], strides = [1, 1]} : vector<256x128xf32> to vector<128x128xf32>
    %40 = arith.addf %38, %39 : vector<128x128xf32>
    %c0_19 = arith.constant 0 : index
    %c0_20 = arith.constant 0 : index
    %41 = vector.load %arg8[%c0_19, %c0_20] : memref<128x128xf32, #tpu.memory_space<vmem>>, vector<128x128xf32>
    %cst_21 = arith.constant dense<0.000000e+00> : vector<128x128xf32>
    %42 = tpu.matmul %41, %37, %cst_21 {dimension_numbers = #tpu.dot_dimension_numbers<[1], [0], [0], [1], [0, 0, 1, 1], [], []>} : vector<128x128xf32>, vector<128x128xf32>, vector<128x128xf32> -> vector<128x128xf32>
    %43 = arith.addf %40, %42 : vector<128x128xf32>
    %c0_22 = arith.constant 0 : index
    %c0_23 = arith.constant 0 : index
    %44 = vector.load %arg9[%c0_22, %c0_23] : memref<128x1xf32, #tpu.memory_space<vmem>>, vector<128x1xf32>
    %45 = vector.broadcast %44 : vector<128x1xf32> to vector<128x128xf32>
    %46 = arith.addf %43, %45 : vector<128x128xf32>
    %c3 = arith.constant 3 : index
    %47 = memref.load %arg10[%c3] : memref<4xf32, #tpu.memory_space<smem>>
    %cst_24 = arith.constant 0.000000e+00 : f32
    %48 = vector.broadcast %cst_24 : f32 to vector<128x128xf32>
    %49 = arith.cmpf oge, %46, %48 : vector<128x128xf32>
    %50 = vector.broadcast %47 : f32 to vector<128x128xf32>
    %51 = arith.mulf %50, %46 : vector<128x128xf32>
    %52 = arith.select %49, %46, %51 : vector<128x128xi1>, vector<128x128xf32>
    %53 = vector.extract_strided_slice %11 {offsets = [0, 0], sizes = [24, 128], strides = [1, 1]} : vector<256x128xf32> to vector<24x128xf32>
    %c0_25 = arith.constant 0 : index
    %c0_26 = arith.constant 0 : index
    %c0_27 = arith.constant 0 : index
    %54 = vector.load %arg11[%c0_25, %c0_26, %c0_27] : memref<8x60x128xf32, #tpu.memory_space<vmem>>, vector<1x24x128xf32>
    %55 = vector.shape_cast %54 : vector<1x24x128xf32> to vector<24x128xf32>
    %56 = vector.shape_cast %53 : vector<24x128xf32> to vector<1x24x128xf32>
    tpu.vector_store %arg11[%c0_25, %c0_26, %c0_27], %56 {strides = array<i32>} : memref<8x60x128xf32, #tpu.memory_space<vmem>>, vector<1x24x128xf32>,
    %57 = vector.extract_strided_slice %23 {offsets = [0, 0], sizes = [12, 128], strides = [1, 1]} : vector<128x128xf32> to vector<12x128xf32>
    %c0_28 = arith.constant 0 : index
    %c24 = arith.constant 24 : index
    %c0_29 = arith.constant 0 : index
    %58 = vector.load %arg11[%c0_28, %c24, %c0_29] : memref<8x60x128xf32, #tpu.memory_space<vmem>>, vector<1x12x128xf32>
    %59 = vector.shape_cast %58 : vector<1x12x128xf32> to vector<12x128xf32>
    %60 = vector.shape_cast %57 : vector<12x128xf32> to vector<1x12x128xf32>
    tpu.vector_store %arg11[%c0_28, %c24, %c0_29], %60 {strides = array<i32>} : memref<8x60x128xf32, #tpu.memory_space<vmem>>, vector<1x12x128xf32>,
    %61 = vector.extract_strided_slice %37 {offsets = [0, 0], sizes = [12, 128], strides = [1, 1]} : vector<128x128xf32> to vector<12x128xf32>
    %c0_30 = arith.constant 0 : index
    %c36 = arith.constant 36 : index
    %c0_31 = arith.constant 0 : index
    %62 = vector.load %arg11[%c0_30, %c36, %c0_31] : memref<8x60x128xf32, #tpu.memory_space<vmem>>, vector<1x12x128xf32>
    %63 = vector.shape_cast %62 : vector<1x12x128xf32> to vector<12x128xf32>
    %64 = vector.shape_cast %61 : vector<12x128xf32> to vector<1x12x128xf32>
    tpu.vector_store %arg11[%c0_30, %c36, %c0_31], %64 {strides = array<i32>} : memref<8x60x128xf32, #tpu.memory_space<vmem>>, vector<1x12x128xf32>,
    %65 = vector.extract_strided_slice %52 {offsets = [0, 0], sizes = [12, 128], strides = [1, 1]} : vector<128x128xf32> to vector<12x128xf32>
    %c0_32 = arith.constant 0 : index
    %c48 = arith.constant 48 : index
    %c0_33 = arith.constant 0 : index
    %66 = vector.load %arg11[%c0_32, %c48, %c0_33] : memref<8x60x128xf32, #tpu.memory_space<vmem>>, vector<1x12x128xf32>
    %67 = vector.shape_cast %66 : vector<1x12x128xf32> to vector<12x128xf32>
    %68 = vector.shape_cast %65 : vector<12x128xf32> to vector<1x12x128xf32>
    tpu.vector_store %arg11[%c0_32, %c48, %c0_33], %68 {strides = array<i32>} : memref<8x60x128xf32, #tpu.memory_space<vmem>>, vector<1x12x128xf32>,
    %69 = vector.extract_strided_slice %11 {offsets = [32, 0], sizes = [24, 128], strides = [1, 1]} : vector<256x128xf32> to vector<24x128xf32>
    %c1_34 = arith.constant 1 : index
    %c0_35 = arith.constant 0 : index
    %c0_36 = arith.constant 0 : index
    %70 = vector.load %arg11[%c1_34, %c0_35, %c0_36] : memref<8x60x128xf32, #tpu.memory_space<vmem>>, vector<1x24x128xf32>
    %71 = vector.shape_cast %70 : vector<1x24x128xf32> to vector<24x128xf32>
    %72 = vector.shape_cast %69 : vector<24x128xf32> to vector<1x24x128xf32>
    tpu.vector_store %arg11[%c1_34, %c0_35, %c0_36], %72 {strides = array<i32>} : memref<8x60x128xf32, #tpu.memory_space<vmem>>, vector<1x24x128xf32>,
    %73 = vector.extract_strided_slice %23 {offsets = [16, 0], sizes = [12, 128], strides = [1, 1]} : vector<128x128xf32> to vector<12x128xf32>
    %c1_37 = arith.constant 1 : index
    %c24_38 = arith.constant 24 : index
    %c0_39 = arith.constant 0 : index
    %74 = vector.load %arg11[%c1_37, %c24_38, %c0_39] : memref<8x60x128xf32, #tpu.memory_space<vmem>>, vector<1x12x128xf32>
    %75 = vector.shape_cast %74 : vector<1x12x128xf32> to vector<12x128xf32>
    %76 = vector.shape_cast %73 : vector<12x128xf32> to vector<1x12x128xf32>
    tpu.vector_store %arg11[%c1_37, %c24_38, %c0_39], %76 {strides = array<i32>} : memref<8x60x128xf32, #tpu.memory_space<vmem>>, vector<1x12x128xf32>,
    %77 = vector.extract_strided_slice %37 {offsets = [16, 0], sizes = [12, 128], strides = [1, 1]} : vector<128x128xf32> to vector<12x128xf32>
    %c1_40 = arith.constant 1 : index
    %c36_41 = arith.constant 36 : index
    %c0_42 = arith.constant 0 : index
    %78 = vector.load %arg11[%c1_40, %c36_41, %c0_42] : memref<8x60x128xf32, #tpu.memory_space<vmem>>, vector<1x12x128xf32>
    %79 = vector.shape_cast %78 : vector<1x12x128xf32> to vector<12x128xf32>
    %80 = vector.shape_cast %77 : vector<12x128xf32> to vector<1x12x128xf32>
    tpu.vector_store %arg11[%c1_40, %c36_41, %c0_42], %80 {strides = array<i32>} : memref<8x60x128xf32, #tpu.memory_space<vmem>>, vector<1x12x128xf32>,
    %81 = vector.extract_strided_slice %52 {offsets = [16, 0], sizes = [12, 128], strides = [1, 1]} : vector<128x128xf32> to vector<12x128xf32>
    %c1_43 = arith.constant 1 : index
    %c48_44 = arith.constant 48 : index
    %c0_45 = arith.constant 0 : index
    %82 = vector.load %arg11[%c1_43, %c48_44, %c0_45] : memref<8x60x128xf32, #tpu.memory_space<vmem>>, vector<1x12x128xf32>
    %83 = vector.shape_cast %82 : vector<1x12x128xf32> to vector<12x128xf32>
    %84 = vector.shape_cast %81 : vector<12x128xf32> to vector<1x12x128xf32>
    tpu.vector_store %arg11[%c1_43, %c48_44, %c0_45], %84 {strides = array<i32>} : memref<8x60x128xf32, #tpu.memory_space<vmem>>, vector<1x12x128xf32>,
    %85 = vector.extract_strided_slice %11 {offsets = [64, 0], sizes = [24, 128], strides = [1, 1]} : vector<256x128xf32> to vector<24x128xf32>
    %c2_46 = arith.constant 2 : index
    %c0_47 = arith.constant 0 : index
    %c0_48 = arith.constant 0 : index
    %86 = vector.load %arg11[%c2_46, %c0_47, %c0_48] : memref<8x60x128xf32, #tpu.memory_space<vmem>>, vector<1x24x128xf32>
    %87 = vector.shape_cast %86 : vector<1x24x128xf32> to vector<24x128xf32>
    %88 = vector.shape_cast %85 : vector<24x128xf32> to vector<1x24x128xf32>
    tpu.vector_store %arg11[%c2_46, %c0_47, %c0_48], %88 {strides = array<i32>} : memref<8x60x128xf32, #tpu.memory_space<vmem>>, vector<1x24x128xf32>,
    %89 = vector.extract_strided_slice %23 {offsets = [32, 0], sizes = [12, 128], strides = [1, 1]} : vector<128x128xf32> to vector<12x128xf32>
    %c2_49 = arith.constant 2 : index
    %c24_50 = arith.constant 24 : index
    %c0_51 = arith.constant 0 : index
    %90 = vector.load %arg11[%c2_49, %c24_50, %c0_51] : memref<8x60x128xf32, #tpu.memory_space<vmem>>, vector<1x12x128xf32>
    %91 = vector.shape_cast %90 : vector<1x12x128xf32> to vector<12x128xf32>
    %92 = vector.shape_cast %89 : vector<12x128xf32> to vector<1x12x128xf32>
    tpu.vector_store %arg11[%c2_49, %c24_50, %c0_51], %92 {strides = array<i32>} : memref<8x60x128xf32, #tpu.memory_space<vmem>>, vector<1x12x128xf32>,
    %93 = vector.extract_strided_slice %37 {offsets = [32, 0], sizes = [12, 128], strides = [1, 1]} : vector<128x128xf32> to vector<12x128xf32>
    %c2_52 = arith.constant 2 : index
    %c36_53 = arith.constant 36 : index
    %c0_54 = arith.constant 0 : index
    %94 = vector.load %arg11[%c2_52, %c36_53, %c0_54] : memref<8x60x128xf32, #tpu.memory_space<vmem>>, vector<1x12x128xf32>
    %95 = vector.shape_cast %94 : vector<1x12x128xf32> to vector<12x128xf32>
    %96 = vector.shape_cast %93 : vector<12x128xf32> to vector<1x12x128xf32>
    tpu.vector_store %arg11[%c2_52, %c36_53, %c0_54], %96 {strides = array<i32>} : memref<8x60x128xf32, #tpu.memory_space<vmem>>, vector<1x12x128xf32>,
    %97 = vector.extract_strided_slice %52 {offsets = [32, 0], sizes = [12, 128], strides = [1, 1]} : vector<128x128xf32> to vector<12x128xf32>
    %c2_55 = arith.constant 2 : index
    %c48_56 = arith.constant 48 : index
    %c0_57 = arith.constant 0 : index
    %98 = vector.load %arg11[%c2_55, %c48_56, %c0_57] : memref<8x60x128xf32, #tpu.memory_space<vmem>>, vector<1x12x128xf32>
    %99 = vector.shape_cast %98 : vector<1x12x128xf32> to vector<12x128xf32>
    %100 = vector.shape_cast %97 : vector<12x128xf32> to vector<1x12x128xf32>
    tpu.vector_store %arg11[%c2_55, %c48_56, %c0_57], %100 {strides = array<i32>} : memref<8x60x128xf32, #tpu.memory_space<vmem>>, vector<1x12x128xf32>,
    %101 = vector.extract_strided_slice %11 {offsets = [96, 0], sizes = [24, 128], strides = [1, 1]} : vector<256x128xf32> to vector<24x128xf32>
    %c3_58 = arith.constant 3 : index
    %c0_59 = arith.constant 0 : index
    %c0_60 = arith.constant 0 : index
    %102 = vector.load %arg11[%c3_58, %c0_59, %c0_60] : memref<8x60x128xf32, #tpu.memory_space<vmem>>, vector<1x24x128xf32>
    %103 = vector.shape_cast %102 : vector<1x24x128xf32> to vector<24x128xf32>
    %104 = vector.shape_cast %101 : vector<24x128xf32> to vector<1x24x128xf32>
    tpu.vector_store %arg11[%c3_58, %c0_59, %c0_60], %104 {strides = array<i32>} : memref<8x60x128xf32, #tpu.memory_space<vmem>>, vector<1x24x128xf32>,
    %105 = vector.extract_strided_slice %23 {offsets = [48, 0], sizes = [12, 128], strides = [1, 1]} : vector<128x128xf32> to vector<12x128xf32>
    %c3_61 = arith.constant 3 : index
    %c24_62 = arith.constant 24 : index
    %c0_63 = arith.constant 0 : index
    %106 = vector.load %arg11[%c3_61, %c24_62, %c0_63] : memref<8x60x128xf32, #tpu.memory_space<vmem>>, vector<1x12x128xf32>
    %107 = vector.shape_cast %106 : vector<1x12x128xf32> to vector<12x128xf32>
    %108 = vector.shape_cast %105 : vector<12x128xf32> to vector<1x12x128xf32>
    tpu.vector_store %arg11[%c3_61, %c24_62, %c0_63], %108 {strides = array<i32>} : memref<8x60x128xf32, #tpu.memory_space<vmem>>, vector<1x12x128xf32>,
    %109 = vector.extract_strided_slice %37 {offsets = [48, 0], sizes = [12, 128], strides = [1, 1]} : vector<128x128xf32> to vector<12x128xf32>
    %c3_64 = arith.constant 3 : index
    %c36_65 = arith.constant 36 : index
    %c0_66 = arith.constant 0 : index
    %110 = vector.load %arg11[%c3_64, %c36_65, %c0_66] : memref<8x60x128xf32, #tpu.memory_space<vmem>>, vector<1x12x128xf32>
    %111 = vector.shape_cast %110 : vector<1x12x128xf32> to vector<12x128xf32>
    %112 = vector.shape_cast %109 : vector<12x128xf32> to vector<1x12x128xf32>
    tpu.vector_store %arg11[%c3_64, %c36_65, %c0_66], %112 {strides = array<i32>} : memref<8x60x128xf32, #tpu.memory_space<vmem>>, vector<1x12x128xf32>,
    %113 = vector.extract_strided_slice %52 {offsets = [48, 0], sizes = [12, 128], strides = [1, 1]} : vector<128x128xf32> to vector<12x128xf32>
    %c3_67 = arith.constant 3 : index
    %c48_68 = arith.constant 48 : index
    %c0_69 = arith.constant 0 : index
    %114 = vector.load %arg11[%c3_67, %c48_68, %c0_69] : memref<8x60x128xf32, #tpu.memory_space<vmem>>, vector<1x12x128xf32>
    %115 = vector.shape_cast %114 : vector<1x12x128xf32> to vector<12x128xf32>
    %116 = vector.shape_cast %113 : vector<12x128xf32> to vector<1x12x128xf32>
    tpu.vector_store %arg11[%c3_67, %c48_68, %c0_69], %116 {strides = array<i32>} : memref<8x60x128xf32, #tpu.memory_space<vmem>>, vector<1x12x128xf32>,
    %117 = vector.extract_strided_slice %11 {offsets = [128, 0], sizes = [24, 128], strides = [1, 1]} : vector<256x128xf32> to vector<24x128xf32>
    %c4 = arith.constant 4 : index
    %c0_70 = arith.constant 0 : index
    %c0_71 = arith.constant 0 : index
    %118 = vector.load %arg11[%c4, %c0_70, %c0_71] : memref<8x60x128xf32, #tpu.memory_space<vmem>>, vector<1x24x128xf32>
    %119 = vector.shape_cast %118 : vector<1x24x128xf32> to vector<24x128xf32>
    %120 = vector.shape_cast %117 : vector<24x128xf32> to vector<1x24x128xf32>
    tpu.vector_store %arg11[%c4, %c0_70, %c0_71], %120 {strides = array<i32>} : memref<8x60x128xf32, #tpu.memory_space<vmem>>, vector<1x24x128xf32>,
    %121 = vector.extract_strided_slice %23 {offsets = [64, 0], sizes = [12, 128], strides = [1, 1]} : vector<128x128xf32> to vector<12x128xf32>
    %c4_72 = arith.constant 4 : index
    %c24_73 = arith.constant 24 : index
    %c0_74 = arith.constant 0 : index
    %122 = vector.load %arg11[%c4_72, %c24_73, %c0_74] : memref<8x60x128xf32, #tpu.memory_space<vmem>>, vector<1x12x128xf32>
    %123 = vector.shape_cast %122 : vector<1x12x128xf32> to vector<12x128xf32>
    %124 = vector.shape_cast %121 : vector<12x128xf32> to vector<1x12x128xf32>
    tpu.vector_store %arg11[%c4_72, %c24_73, %c0_74], %124 {strides = array<i32>} : memref<8x60x128xf32, #tpu.memory_space<vmem>>, vector<1x12x128xf32>,
    %125 = vector.extract_strided_slice %37 {offsets = [64, 0], sizes = [12, 128], strides = [1, 1]} : vector<128x128xf32> to vector<12x128xf32>
    %c4_75 = arith.constant 4 : index
    %c36_76 = arith.constant 36 : index
    %c0_77 = arith.constant 0 : index
    %126 = vector.load %arg11[%c4_75, %c36_76, %c0_77] : memref<8x60x128xf32, #tpu.memory_space<vmem>>, vector<1x12x128xf32>
    %127 = vector.shape_cast %126 : vector<1x12x128xf32> to vector<12x128xf32>
    %128 = vector.shape_cast %125 : vector<12x128xf32> to vector<1x12x128xf32>
    tpu.vector_store %arg11[%c4_75, %c36_76, %c0_77], %128 {strides = array<i32>} : memref<8x60x128xf32, #tpu.memory_space<vmem>>, vector<1x12x128xf32>,
    %129 = vector.extract_strided_slice %52 {offsets = [64, 0], sizes = [12, 128], strides = [1, 1]} : vector<128x128xf32> to vector<12x128xf32>
    %c4_78 = arith.constant 4 : index
    %c48_79 = arith.constant 48 : index
    %c0_80 = arith.constant 0 : index
    %130 = vector.load %arg11[%c4_78, %c48_79, %c0_80] : memref<8x60x128xf32, #tpu.memory_space<vmem>>, vector<1x12x128xf32>
    %131 = vector.shape_cast %130 : vector<1x12x128xf32> to vector<12x128xf32>
    %132 = vector.shape_cast %129 : vector<12x128xf32> to vector<1x12x128xf32>
    tpu.vector_store %arg11[%c4_78, %c48_79, %c0_80], %132 {strides = array<i32>} : memref<8x60x128xf32, #tpu.memory_space<vmem>>, vector<1x12x128xf32>,
    %133 = vector.extract_strided_slice %11 {offsets = [160, 0], sizes = [24, 128], strides = [1, 1]} : vector<256x128xf32> to vector<24x128xf32>
    %c5 = arith.constant 5 : index
    %c0_81 = arith.constant 0 : index
    %c0_82 = arith.constant 0 : index
    %134 = vector.load %arg11[%c5, %c0_81, %c0_82] : memref<8x60x128xf32, #tpu.memory_space<vmem>>, vector<1x24x128xf32>
    %135 = vector.shape_cast %134 : vector<1x24x128xf32> to vector<24x128xf32>
    %136 = vector.shape_cast %133 : vector<24x128xf32> to vector<1x24x128xf32>
    tpu.vector_store %arg11[%c5, %c0_81, %c0_82], %136 {strides = array<i32>} : memref<8x60x128xf32, #tpu.memory_space<vmem>>, vector<1x24x128xf32>,
    %137 = vector.extract_strided_slice %23 {offsets = [80, 0], sizes = [12, 128], strides = [1, 1]} : vector<128x128xf32> to vector<12x128xf32>
    %c5_83 = arith.constant 5 : index
    %c24_84 = arith.constant 24 : index
    %c0_85 = arith.constant 0 : index
    %138 = vector.load %arg11[%c5_83, %c24_84, %c0_85] : memref<8x60x128xf32, #tpu.memory_space<vmem>>, vector<1x12x128xf32>
    %139 = vector.shape_cast %138 : vector<1x12x128xf32> to vector<12x128xf32>
    %140 = vector.shape_cast %137 : vector<12x128xf32> to vector<1x12x128xf32>
    tpu.vector_store %arg11[%c5_83, %c24_84, %c0_85], %140 {strides = array<i32>} : memref<8x60x128xf32, #tpu.memory_space<vmem>>, vector<1x12x128xf32>,
    %141 = vector.extract_strided_slice %37 {offsets = [80, 0], sizes = [12, 128], strides = [1, 1]} : vector<128x128xf32> to vector<12x128xf32>
    %c5_86 = arith.constant 5 : index
    %c36_87 = arith.constant 36 : index
    %c0_88 = arith.constant 0 : index
    %142 = vector.load %arg11[%c5_86, %c36_87, %c0_88] : memref<8x60x128xf32, #tpu.memory_space<vmem>>, vector<1x12x128xf32>
    %143 = vector.shape_cast %142 : vector<1x12x128xf32> to vector<12x128xf32>
    %144 = vector.shape_cast %141 : vector<12x128xf32> to vector<1x12x128xf32>
    tpu.vector_store %arg11[%c5_86, %c36_87, %c0_88], %144 {strides = array<i32>} : memref<8x60x128xf32, #tpu.memory_space<vmem>>, vector<1x12x128xf32>,
    %145 = vector.extract_strided_slice %52 {offsets = [80, 0], sizes = [12, 128], strides = [1, 1]} : vector<128x128xf32> to vector<12x128xf32>
    %c5_89 = arith.constant 5 : index
    %c48_90 = arith.constant 48 : index
    %c0_91 = arith.constant 0 : index
    %146 = vector.load %arg11[%c5_89, %c48_90, %c0_91] : memref<8x60x128xf32, #tpu.memory_space<vmem>>, vector<1x12x128xf32>
    %147 = vector.shape_cast %146 : vector<1x12x128xf32> to vector<12x128xf32>
    %148 = vector.shape_cast %145 : vector<12x128xf32> to vector<1x12x128xf32>
    tpu.vector_store %arg11[%c5_89, %c48_90, %c0_91], %148 {strides = array<i32>} : memref<8x60x128xf32, #tpu.memory_space<vmem>>, vector<1x12x128xf32>,
    %149 = vector.extract_strided_slice %11 {offsets = [192, 0], sizes = [24, 128], strides = [1, 1]} : vector<256x128xf32> to vector<24x128xf32>
    %c6 = arith.constant 6 : index
    %c0_92 = arith.constant 0 : index
    %c0_93 = arith.constant 0 : index
    %150 = vector.load %arg11[%c6, %c0_92, %c0_93] : memref<8x60x128xf32, #tpu.memory_space<vmem>>, vector<1x24x128xf32>
    %151 = vector.shape_cast %150 : vector<1x24x128xf32> to vector<24x128xf32>
    %152 = vector.shape_cast %149 : vector<24x128xf32> to vector<1x24x128xf32>
    tpu.vector_store %arg11[%c6, %c0_92, %c0_93], %152 {strides = array<i32>} : memref<8x60x128xf32, #tpu.memory_space<vmem>>, vector<1x24x128xf32>,
    %153 = vector.extract_strided_slice %23 {offsets = [96, 0], sizes = [12, 128], strides = [1, 1]} : vector<128x128xf32> to vector<12x128xf32>
    %c6_94 = arith.constant 6 : index
    %c24_95 = arith.constant 24 : index
    %c0_96 = arith.constant 0 : index
    %154 = vector.load %arg11[%c6_94, %c24_95, %c0_96] : memref<8x60x128xf32, #tpu.memory_space<vmem>>, vector<1x12x128xf32>
    %155 = vector.shape_cast %154 : vector<1x12x128xf32> to vector<12x128xf32>
    %156 = vector.shape_cast %153 : vector<12x128xf32> to vector<1x12x128xf32>
    tpu.vector_store %arg11[%c6_94, %c24_95, %c0_96], %156 {strides = array<i32>} : memref<8x60x128xf32, #tpu.memory_space<vmem>>, vector<1x12x128xf32>,
    %157 = vector.extract_strided_slice %37 {offsets = [96, 0], sizes = [12, 128], strides = [1, 1]} : vector<128x128xf32> to vector<12x128xf32>
    %c6_97 = arith.constant 6 : index
    %c36_98 = arith.constant 36 : index
    %c0_99 = arith.constant 0 : index
    %158 = vector.load %arg11[%c6_97, %c36_98, %c0_99] : memref<8x60x128xf32, #tpu.memory_space<vmem>>, vector<1x12x128xf32>
    %159 = vector.shape_cast %158 : vector<1x12x128xf32> to vector<12x128xf32>
    %160 = vector.shape_cast %157 : vector<12x128xf32> to vector<1x12x128xf32>
    tpu.vector_store %arg11[%c6_97, %c36_98, %c0_99], %160 {strides = array<i32>} : memref<8x60x128xf32, #tpu.memory_space<vmem>>, vector<1x12x128xf32>,
    %161 = vector.extract_strided_slice %52 {offsets = [96, 0], sizes = [12, 128], strides = [1, 1]} : vector<128x128xf32> to vector<12x128xf32>
    %c6_100 = arith.constant 6 : index
    %c48_101 = arith.constant 48 : index
    %c0_102 = arith.constant 0 : index
    %162 = vector.load %arg11[%c6_100, %c48_101, %c0_102] : memref<8x60x128xf32, #tpu.memory_space<vmem>>, vector<1x12x128xf32>
    %163 = vector.shape_cast %162 : vector<1x12x128xf32> to vector<12x128xf32>
    %164 = vector.shape_cast %161 : vector<12x128xf32> to vector<1x12x128xf32>
    tpu.vector_store %arg11[%c6_100, %c48_101, %c0_102], %164 {strides = array<i32>} : memref<8x60x128xf32, #tpu.memory_space<vmem>>, vector<1x12x128xf32>,
    %165 = vector.extract_strided_slice %11 {offsets = [224, 0], sizes = [24, 128], strides = [1, 1]} : vector<256x128xf32> to vector<24x128xf32>
    %c7 = arith.constant 7 : index
    %c0_103 = arith.constant 0 : index
    %c0_104 = arith.constant 0 : index
    %166 = vector.load %arg11[%c7, %c0_103, %c0_104] : memref<8x60x128xf32, #tpu.memory_space<vmem>>, vector<1x24x128xf32>
    %167 = vector.shape_cast %166 : vector<1x24x128xf32> to vector<24x128xf32>
    %168 = vector.shape_cast %165 : vector<24x128xf32> to vector<1x24x128xf32>
    tpu.vector_store %arg11[%c7, %c0_103, %c0_104], %168 {strides = array<i32>} : memref<8x60x128xf32, #tpu.memory_space<vmem>>, vector<1x24x128xf32>,
    %169 = vector.extract_strided_slice %23 {offsets = [112, 0], sizes = [12, 128], strides = [1, 1]} : vector<128x128xf32> to vector<12x128xf32>
    %c7_105 = arith.constant 7 : index
    %c24_106 = arith.constant 24 : index
    %c0_107 = arith.constant 0 : index
    %170 = vector.load %arg11[%c7_105, %c24_106, %c0_107] : memref<8x60x128xf32, #tpu.memory_space<vmem>>, vector<1x12x128xf32>
    %171 = vector.shape_cast %170 : vector<1x12x128xf32> to vector<12x128xf32>
    %172 = vector.shape_cast %169 : vector<12x128xf32> to vector<1x12x128xf32>
    tpu.vector_store %arg11[%c7_105, %c24_106, %c0_107], %172 {strides = array<i32>} : memref<8x60x128xf32, #tpu.memory_space<vmem>>, vector<1x12x128xf32>,
    %173 = vector.extract_strided_slice %37 {offsets = [112, 0], sizes = [12, 128], strides = [1, 1]} : vector<128x128xf32> to vector<12x128xf32>
    %c7_108 = arith.constant 7 : index
    %c36_109 = arith.constant 36 : index
    %c0_110 = arith.constant 0 : index
    %174 = vector.load %arg11[%c7_108, %c36_109, %c0_110] : memref<8x60x128xf32, #tpu.memory_space<vmem>>, vector<1x12x128xf32>
    %175 = vector.shape_cast %174 : vector<1x12x128xf32> to vector<12x128xf32>
    %176 = vector.shape_cast %173 : vector<12x128xf32> to vector<1x12x128xf32>
    tpu.vector_store %arg11[%c7_108, %c36_109, %c0_110], %176 {strides = array<i32>} : memref<8x60x128xf32, #tpu.memory_space<vmem>>, vector<1x12x128xf32>,
    %177 = vector.extract_strided_slice %52 {offsets = [112, 0], sizes = [12, 128], strides = [1, 1]} : vector<128x128xf32> to vector<12x128xf32>
    %c7_111 = arith.constant 7 : index
    %c48_112 = arith.constant 48 : index
    %c0_113 = arith.constant 0 : index
    %178 = vector.load %arg11[%c7_111, %c48_112, %c0_113] : memref<8x60x128xf32, #tpu.memory_space<vmem>>, vector<1x12x128xf32>
    %179 = vector.shape_cast %178 : vector<1x12x128xf32> to vector<12x128xf32>
    %180 = vector.shape_cast %177 : vector<12x128xf32> to vector<1x12x128xf32>
    tpu.vector_store %arg11[%c7_111, %c48_112, %c0_113], %180 {strides = array<i32>} : memref<8x60x128xf32, #tpu.memory_space<vmem>>, vector<1x12x128xf32>,
    return
  }
  func.func @transform_0(%arg0: i32) -> (i32, i32) {
    %c0_i32 = arith.constant 0 : i32
    %c0_i32_0 = arith.constant 0 : i32
    return %c0_i32, %arg0 : i32, i32
  }
  func.func @transform_1(%arg0: i32) -> (i32, i32) {
    %c0_i32 = arith.constant 0 : i32
    %c0_i32_0 = arith.constant 0 : i32
    %c0_i32_1 = arith.constant 0 : i32
    return %c0_i32, %c0_i32_0 : i32, i32
  }
  func.func @transform_2(%arg0: i32) -> (i32, i32) {
    %c0_i32 = arith.constant 0 : i32
    %c0_i32_0 = arith.constant 0 : i32
    %c0_i32_1 = arith.constant 0 : i32
    return %c0_i32, %c0_i32_0 : i32, i32
  }
  func.func @transform_3(%arg0: i32) -> (i32, i32) {
    %c0_i32 = arith.constant 0 : i32
    %c0_i32_0 = arith.constant 0 : i32
    %c0_i32_1 = arith.constant 0 : i32
    return %c0_i32, %c0_i32_0 : i32, i32
  }
  func.func @transform_4(%arg0: i32) -> (i32, i32) {
    %c0_i32 = arith.constant 0 : i32
    %c0_i32_0 = arith.constant 0 : i32
    %c0_i32_1 = arith.constant 0 : i32
    return %c0_i32, %c0_i32_0 : i32, i32
  }
  func.func @transform_5(%arg0: i32) -> (i32, i32) {
    %c0_i32 = arith.constant 0 : i32
    %c0_i32_0 = arith.constant 0 : i32
    %c0_i32_1 = arith.constant 0 : i32
    return %c0_i32, %c0_i32_0 : i32, i32
  }
  func.func @transform_6(%arg0: i32) -> (i32, i32) {
    %c0_i32 = arith.constant 0 : i32
    %c0_i32_0 = arith.constant 0 : i32
    %c0_i32_1 = arith.constant 0 : i32
    return %c0_i32, %c0_i32_0 : i32, i32
  }
  func.func @transform_7(%arg0: i32) -> (i32, i32) {
    %c0_i32 = arith.constant 0 : i32
    %c0_i32_0 = arith.constant 0 : i32
    %c0_i32_1 = arith.constant 0 : i32
    return %c0_i32, %c0_i32_0 : i32, i32
  }
  func.func @transform_8(%arg0: i32) -> (i32, i32) {
    %c0_i32 = arith.constant 0 : i32
    %c0_i32_0 = arith.constant 0 : i32
    %c0_i32_1 = arith.constant 0 : i32
    return %c0_i32, %c0_i32_0 : i32, i32
  }
  func.func @transform_9(%arg0: i32) -> i32 {
    %c0_i32 = arith.constant 0 : i32
    %c0_i32_0 = arith.constant 0 : i32
    return %c0_i32 : i32
  }
  func.func @transform_10(%arg0: i32) -> (i32, i32, i32) {
    %c0_i32 = arith.constant 0 : i32
    %c0_i32_0 = arith.constant 0 : i32
    %c0_i32_1 = arith.constant 0 : i32
    return %c0_i32, %c0_i32_0, %arg0 : i32, i32, i32
  }
}

</mosaic_0001>

<llo_original>
// kernel: tile.23
$region0: #{tile.23}
  #allocation0 [shape = 's32[1]{0}', space=sflag, size = 0x4, scoped, tag = 'scoped memory for tile.23']
  %s0 = inlined_call_operand.vmem [shape: f32[32], index: 0, kind: input, shape index: {}]
  %s1 = inlined_call_operand.vmem [shape: f32[8,32], index: 1, kind: output, shape index: {}]
  // Predicated region
  $region2: #{tile.23} parent=0 // pred_check
    _
  $region3: #{tile.23} parent=0 // pred_check_branch
    %3 = sbr.rel (0) target = $region5
  $region4: #{tile.23} parent=0 // pred_region
    _
  $region5: #{tile.23} parent=0 // pred_fallthru
    _
  %v4 = vld [vmem:[%s0] ss:$0 sm:$0xff]
  %5 = vst [vmem:[%s1] sm:$0xff] %v4

// kernel: tile.0
$region0: #{tile.0}
  %s0 = inlined_call_operand.vmem [shape: f32[8,32], index: 0, kind: input, shape index: {}]
  %s1 = inlined_call_operand.vmem [shape: f32[256,1], index: 1, kind: output, shape index: {}]
  %v2 = vld [vmem:[%s0] sm:$0xff]
  %vm3 = vcmask 7168
  %4 = vst.msk [vmem:[%s1] sm:$0x1] %vm3, %v2
  %s5 = scalar_lea.vmem %s1, 31
  %6 = vst.msk [vmem:[%s5] sm:$0x2] %vm3, %v2
  %s7 = scalar_lea.vmem %s1, 62
  %8 = vst.msk [vmem:[%s7] sm:$0x4] %vm3, %v2
  %s9 = scalar_lea.vmem %s1, 93
  %10 = vst.msk [vmem:[%s9] sm:$0x8] %vm3, %v2
  %s11 = scalar_lea.vmem %s1, 124
  %12 = vst.msk [vmem:[%s11] sm:$0x10] %vm3, %v2
  %s13 = scalar_lea.vmem %s1, 155
  %14 = vst.msk [vmem:[%s13] sm:$0x20] %vm3, %v2
  %s15 = scalar_lea.vmem %s1, 186
  %16 = vst.msk [vmem:[%s15] sm:$0x40] %vm3, %v2
  %s17 = scalar_lea.vmem %s1, 217
  %18 = vst.msk [vmem:[%s17] sm:$0x80] %vm3, %v2
  %v19 = vld [vmem:[%s0] sm:$0xff]
  %20 = vrot.lane.b32.xlu0 %v19, 127
  %v21 = vpop.permute.xlu0 %20
  %vm22 = vcmask 7168
  %s23 = scalar_lea.vmem %s1, 1
  %24 = vst.msk [vmem:[%s23] sm:$0x1] %vm22, %v21
  %s25 = scalar_lea.vmem %s1, 32
  %26 = vst.msk [vmem:[%s25] sm:$0x2] %vm22, %v21
  %s27 = scalar_lea.vmem %s1, 63
  %28 = vst.msk [vmem:[%s27] sm:$0x4] %vm22, %v21
  %s29 = scalar_lea.vmem %s1, 94
  %30 = vst.msk [vmem:[%s29] sm:$0x8] %vm22, %v21
  %s31 = scalar_lea.vmem %s1, 125
  %32 = vst.msk [vmem:[%s31] sm:$0x10] %vm22, %v21
  %s33 = scalar_lea.vmem %s1, 156
  %34 = vst.msk [vmem:[%s33] sm:$0x20] %vm22, %v21
  %s35 = scalar_lea.vmem %s1, 187
  %36 = vst.msk [vmem:[%s35] sm:$0x40] %vm22, %v21
  %s37 = scalar_lea.vmem %s1, 218
  %38 = vst.msk [vmem:[%s37] sm:$0x80] %vm22, %v21
  %v39 = vld [vmem:[%s0] sm:$0xff]
  %40 = vrot.lane.b32.xlu0 %v39, 126
  %v41 = vpop.permute.xlu0 %40
  %vm42 = vcmask 7168
  %s43 = scalar_lea.vmem %s1, 2
  %44 = vst.msk [vmem:[%s43] sm:$0x1] %vm42, %v41
  %s45 = scalar_lea.vmem %s1, 33
  %46 = vst.msk [vmem:[%s45] sm:$0x2] %vm42, %v41
  %s47 = scalar_lea.vmem %s1, 64
  %48 = vst.msk [vmem:[%s47] sm:$0x4] %vm42, %v41
  %s49 = scalar_lea.vmem %s1, 95
  %50 = vst.msk [vmem:[%s49] sm:$0x8] %vm42, %v41
  %s51 = scalar_lea.vmem %s1, 126
  %52 = vst.msk [vmem:[%s51] sm:$0x10] %vm42, %v41
  %s53 = scalar_lea.vmem %s1, 157
  %54 = vst.msk [vmem:[%s53] sm:$0x20] %vm42, %v41
  %s55 = scalar_lea.vmem %s1, 188
  %56 = vst.msk [vmem:[%s55] sm:$0x40] %vm42, %v41
  %s57 = scalar_lea.vmem %s1, 219
  %58 = vst.msk [vmem:[%s57] sm:$0x80] %vm42, %v41
  %v59 = vld [vmem:[%s0] sm:$0xff]
  %60 = vrot.lane.b32.xlu0 %v59, 125
  %v61 = vpop.permute.xlu0 %60
  %vm62 = vcmask 7168
  %s63 = scalar_lea.vmem %s1, 3
  %64 = vst.msk [vmem:[%s63] sm:$0x1] %vm62, %v61
  %s65 = scalar_lea.vmem %s1, 34
  %66 = vst.msk [vmem:[%s65] sm:$0x2] %vm62, %v61
  %s67 = scalar_lea.vmem %s1, 65
  %68 = vst.msk [vmem:[%s67] sm:$0x4] %vm62, %v61
  %s69 = scalar_lea.vmem %s1, 96
  %70 = vst.msk [vmem:[%s69] sm:$0x8] %vm62, %v61
  %s71 = scalar_lea.vmem %s1, 127
  %72 = vst.msk [vmem:[%s71] sm:$0x10] %vm62, %v61
  %s73 = scalar_lea.vmem %s1, 158
  %74 = vst.msk [vmem:[%s73] sm:$0x20] %vm62, %v61
  %s75 = scalar_lea.vmem %s1, 189
  %76 = vst.msk [vmem:[%s75] sm:$0x40] %vm62, %v61
  %s77 = scalar_lea.vmem %s1, 220
  %78 = vst.msk [vmem:[%s77] sm:$0x80] %vm62, %v61
  %v79 = vld [vmem:[%s0] sm:$0xff]
  %80 = vrot.lane.b32.xlu0 %v79, 124
  %v81 = vpop.permute.xlu0 %80
  %vm82 = vcmask 7168
  %s83 = scalar_lea.vmem %s1, 4
  %84 = vst.msk [vmem:[%s83] sm:$0x1] %vm82, %v81
  %s85 = scalar_lea.vmem %s1, 35
  %86 = vst.msk [vmem:[%s85] sm:$0x2] %vm82, %v81
  %s87 = scalar_lea.vmem %s1, 66
  %88 = vst.msk [vmem:[%s87] sm:$0x4] %vm82, %v81
  %s89 = scalar_lea.vmem %s1, 97
  %90 = vst.msk [vmem:[%s89] sm:$0x8] %vm82, %v81
  %s91 = scalar_lea.vmem %s1, 128
  %92 = vst.msk [vmem:[%s91] sm:$0x10] %vm82, %v81
  %s93 = scalar_lea.vmem %s1, 159
  %94 = vst.msk [vmem:[%s93] sm:$0x20] %vm82, %v81
  %s95 = scalar_lea.vmem %s1, 190
  %96 = vst.msk [vmem:[%s95] sm:$0x40] %vm82, %v81
  %s97 = scalar_lea.vmem %s1, 221
  %98 = vst.msk [vmem:[%s97] sm:$0x80] %vm82, %v81
  %v99 = vld [vmem:[%s0] sm:$0xff]
  %100 = vrot.lane.b32.xlu0 %v99, 123
  %v101 = vpop.permute.xlu0 %100
  %vm102 = vcmask 7168
  %s103 = scalar_lea.vmem %s1, 5
  %104 = vst.msk [vmem:[%s103] sm:$0x1] %vm102, %v101
  %s105 = scalar_lea.vmem %s1, 36
  %106 = vst.msk [vmem:[%s105] sm:$0x2] %vm102, %v101
  %s107 = scalar_lea.vmem %s1, 67
  %108 = vst.msk [vmem:[%s107] sm:$0x4] %vm102, %v101
  %s109 = scalar_lea.vmem %s1, 98
  %110 = vst.msk [vmem:[%s109] sm:$0x8] %vm102, %v101
  %s111 = scalar_lea.vmem %s1, 129
  %112 = vst.msk [vmem:[%s111] sm:$0x10] %vm102, %v101
  %s113 = scalar_lea.vmem %s1, 160
  %114 = vst.msk [vmem:[%s113] sm:$0x20] %vm102, %v101
  %s115 = scalar_lea.vmem %s1, 191
  %116 = vst.msk [vmem:[%s115] sm:$0x40] %vm102, %v101
  %s117 = scalar_lea.vmem %s1, 222
  %118 = vst.msk [vmem:[%s117] sm:$0x80] %vm102, %v101
  %v119 = vld [vmem:[%s0] sm:$0xff]
  %120 = vrot.lane.b32.xlu0 %v119, 122
  %v121 = vpop.permute.xlu0 %120
  %vm122 = vcmask 7168
  %s123 = scalar_lea.vmem %s1, 6
  %124 = vst.msk [vmem:[%s123] sm:$0x1] %vm122, %v121
  %s125 = scalar_lea.vmem %s1, 37
  %126 = vst.msk [vmem:[%s125] sm:$0x2] %vm122, %v121
  %s127 = scalar_lea.vmem %s1, 68
  %128 = vst.msk [vmem:[%s127] sm:$0x4] %vm122, %v121
  %s129 = scalar_lea.vmem %s1, 99
  %130 = vst.msk [vmem:[%s129] sm:$0x8] %vm122, %v121
  %s131 = scalar_lea.vmem %s1, 130
  %132 = vst.msk [vmem:[%s131] sm:$0x10] %vm122, %v121
  %s133 = scalar_lea.vmem %s1, 161
  %134 = vst.msk [vmem:[%s133] sm:$0x20] %vm122, %v121
  %s135 = scalar_lea.vmem %s1, 192
  %136 = vst.msk [vmem:[%s135] sm:$0x40] %vm122, %v121
  %s137 = scalar_lea.vmem %s1, 223
  %138 = vst.msk [vmem:[%s137] sm:$0x80] %vm122, %v121
  %v139 = vld [vmem:[%s0] sm:$0xff]
  %140 = vrot.lane.b32.xlu0 %v139, 121
  %v141 = vpop.permute.xlu0 %140
  %vm142 = vcmask 7168
  %s143 = scalar_lea.vmem %s1, 7
  %144 = vst.msk [vmem:[%s143] sm:$0x1] %vm142, %v141
  %s145 = scalar_lea.vmem %s1, 38
  %146 = vst.msk [vmem:[%s145] sm:$0x2] %vm142, %v141
  %s147 = scalar_lea.vmem %s1, 69
  %148 = vst.msk [vmem:[%s147] sm:$0x4] %vm142, %v141
  %s149 = scalar_lea.vmem %s1, 100
  %150 = vst.msk [vmem:[%s149] sm:$0x8] %vm142, %v141
  %s151 = scalar_lea.vmem %s1, 131
  %152 = vst.msk [vmem:[%s151] sm:$0x10] %vm142, %v141
  %s153 = scalar_lea.vmem %s1, 162
  %154 = vst.msk [vmem:[%s153] sm:$0x20] %vm142, %v141
  %s155 = scalar_lea.vmem %s1, 193
  %156 = vst.msk [vmem:[%s155] sm:$0x40] %vm142, %v141
  %s157 = scalar_lea.vmem %s1, 224
  %158 = vst.msk [vmem:[%s157] sm:$0x80] %vm142, %v141
  %v159 = vld [vmem:[%s0] sm:$0xff]
  %160 = vrot.lane.b32.xlu0 %v159, 120
  %v161 = vpop.permute.xlu0 %160
  %vm162 = vcmask 7168
  %s163 = scalar_lea.vmem %s1, 8
  %164 = vst.msk [vmem:[%s163] sm:$0x1] %vm162, %v161
  %s165 = scalar_lea.vmem %s1, 39
  %166 = vst.msk [vmem:[%s165] sm:$0x2] %vm162, %v161
  %s167 = scalar_lea.vmem %s1, 70
  %168 = vst.msk [vmem:[%s167] sm:$0x4] %vm162, %v161
  %s169 = scalar_lea.vmem %s1, 101
  %170 = vst.msk [vmem:[%s169] sm:$0x8] %vm162, %v161
  %s171 = scalar_lea.vmem %s1, 132
  %172 = vst.msk [vmem:[%s171] sm:$0x10] %vm162, %v161
  %s173 = scalar_lea.vmem %s1, 163
  %174 = vst.msk [vmem:[%s173] sm:$0x20] %vm162, %v161
  %s175 = scalar_lea.vmem %s1, 194
  %176 = vst.msk [vmem:[%s175] sm:$0x40] %vm162, %v161
  %s177 = scalar_lea.vmem %s1, 225
  %178 = vst.msk [vmem:[%s177] sm:$0x80] %vm162, %v161
  %v179 = vld [vmem:[%s0] sm:$0xff]
  %180 = vrot.lane.b32.xlu0 %v179, 119
  %v181 = vpop.permute.xlu0 %180
  %vm182 = vcmask 7168
  %s183 = scalar_lea.vmem %s1, 9
  %184 = vst.msk [vmem:[%s183] sm:$0x1] %vm182, %v181
  %s185 = scalar_lea.vmem %s1, 40
  %186 = vst.msk [vmem:[%s185] sm:$0x2] %vm182, %v181
  %s187 = scalar_lea.vmem %s1, 71
  %188 = vst.msk [vmem:[%s187] sm:$0x4] %vm182, %v181
  %s189 = scalar_lea.vmem %s1, 102
  %190 = vst.msk [vmem:[%s189] sm:$0x8] %vm182, %v181
  %s191 = scalar_lea.vmem %s1, 133
  %192 = vst.msk [vmem:[%s191] sm:$0x10] %vm182, %v181
  %s193 = scalar_lea.vmem %s1, 164
  %194 = vst.msk [vmem:[%s193] sm:$0x20] %vm182, %v181
  %s195 = scalar_lea.vmem %s1, 195
  %196 = vst.msk [vmem:[%s195] sm:$0x40] %vm182, %v181
  %s197 = scalar_lea.vmem %s1, 226
  %198 = vst.msk [vmem:[%s197] sm:$0x80] %vm182, %v181
  %v199 = vld [vmem:[%s0] sm:$0xff]
  %200 = vrot.lane.b32.xlu0 %v199, 118
  %v201 = vpop.permute.xlu0 %200
  %vm202 = vcmask 7168
  %s203 = scalar_lea.vmem %s1, 10
  %204 = vst.msk [vmem:[%s203] sm:$0x1] %vm202, %v201
  %s205 = scalar_lea.vmem %s1, 41
  %206 = vst.msk [vmem:[%s205] sm:$0x2] %vm202, %v201
  %s207 = scalar_lea.vmem %s1, 72
  %208 = vst.msk [vmem:[%s207] sm:$0x4] %vm202, %v201
  %s209 = scalar_lea.vmem %s1, 103
  %210 = vst.msk [vmem:[%s209] sm:$0x8] %vm202, %v201
  %s211 = scalar_lea.vmem %s1, 134
  %212 = vst.msk [vmem:[%s211] sm:$0x10] %vm202, %v201
  %s213 = scalar_lea.vmem %s1, 165
  %214 = vst.msk [vmem:[%s213] sm:$0x20] %vm202, %v201
  %s215 = scalar_lea.vmem %s1, 196
  %216 = vst.msk [vmem:[%s215] sm:$0x40] %vm202, %v201
  %s217 = scalar_lea.vmem %s1, 227
  %218 = vst.msk [vmem:[%s217] sm:$0x80] %vm202, %v201
  %v219 = vld [vmem:[%s0] sm:$0xff]
  %220 = vrot.lane.b32.xlu0 %v219, 117
  %v221 = vpop.permute.xlu0 %220
  %vm222 = vcmask 7168
  %s223 = scalar_lea.vmem %s1, 11
  %224 = vst.msk [vmem:[%s223] sm:$0x1] %vm222, %v221
  %s225 = scalar_lea.vmem %s1, 42
  %226 = vst.msk [vmem:[%s225] sm:$0x2] %vm222, %v221
  %s227 = scalar_lea.vmem %s1, 73
  %228 = vst.msk [vmem:[%s227] sm:$0x4] %vm222, %v221
  %s229 = scalar_lea.vmem %s1, 104
  %230 = vst.msk [vmem:[%s229] sm:$0x8] %vm222, %v221
  %s231 = scalar_lea.vmem %s1, 135
  %232 = vst.msk [vmem:[%s231] sm:$0x10] %vm222, %v221
  %s233 = scalar_lea.vmem %s1, 166
  %234 = vst.msk [vmem:[%s233] sm:$0x20] %vm222, %v221
  %s235 = scalar_lea.vmem %s1, 197
  %236 = vst.msk [vmem:[%s235] sm:$0x40] %vm222, %v221
  %s237 = scalar_lea.vmem %s1, 228
  %238 = vst.msk [vmem:[%s237] sm:$0x80] %vm222, %v221
  %v239 = vld [vmem:[%s0] sm:$0xff]
  %240 = vrot.lane.b32.xlu0 %v239, 116
  %v241 = vpop.permute.xlu0 %240
  %vm242 = vcmask 7168
  %s243 = scalar_lea.vmem %s1, 12
  %244 = vst.msk [vmem:[%s243] sm:$0x1] %vm242, %v241
  %s245 = scalar_lea.vmem %s1, 43
  %246 = vst.msk [vmem:[%s245] sm:$0x2] %vm242, %v241
  %s247 = scalar_lea.vmem %s1, 74
  %248 = vst.msk [vmem:[%s247] sm:$0x4] %vm242, %v241
  %s249 = scalar_lea.vmem %s1, 105
  %250 = vst.msk [vmem:[%s249] sm:$0x8] %vm242, %v241
  %s251 = scalar_lea.vmem %s1, 136
  %252 = vst.msk [vmem:[%s251] sm:$0x10] %vm242, %v241
  %s253 = scalar_lea.vmem %s1, 167
  %254 = vst.msk [vmem:[%s253] sm:$0x20] %vm242, %v241
  %s255 = scalar_lea.vmem %s1, 198
  %256 = vst.msk [vmem:[%s255] sm:$0x40] %vm242, %v241
  %s257 = scalar_lea.vmem %s1, 229
  %258 = vst.msk [vmem:[%s257] sm:$0x80] %vm242, %v241
  %v259 = vld [vmem:[%s0] sm:$0xff]
  %260 = vrot.lane.b32.xlu0 %v259, 115
  %v261 = vpop.permute.xlu0 %260
  %vm262 = vcmask 7168
  %s263 = scalar_lea.vmem %s1, 13
  %264 = vst.msk [vmem:[%s263] sm:$0x1] %vm262, %v261
  %s265 = scalar_lea.vmem %s1, 44
  %266 = vst.msk [vmem:[%s265] sm:$0x2] %vm262, %v261
  %s267 = scalar_lea.vmem %s1, 75
  %268 = vst.msk [vmem:[%s267] sm:$0x4] %vm262, %v261
  %s269 = scalar_lea.vmem %s1, 106
  %270 = vst.msk [vmem:[%s269] sm:$0x8] %vm262, %v261
  %s271 = scalar_lea.vmem %s1, 137
  %272 = vst.msk [vmem:[%s271] sm:$0x10] %vm262, %v261
  %s273 = scalar_lea.vmem %s1, 168
  %274 = vst.msk [vmem:[%s273] sm:$0x20] %vm262, %v261
  %s275 = scalar_lea.vmem %s1, 199
  %276 = vst.msk [vmem:[%s275] sm:$0x40] %vm262, %v261
  %s277 = scalar_lea.vmem %s1, 230
  %278 = vst.msk [vmem:[%s277] sm:$0x80] %vm262, %v261
  %v279 = vld [vmem:[%s0] sm:$0xff]
  %280 = vrot.lane.b32.xlu0 %v279, 114
  %v281 = vpop.permute.xlu0 %280
  %vm282 = vcmask 7168
  %s283 = scalar_lea.vmem %s1, 14
  %284 = vst.msk [vmem:[%s283] sm:$0x1] %vm282, %v281
  %s285 = scalar_lea.vmem %s1, 45
  %286 = vst.msk [vmem:[%s285] sm:$0x2] %vm282, %v281
  %s287 = scalar_lea.vmem %s1, 76
  %288 = vst.msk [vmem:[%s287] sm:$0x4] %vm282, %v281
  %s289 = scalar_lea.vmem %s1, 107
  %290 = vst.msk [vmem:[%s289] sm:$0x8] %vm282, %v281
  %s291 = scalar_lea.vmem %s1, 138
  %292 = vst.msk [vmem:[%s291] sm:$0x10] %vm282, %v281
  %s293 = scalar_lea.vmem %s1, 169
  %294 = vst.msk [vmem:[%s293] sm:$0x20] %vm282, %v281
  %s295 = scalar_lea.vmem %s1, 200
  %296 = vst.msk [vmem:[%s295] sm:$0x40] %vm282, %v281
  %s297 = scalar_lea.vmem %s1, 231
  %298 = vst.msk [vmem:[%s297] sm:$0x80] %vm282, %v281
  %v299 = vld [vmem:[%s0] sm:$0xff]
  %300 = vrot.lane.b32.xlu0 %v299, 113
  %v301 = vpop.permute.xlu0 %300
  %vm302 = vcmask 7168
  %s303 = scalar_lea.vmem %s1, 15
  %304 = vst.msk [vmem:[%s303] sm:$0x1] %vm302, %v301
  %s305 = scalar_lea.vmem %s1, 46
  %306 = vst.msk [vmem:[%s305] sm:$0x2] %vm302, %v301
  %s307 = scalar_lea.vmem %s1, 77
  %308 = vst.msk [vmem:[%s307] sm:$0x4] %vm302, %v301
  %s309 = scalar_lea.vmem %s1, 108
  %310 = vst.msk [vmem:[%s309] sm:$0x8] %vm302, %v301
  %s311 = scalar_lea.vmem %s1, 139
  %312 = vst.msk [vmem:[%s311] sm:$0x10] %vm302, %v301
  %s313 = scalar_lea.vmem %s1, 170
  %314 = vst.msk [vmem:[%s313] sm:$0x20] %vm302, %v301
  %s315 = scalar_lea.vmem %s1, 201
  %316 = vst.msk [vmem:[%s315] sm:$0x40] %vm302, %v301
  %s317 = scalar_lea.vmem %s1, 232
  %318 = vst.msk [vmem:[%s317] sm:$0x80] %vm302, %v301
  %v319 = vld [vmem:[%s0] sm:$0xff]
  %320 = vrot.lane.b32.xlu0 %v319, 112
  %v321 = vpop.permute.xlu0 %320
  %vm322 = vcmask 7168
  %s323 = scalar_lea.vmem %s1, 16
  %324 = vst.msk [vmem:[%s323] sm:$0x1] %vm322, %v321
  %s325 = scalar_lea.vmem %s1, 47
  %326 = vst.msk [vmem:[%s325] sm:$0x2] %vm322, %v321
  %s327 = scalar_lea.vmem %s1, 78
  %328 = vst.msk [vmem:[%s327] sm:$0x4] %vm322, %v321
  %s329 = scalar_lea.vmem %s1, 109
  %330 = vst.msk [vmem:[%s329] sm:$0x8] %vm322, %v321
  %s331 = scalar_lea.vmem %s1, 140
  %332 = vst.msk [vmem:[%s331] sm:$0x10] %vm322, %v321
  %s333 = scalar_lea.vmem %s1, 171
  %334 = vst.msk [vmem:[%s333] sm:$0x20] %vm322, %v321
  %s335 = scalar_lea.vmem %s1, 202
  %336 = vst.msk [vmem:[%s335] sm:$0x40] %vm322, %v321
  %s337 = scalar_lea.vmem %s1, 233
  %338 = vst.msk [vmem:[%s337] sm:$0x80] %vm322, %v321
  %v339 = vld [vmem:[%s0] sm:$0xff]
  %340 = vrot.lane.b32.xlu0 %v339, 111
  %v341 = vpop.permute.xlu0 %340
  %vm342 = vcmask 7168
  %s343 = scalar_lea.vmem %s1, 17
  %344 = vst.msk [vmem:[%s343] sm:$0x1] %vm342, %v341
  %s345 = scalar_lea.vmem %s1, 48
  %346 = vst.msk [vmem:[%s345] sm:$0x2] %vm342, %v341
  %s347 = scalar_lea.vmem %s1, 79
  %348 = vst.msk [vmem:[%s347] sm:$0x4] %vm342, %v341
  %s349 = scalar_lea.vmem %s1, 110
  %350 = vst.msk [vmem:[%s349] sm:$0x8] %vm342, %v341
  %s351 = scalar_lea.vmem %s1, 141
  %352 = vst.msk [vmem:[%s351] sm:$0x10] %vm342, %v341
  %s353 = scalar_lea.vmem %s1, 172
  %354 = vst.msk [vmem:[%s353] sm:$0x20] %vm342, %v341
  %s355 = scalar_lea.vmem %s1, 203
  %356 = vst.msk [vmem:[%s355] sm:$0x40] %vm342, %v341
  %s357 = scalar_lea.vmem %s1, 234
  %358 = vst.msk [vmem:[%s357] sm:$0x80] %vm342, %v341
  %v359 = vld [vmem:[%s0] sm:$0xff]
  %360 = vrot.lane.b32.xlu0 %v359, 110
  %v361 = vpop.permute.xlu0 %360
  %vm362 = vcmask 7168
  %s363 = scalar_lea.vmem %s1, 18
  %364 = vst.msk [vmem:[%s363] sm:$0x1] %vm362, %v361
  %s365 = scalar_lea.vmem %s1, 49
  %366 = vst.msk [vmem:[%s365] sm:$0x2] %vm362, %v361
  %s367 = scalar_lea.vmem %s1, 80
  %368 = vst.msk [vmem:[%s367] sm:$0x4] %vm362, %v361
  %s369 = scalar_lea.vmem %s1, 111
  %370 = vst.msk [vmem:[%s369] sm:$0x8] %vm362, %v361
  %s371 = scalar_lea.vmem %s1, 142
  %372 = vst.msk [vmem:[%s371] sm:$0x10] %vm362, %v361
  %s373 = scalar_lea.vmem %s1, 173
  %374 = vst.msk [vmem:[%s373] sm:$0x20] %vm362, %v361
  %s375 = scalar_lea.vmem %s1, 204
  %376 = vst.msk [vmem:[%s375] sm:$0x40] %vm362, %v361
  %s377 = scalar_lea.vmem %s1, 235
  %378 = vst.msk [vmem:[%s377] sm:$0x80] %vm362, %v361
  %v379 = vld [vmem:[%s0] sm:$0xff]
  %380 = vrot.lane.b32.xlu0 %v379, 109
  %v381 = vpop.permute.xlu0 %380
  %vm382 = vcmask 7168
  %s383 = scalar_lea.vmem %s1, 19
  %384 = vst.msk [vmem:[%s383] sm:$0x1] %vm382, %v381
  %s385 = scalar_lea.vmem %s1, 50
  %386 = vst.msk [vmem:[%s385] sm:$0x2] %vm382, %v381
  %s387 = scalar_lea.vmem %s1, 81
  %388 = vst.msk [vmem:[%s387] sm:$0x4] %vm382, %v381
  %s389 = scalar_lea.vmem %s1, 112
  %390 = vst.msk [vmem:[%s389] sm:$0x8] %vm382, %v381
  %s391 = scalar_lea.vmem %s1, 143
  %392 = vst.msk [vmem:[%s391] sm:$0x10] %vm382, %v381
  %s393 = scalar_lea.vmem %s1, 174
  %394 = vst.msk [vmem:[%s393] sm:$0x20] %vm382, %v381
  %s395 = scalar_lea.vmem %s1, 205
  %396 = vst.msk [vmem:[%s395] sm:$0x40] %vm382, %v381
  %s397 = scalar_lea.vmem %s1, 236
  %398 = vst.msk [vmem:[%s397] sm:$0x80] %vm382, %v381
  %v399 = vld [vmem:[%s0] sm:$0xff]
  %400 = vrot.lane.b32.xlu0 %v399, 108
  %v401 = vpop.permute.xlu0 %400
  %vm402 = vcmask 7168
  %s403 = scalar_lea.vmem %s1, 20
  %404 = vst.msk [vmem:[%s403] sm:$0x1] %vm402, %v401
  %s405 = scalar_lea.vmem %s1, 51
  %406 = vst.msk [vmem:[%s405] sm:$0x2] %vm402, %v401
  %s407 = scalar_lea.vmem %s1, 82
  %408 = vst.msk [vmem:[%s407] sm:$0x4] %vm402, %v401
  %s409 = scalar_lea.vmem %s1, 113
  %410 = vst.msk [vmem:[%s409] sm:$0x8] %vm402, %v401
  %s411 = scalar_lea.vmem %s1, 144
  %412 = vst.msk [vmem:[%s411] sm:$0x10] %vm402, %v401
  %s413 = scalar_lea.vmem %s1, 175
  %414 = vst.msk [vmem:[%s413] sm:$0x20] %vm402, %v401
  %s415 = scalar_lea.vmem %s1, 206
  %416 = vst.msk [vmem:[%s415] sm:$0x40] %vm402, %v401
  %s417 = scalar_lea.vmem %s1, 237
  %418 = vst.msk [vmem:[%s417] sm:$0x80] %vm402, %v401
  %v419 = vld [vmem:[%s0] sm:$0xff]
  %420 = vrot.lane.b32.xlu0 %v419, 107
  %v421 = vpop.permute.xlu0 %420
  %vm422 = vcmask 7168
  %s423 = scalar_lea.vmem %s1, 21
  %424 = vst.msk [vmem:[%s423] sm:$0x1] %vm422, %v421
  %s425 = scalar_lea.vmem %s1, 52
  %426 = vst.msk [vmem:[%s425] sm:$0x2] %vm422, %v421
  %s427 = scalar_lea.vmem %s1, 83
  %428 = vst.msk [vmem:[%s427] sm:$0x4] %vm422, %v421
  %s429 = scalar_lea.vmem %s1, 114
  %430 = vst.msk [vmem:[%s429] sm:$0x8] %vm422, %v421
  %s431 = scalar_lea.vmem %s1, 145
  %432 = vst.msk [vmem:[%s431] sm:$0x10] %vm422, %v421
  %s433 = scalar_lea.vmem %s1, 176
  %434 = vst.msk [vmem:[%s433] sm:$0x20] %vm422, %v421
  %s435 = scalar_lea.vmem %s1, 207
  %436 = vst.msk [vmem:[%s435] sm:$0x40] %vm422, %v421
  %s437 = scalar_lea.vmem %s1, 238
  %438 = vst.msk [vmem:[%s437] sm:$0x80] %vm422, %v421
  %v439 = vld [vmem:[%s0] sm:$0xff]
  %440 = vrot.lane.b32.xlu0 %v439, 106
  %v441 = vpop.permute.xlu0 %440
  %vm442 = vcmask 7168
  %s443 = scalar_lea.vmem %s1, 22
  %444 = vst.msk [vmem:[%s443] sm:$0x1] %vm442, %v441
  %s445 = scalar_lea.vmem %s1, 53
  %446 = vst.msk [vmem:[%s445] sm:$0x2] %vm442, %v441
  %s447 = scalar_lea.vmem %s1, 84
  %448 = vst.msk [vmem:[%s447] sm:$0x4] %vm442, %v441
  %s449 = scalar_lea.vmem %s1, 115
  %450 = vst.msk [vmem:[%s449] sm:$0x8] %vm442, %v441
  %s451 = scalar_lea.vmem %s1, 146
  %452 = vst.msk [vmem:[%s451] sm:$0x10] %vm442, %v441
  %s453 = scalar_lea.vmem %s1, 177
  %454 = vst.msk [vmem:[%s453] sm:$0x20] %vm442, %v441
  %s455 = scalar_lea.vmem %s1, 208
  %456 = vst.msk [vmem:[%s455] sm:$0x40] %vm442, %v441
  %s457 = scalar_lea.vmem %s1, 239
  %458 = vst.msk [vmem:[%s457] sm:$0x80] %vm442, %v441
  %v459 = vld [vmem:[%s0] sm:$0xff]
  %460 = vrot.lane.b32.xlu0 %v459, 105
  %v461 = vpop.permute.xlu0 %460
  %vm462 = vcmask 7168
  %s463 = scalar_lea.vmem %s1, 23
  %464 = vst.msk [vmem:[%s463] sm:$0x1] %vm462, %v461
  %s465 = scalar_lea.vmem %s1, 54
  %466 = vst.msk [vmem:[%s465] sm:$0x2] %vm462, %v461
  %s467 = scalar_lea.vmem %s1, 85
  %468 = vst.msk [vmem:[%s467] sm:$0x4] %vm462, %v461
  %s469 = scalar_lea.vmem %s1, 116
  %470 = vst.msk [vmem:[%s469] sm:$0x8] %vm462, %v461
  %s471 = scalar_lea.vmem %s1, 147
  %472 = vst.msk [vmem:[%s471] sm:$0x10] %vm462, %v461
  %s473 = scalar_lea.vmem %s1, 178
  %474 = vst.msk [vmem:[%s473] sm:$0x20] %vm462, %v461
  %s475 = scalar_lea.vmem %s1, 209
  %476 = vst.msk [vmem:[%s475] sm:$0x40] %vm462, %v461
  %s477 = scalar_lea.vmem %s1, 240
  %478 = vst.msk [vmem:[%s477] sm:$0x80] %vm462, %v461
  %v479 = vld [vmem:[%s0] sm:$0xff]
  %480 = vrot.lane.b32.xlu0 %v479, 104
  %v481 = vpop.permute.xlu0 %480
  %vm482 = vcmask 7168
  %s483 = scalar_lea.vmem %s1, 24
  %484 = vst.msk [vmem:[%s483] sm:$0x1] %vm482, %v481
  %s485 = scalar_lea.vmem %s1, 55
  %486 = vst.msk [vmem:[%s485] sm:$0x2] %vm482, %v481
  %s487 = scalar_lea.vmem %s1, 86
  %488 = vst.msk [vmem:[%s487] sm:$0x4] %vm482, %v481
  %s489 = scalar_lea.vmem %s1, 117
  %490 = vst.msk [vmem:[%s489] sm:$0x8] %vm482, %v481
  %s491 = scalar_lea.vmem %s1, 148
  %492 = vst.msk [vmem:[%s491] sm:$0x10] %vm482, %v481
  %s493 = scalar_lea.vmem %s1, 179
  %494 = vst.msk [vmem:[%s493] sm:$0x20] %vm482, %v481
  %s495 = scalar_lea.vmem %s1, 210
  %496 = vst.msk [vmem:[%s495] sm:$0x40] %vm482, %v481
  %s497 = scalar_lea.vmem %s1, 241
  %498 = vst.msk [vmem:[%s497] sm:$0x80] %vm482, %v481
  %v499 = vld [vmem:[%s0] sm:$0xff]
  %500 = vrot.lane.b32.xlu0 %v499, 103
  %v501 = vpop.permute.xlu0 %500
  %vm502 = vcmask 7168
  %s503 = scalar_lea.vmem %s1, 25
  %504 = vst.msk [vmem:[%s503] sm:$0x1] %vm502, %v501
  %s505 = scalar_lea.vmem %s1, 56
  %506 = vst.msk [vmem:[%s505] sm:$0x2] %vm502, %v501
  %s507 = scalar_lea.vmem %s1, 87
  %508 = vst.msk [vmem:[%s507] sm:$0x4] %vm502, %v501
  %s509 = scalar_lea.vmem %s1, 118
  %510 = vst.msk [vmem:[%s509] sm:$0x8] %vm502, %v501
  %s511 = scalar_lea.vmem %s1, 149
  %512 = vst.msk [vmem:[%s511] sm:$0x10] %vm502, %v501
  %s513 = scalar_lea.vmem %s1, 180
  %514 = vst.msk [vmem:[%s513] sm:$0x20] %vm502, %v501
  %s515 = scalar_lea.vmem %s1, 211
  %516 = vst.msk [vmem:[%s515] sm:$0x40] %vm502, %v501
  %s517 = scalar_lea.vmem %s1, 242
  %518 = vst.msk [vmem:[%s517] sm:$0x80] %vm502, %v501
  %v519 = vld [vmem:[%s0] sm:$0xff]
  %520 = vrot.lane.b32.xlu0 %v519, 102
  %v521 = vpop.permute.xlu0 %520
  %vm522 = vcmask 7168
  %s523 = scalar_lea.vmem %s1, 26
  %524 = vst.msk [vmem:[%s523] sm:$0x1] %vm522, %v521
  %s525 = scalar_lea.vmem %s1, 57
  %526 = vst.msk [vmem:[%s525] sm:$0x2] %vm522, %v521
  %s527 = scalar_lea.vmem %s1, 88
  %528 = vst.msk [vmem:[%s527] sm:$0x4] %vm522, %v521
  %s529 = scalar_lea.vmem %s1, 119
  %530 = vst.msk [vmem:[%s529] sm:$0x8] %vm522, %v521
  %s531 = scalar_lea.vmem %s1, 150
  %532 = vst.msk [vmem:[%s531] sm:$0x10] %vm522, %v521
  %s533 = scalar_lea.vmem %s1, 181
  %534 = vst.msk [vmem:[%s533] sm:$0x20] %vm522, %v521
  %s535 = scalar_lea.vmem %s1, 212
  %536 = vst.msk [vmem:[%s535] sm:$0x40] %vm522, %v521
  %s537 = scalar_lea.vmem %s1, 243
  %538 = vst.msk [vmem:[%s537] sm:$0x80] %vm522, %v521
  %v539 = vld [vmem:[%s0] sm:$0xff]
  %540 = vrot.lane.b32.xlu0 %v539, 101
  %v541 = vpop.permute.xlu0 %540
  %vm542 = vcmask 7168
  %s543 = scalar_lea.vmem %s1, 27
  %544 = vst.msk [vmem:[%s543] sm:$0x1] %vm542, %v541
  %s545 = scalar_lea.vmem %s1, 58
  %546 = vst.msk [vmem:[%s545] sm:$0x2] %vm542, %v541
  %s547 = scalar_lea.vmem %s1, 89
  %548 = vst.msk [vmem:[%s547] sm:$0x4] %vm542, %v541
  %s549 = scalar_lea.vmem %s1, 120
  %550 = vst.msk [vmem:[%s549] sm:$0x8] %vm542, %v541
  %s551 = scalar_lea.vmem %s1, 151
  %552 = vst.msk [vmem:[%s551] sm:$0x10] %vm542, %v541
  %s553 = scalar_lea.vmem %s1, 182
  %554 = vst.msk [vmem:[%s553] sm:$0x20] %vm542, %v541
  %s555 = scalar_lea.vmem %s1, 213
  %556 = vst.msk [vmem:[%s555] sm:$0x40] %vm542, %v541
  %s557 = scalar_lea.vmem %s1, 244
  %558 = vst.msk [vmem:[%s557] sm:$0x80] %vm542, %v541
  %v559 = vld [vmem:[%s0] sm:$0xff]
  %560 = vrot.lane.b32.xlu0 %v559, 100
  %v561 = vpop.permute.xlu0 %560
  %vm562 = vcmask 7168
  %s563 = scalar_lea.vmem %s1, 28
  %564 = vst.msk [vmem:[%s563] sm:$0x1] %vm562, %v561
  %s565 = scalar_lea.vmem %s1, 59
  %566 = vst.msk [vmem:[%s565] sm:$0x2] %vm562, %v561
  %s567 = scalar_lea.vmem %s1, 90
  %568 = vst.msk [vmem:[%s567] sm:$0x4] %vm562, %v561
  %s569 = scalar_lea.vmem %s1, 121
  %570 = vst.msk [vmem:[%s569] sm:$0x8] %vm562, %v561
  %s571 = scalar_lea.vmem %s1, 152
  %572 = vst.msk [vmem:[%s571] sm:$0x10] %vm562, %v561
  %s573 = scalar_lea.vmem %s1, 183
  %574 = vst.msk [vmem:[%s573] sm:$0x20] %vm562, %v561
  %s575 = scalar_lea.vmem %s1, 214
  %576 = vst.msk [vmem:[%s575] sm:$0x40] %vm562, %v561
  %s577 = scalar_lea.vmem %s1, 245
  %578 = vst.msk [vmem:[%s577] sm:$0x80] %vm562, %v561
  %v579 = vld [vmem:[%s0] sm:$0xff]
  %580 = vrot.lane.b32.xlu0 %v579, 99
  %v581 = vpop.permute.xlu0 %580
  %vm582 = vcmask 7168
  %s583 = scalar_lea.vmem %s1, 29
  %584 = vst.msk [vmem:[%s583] sm:$0x1] %vm582, %v581
  %s585 = scalar_lea.vmem %s1, 60
  %586 = vst.msk [vmem:[%s585] sm:$0x2] %vm582, %v581
  %s587 = scalar_lea.vmem %s1, 91
  %588 = vst.msk [vmem:[%s587] sm:$0x4] %vm582, %v581
  %s589 = scalar_lea.vmem %s1, 122
  %590 = vst.msk [vmem:[%s589] sm:$0x8] %vm582, %v581
  %s591 = scalar_lea.vmem %s1, 153
  %592 = vst.msk [vmem:[%s591] sm:$0x10] %vm582, %v581
  %s593 = scalar_lea.vmem %s1, 184
  %594 = vst.msk [vmem:[%s593] sm:$0x20] %vm582, %v581
  %s595 = scalar_lea.vmem %s1, 215
  %596 = vst.msk [vmem:[%s595] sm:$0x40] %vm582, %v581
  %s597 = scalar_lea.vmem %s1, 246
  %598 = vst.msk [vmem:[%s597] sm:$0x80] %vm582, %v581
  %v599 = vld [vmem:[%s0] sm:$0xff]
  %600 = vrot.lane.b32.xlu0 %v599, 98
  %v601 = vpop.permute.xlu0 %600
  %vm602 = vcmask 7168
  %s603 = scalar_lea.vmem %s1, 30
  %604 = vst.msk [vmem:[%s603] sm:$0x1] %vm602, %v601
  %s605 = scalar_lea.vmem %s1, 61
  %606 = vst.msk [vmem:[%s605] sm:$0x2] %vm602, %v601
  %s607 = scalar_lea.vmem %s1, 92
  %608 = vst.msk [vmem:[%s607] sm:$0x4] %vm602, %v601
  %s609 = scalar_lea.vmem %s1, 123
  %610 = vst.msk [vmem:[%s609] sm:$0x8] %vm602, %v601
  %s611 = scalar_lea.vmem %s1, 154
  %612 = vst.msk [vmem:[%s611] sm:$0x10] %vm602, %v601
  %s613 = scalar_lea.vmem %s1, 185
  %614 = vst.msk [vmem:[%s613] sm:$0x20] %vm602, %v601
  %s615 = scalar_lea.vmem %s1, 216
  %616 = vst.msk [vmem:[%s615] sm:$0x40] %vm602, %v601
  %s617 = scalar_lea.vmem %s1, 247
  %618 = vst.msk [vmem:[%s617] sm:$0x80] %vm602, %v601
  %v619 = vld [vmem:[%s0] sm:$0xff]
  %620 = vrot.lane.b32.xlu0 %v619, 97
  %v621 = vpop.permute.xlu0 %620
  %vm622 = vcmask 7168
  %s623 = scalar_lea.vmem %s1, 31
  %624 = vst.msk [vmem:[%s623] sm:$0x1] %vm622, %v621
  %s625 = scalar_lea.vmem %s1, 62
  %626 = vst.msk [vmem:[%s625] sm:$0x2] %vm622, %v621
  %s627 = scalar_lea.vmem %s1, 93
  %628 = vst.msk [vmem:[%s627] sm:$0x4] %vm622, %v621
  %s629 = scalar_lea.vmem %s1, 124
  %630 = vst.msk [vmem:[%s629] sm:$0x8] %vm622, %v621
  %s631 = scalar_lea.vmem %s1, 155
  %632 = vst.msk [vmem:[%s631] sm:$0x10] %vm622, %v621
  %s633 = scalar_lea.vmem %s1, 186
  %634 = vst.msk [vmem:[%s633] sm:$0x20] %vm622, %v621
  %s635 = scalar_lea.vmem %s1, 217
  %636 = vst.msk [vmem:[%s635] sm:$0x40] %vm622, %v621
  %s637 = scalar_lea.vmem %s1, 248
  %638 = vst.msk [vmem:[%s637] sm:$0x80] %vm622, %v621

// kernel: tile.28
$region0: #{tile.28}
  #allocation0 [shape = 's32[1]{0}', space=sflag, size = 0x4, scoped, tag = 'scoped memory for tile.28']
  %s0 = inlined_call_operand.vmem [shape: f32[16], index: 0, kind: input, shape index: {}]
  %s1 = inlined_call_operand.vmem [shape: f32[8,16], index: 1, kind: output, shape index: {}]
  // Predicated region
  $region2: #{tile.28} parent=0 // pred_check
    _
  $region3: #{tile.28} parent=0 // pred_check_branch
    %3 = sbr.rel (0) target = $region5
  $region4: #{tile.28} parent=0 // pred_region
    _
  $region5: #{tile.28} parent=0 // pred_fallthru
    _
  %v4 = vld [vmem:[%s0] ss:$0 sm:$0xff]
  %5 = vst [vmem:[%s1] sm:$0xff] %v4

// kernel: tile.1
$region0: #{tile.1}
  %s0 = inlined_call_operand.vmem [shape: f32[8,16], index: 0, kind: input, shape index: {}]
  %s1 = inlined_call_operand.vmem [shape: f32[128,1], index: 1, kind: output, shape index: {}]
  %v2 = vld [vmem:[%s0] sm:$0xff]
  %vm3 = vcmask 7168
  %4 = vst.msk [vmem:[%s1] ss:$16 sm:$0x3] %vm3, %v2
  %5 = vst.msk [vmem:[%s1] ss:$16 sm:$0xc] %vm3, %v2
  %6 = vst.msk [vmem:[%s1] ss:$16 sm:$0x30] %vm3, %v2
  %7 = vst.msk [vmem:[%s1] ss:$16 sm:$0xc0] %vm3, %v2
  %v8 = vld [vmem:[%s0] sm:$0xff]
  %9 = vrot.lane.b32.xlu0 %v8, 127
  %v10 = vpop.permute.xlu0 %9
  %vm11 = vcmask 7168
  %s12 = scalar_lea.vmem %s1, 1
  %13 = vst.msk [vmem:[%s12] ss:$16 sm:$0x3] %vm11, %v10
  %s14 = scalar_lea.vmem %s1, 1
  %15 = vst.msk [vmem:[%s14] ss:$16 sm:$0xc] %vm11, %v10
  %s16 = scalar_lea.vmem %s1, 1
  %17 = vst.msk [vmem:[%s16] ss:$16 sm:$0x30] %vm11, %v10
  %s18 = scalar_lea.vmem %s1, 1
  %19 = vst.msk [vmem:[%s18] ss:$16 sm:$0xc0] %vm11, %v10
  %v20 = vld [vmem:[%s0] sm:$0xff]
  %21 = vrot.lane.b32.xlu0 %v20, 126
  %v22 = vpop.permute.xlu0 %21
  %vm23 = vcmask 7168
  %s24 = scalar_lea.vmem %s1, 2
  %25 = vst.msk [vmem:[%s24] ss:$16 sm:$0x3] %vm23, %v22
  %s26 = scalar_lea.vmem %s1, 2
  %27 = vst.msk [vmem:[%s26] ss:$16 sm:$0xc] %vm23, %v22
  %s28 = scalar_lea.vmem %s1, 2
  %29 = vst.msk [vmem:[%s28] ss:$16 sm:$0x30] %vm23, %v22
  %s30 = scalar_lea.vmem %s1, 2
  %31 = vst.msk [vmem:[%s30] ss:$16 sm:$0xc0] %vm23, %v22
  %v32 = vld [vmem:[%s0] sm:$0xff]
  %33 = vrot.lane.b32.xlu0 %v32, 125
  %v34 = vpop.permute.xlu0 %33
  %vm35 = vcmask 7168
  %s36 = scalar_lea.vmem %s1, 3
  %37 = vst.msk [vmem:[%s36] ss:$16 sm:$0x3] %vm35, %v34
  %s38 = scalar_lea.vmem %s1, 3
  %39 = vst.msk [vmem:[%s38] ss:$16 sm:$0xc] %vm35, %v34
  %s40 = scalar_lea.vmem %s1, 3
  %41 = vst.msk [vmem:[%s40] ss:$16 sm:$0x30] %vm35, %v34
  %s42 = scalar_lea.vmem %s1, 3
  %43 = vst.msk [vmem:[%s42] ss:$16 sm:$0xc0] %vm35, %v34
  %v44 = vld [vmem:[%s0] sm:$0xff]
  %45 = vrot.lane.b32.xlu0 %v44, 124
  %v46 = vpop.permute.xlu0 %45
  %vm47 = vcmask 7168
  %s48 = scalar_lea.vmem %s1, 4
  %49 = vst.msk [vmem:[%s48] ss:$16 sm:$0x3] %vm47, %v46
  %s50 = scalar_lea.vmem %s1, 4
  %51 = vst.msk [vmem:[%s50] ss:$16 sm:$0xc] %vm47, %v46
  %s52 = scalar_lea.vmem %s1, 4
  %53 = vst.msk [vmem:[%s52] ss:$16 sm:$0x30] %vm47, %v46
  %s54 = scalar_lea.vmem %s1, 4
  %55 = vst.msk [vmem:[%s54] ss:$16 sm:$0xc0] %vm47, %v46
  %v56 = vld [vmem:[%s0] sm:$0xff]
  %57 = vrot.lane.b32.xlu0 %v56, 123
  %v58 = vpop.permute.xlu0 %57
  %vm59 = vcmask 7168
  %s60 = scalar_lea.vmem %s1, 5
  %61 = vst.msk [vmem:[%s60] ss:$16 sm:$0x3] %vm59, %v58
  %s62 = scalar_lea.vmem %s1, 5
  %63 = vst.msk [vmem:[%s62] ss:$16 sm:$0xc] %vm59, %v58
  %s64 = scalar_lea.vmem %s1, 5
  %65 = vst.msk [vmem:[%s64] ss:$16 sm:$0x30] %vm59, %v58
  %s66 = scalar_lea.vmem %s1, 5
  %67 = vst.msk [vmem:[%s66] ss:$16 sm:$0xc0] %vm59, %v58
  %v68 = vld [vmem:[%s0] sm:$0xff]
  %69 = vrot.lane.b32.xlu0 %v68, 122
  %v70 = vpop.permute.xlu0 %69
  %vm71 = vcmask 7168
  %s72 = scalar_lea.vmem %s1, 6
  %73 = vst.msk [vmem:[%s72] ss:$16 sm:$0x3] %vm71, %v70
  %s74 = scalar_lea.vmem %s1, 6
  %75 = vst.msk [vmem:[%s74] ss:$16 sm:$0xc] %vm71, %v70
  %s76 = scalar_lea.vmem %s1, 6
  %77 = vst.msk [vmem:[%s76] ss:$16 sm:$0x30] %vm71, %v70
  %s78 = scalar_lea.vmem %s1, 6
  %79 = vst.msk [vmem:[%s78] ss:$16 sm:$0xc0] %vm71, %v70
  %v80 = vld [vmem:[%s0] sm:$0xff]
  %81 = vrot.lane.b32.xlu0 %v80, 121
  %v82 = vpop.permute.xlu0 %81
  %vm83 = vcmask 7168
  %s84 = scalar_lea.vmem %s1, 7
  %85 = vst.msk [vmem:[%s84] ss:$16 sm:$0x3] %vm83, %v82
  %s86 = scalar_lea.vmem %s1, 7
  %87 = vst.msk [vmem:[%s86] ss:$16 sm:$0xc] %vm83, %v82
  %s88 = scalar_lea.vmem %s1, 7
  %89 = vst.msk [vmem:[%s88] ss:$16 sm:$0x30] %vm83, %v82
  %s90 = scalar_lea.vmem %s1, 7
  %91 = vst.msk [vmem:[%s90] ss:$16 sm:$0xc0] %vm83, %v82
  %v92 = vld [vmem:[%s0] sm:$0xff]
  %93 = vrot.lane.b32.xlu0 %v92, 120
  %v94 = vpop.permute.xlu0 %93
  %vm95 = vcmask 7168
  %s96 = scalar_lea.vmem %s1, 8
  %97 = vst.msk [vmem:[%s96] ss:$16 sm:$0x3] %vm95, %v94
  %s98 = scalar_lea.vmem %s1, 8
  %99 = vst.msk [vmem:[%s98] ss:$16 sm:$0xc] %vm95, %v94
  %s100 = scalar_lea.vmem %s1, 8
  %101 = vst.msk [vmem:[%s100] ss:$16 sm:$0x30] %vm95, %v94
  %s102 = scalar_lea.vmem %s1, 8
  %103 = vst.msk [vmem:[%s102] ss:$16 sm:$0xc0] %vm95, %v94
  %v104 = vld [vmem:[%s0] sm:$0xff]
  %105 = vrot.lane.b32.xlu0 %v104, 119
  %v106 = vpop.permute.xlu0 %105
  %vm107 = vcmask 7168
  %s108 = scalar_lea.vmem %s1, 9
  %109 = vst.msk [vmem:[%s108] ss:$16 sm:$0x3] %vm107, %v106
  %s110 = scalar_lea.vmem %s1, 9
  %111 = vst.msk [vmem:[%s110] ss:$16 sm:$0xc] %vm107, %v106
  %s112 = scalar_lea.vmem %s1, 9
  %113 = vst.msk [vmem:[%s112] ss:$16 sm:$0x30] %vm107, %v106
  %s114 = scalar_lea.vmem %s1, 9
  %115 = vst.msk [vmem:[%s114] ss:$16 sm:$0xc0] %vm107, %v106
  %v116 = vld [vmem:[%s0] sm:$0xff]
  %117 = vrot.lane.b32.xlu0 %v116, 118
  %v118 = vpop.permute.xlu0 %117
  %vm119 = vcmask 7168
  %s120 = scalar_lea.vmem %s1, 10
  %121 = vst.msk [vmem:[%s120] ss:$16 sm:$0x3] %vm119, %v118
  %s122 = scalar_lea.vmem %s1, 10
  %123 = vst.msk [vmem:[%s122] ss:$16 sm:$0xc] %vm119, %v118
  %s124 = scalar_lea.vmem %s1, 10
  %125 = vst.msk [vmem:[%s124] ss:$16 sm:$0x30] %vm119, %v118
  %s126 = scalar_lea.vmem %s1, 10
  %127 = vst.msk [vmem:[%s126] ss:$16 sm:$0xc0] %vm119, %v118
  %v128 = vld [vmem:[%s0] sm:$0xff]
  %129 = vrot.lane.b32.xlu0 %v128, 117
  %v130 = vpop.permute.xlu0 %129
  %vm131 = vcmask 7168
  %s132 = scalar_lea.vmem %s1, 11
  %133 = vst.msk [vmem:[%s132] ss:$16 sm:$0x3] %vm131, %v130
  %s134 = scalar_lea.vmem %s1, 11
  %135 = vst.msk [vmem:[%s134] ss:$16 sm:$0xc] %vm131, %v130
  %s136 = scalar_lea.vmem %s1, 11
  %137 = vst.msk [vmem:[%s136] ss:$16 sm:$0x30] %vm131, %v130
  %s138 = scalar_lea.vmem %s1, 11
  %139 = vst.msk [vmem:[%s138] ss:$16 sm:$0xc0] %vm131, %v130
  %v140 = vld [vmem:[%s0] sm:$0xff]
  %141 = vrot.lane.b32.xlu0 %v140, 116
  %v142 = vpop.permute.xlu0 %141
  %vm143 = vcmask 7168
  %s144 = scalar_lea.vmem %s1, 12
  %145 = vst.msk [vmem:[%s144] ss:$16 sm:$0x3] %vm143, %v142
  %s146 = scalar_lea.vmem %s1, 12
  %147 = vst.msk [vmem:[%s146] ss:$16 sm:$0xc] %vm143, %v142
  %s148 = scalar_lea.vmem %s1, 12
  %149 = vst.msk [vmem:[%s148] ss:$16 sm:$0x30] %vm143, %v142
  %s150 = scalar_lea.vmem %s1, 12
  %151 = vst.msk [vmem:[%s150] ss:$16 sm:$0xc0] %vm143, %v142
  %v152 = vld [vmem:[%s0] sm:$0xff]
  %153 = vrot.lane.b32.xlu0 %v152, 115
  %v154 = vpop.permute.xlu0 %153
  %vm155 = vcmask 7168
  %s156 = scalar_lea.vmem %s1, 13
  %157 = vst.msk [vmem:[%s156] ss:$16 sm:$0x3] %vm155, %v154
  %s158 = scalar_lea.vmem %s1, 13
  %159 = vst.msk [vmem:[%s158] ss:$16 sm:$0xc] %vm155, %v154
  %s160 = scalar_lea.vmem %s1, 13
  %161 = vst.msk [vmem:[%s160] ss:$16 sm:$0x30] %vm155, %v154
  %s162 = scalar_lea.vmem %s1, 13
  %163 = vst.msk [vmem:[%s162] ss:$16 sm:$0xc0] %vm155, %v154
  %v164 = vld [vmem:[%s0] sm:$0xff]
  %165 = vrot.lane.b32.xlu0 %v164, 114
  %v166 = vpop.permute.xlu0 %165
  %vm167 = vcmask 7168
  %s168 = scalar_lea.vmem %s1, 14
  %169 = vst.msk [vmem:[%s168] ss:$16 sm:$0x3] %vm167, %v166
  %s170 = scalar_lea.vmem %s1, 14
  %171 = vst.msk [vmem:[%s170] ss:$16 sm:$0xc] %vm167, %v166
  %s172 = scalar_lea.vmem %s1, 14
  %173 = vst.msk [vmem:[%s172] ss:$16 sm:$0x30] %vm167, %v166
  %s174 = scalar_lea.vmem %s1, 14
  %175 = vst.msk [vmem:[%s174] ss:$16 sm:$0xc0] %vm167, %v166
  %v176 = vld [vmem:[%s0] sm:$0xff]
  %177 = vrot.lane.b32.xlu0 %v176, 113
  %v178 = vpop.permute.xlu0 %177
  %vm179 = vcmask 7168
  %s180 = scalar_lea.vmem %s1, 15
  %181 = vst.msk [vmem:[%s180] ss:$16 sm:$0x3] %vm179, %v178
  %s182 = scalar_lea.vmem %s1, 15
  %183 = vst.msk [vmem:[%s182] ss:$16 sm:$0xc] %vm179, %v178
  %s184 = scalar_lea.vmem %s1, 15
  %185 = vst.msk [vmem:[%s184] ss:$16 sm:$0x30] %vm179, %v178
  %s186 = scalar_lea.vmem %s1, 15
  %187 = vst.msk [vmem:[%s186] ss:$16 sm:$0xc0] %vm179, %v178

// kernel: spectral_block_apply.1
$region0: #{spectral_block_apply.1}
  #allocation0 [shape = 'u32[]', space=smem, size = 0x4, offset = 0x4, fixed_abs, tag = 'smem constant byte address 0x4 - core index']
  #allocation1 [shape = 'u32[144,128]{1,0:T(1,128)}', space=vmem, size = 0x12000, scoped, tag = 'internal scratch']
  %s0 = inlined_call_operand.vmem [shape: f32[128,384], index: 0, kind: input, shape index: {}]
  %s1 = inlined_call_operand.vmem [shape: f32[256,128], index: 1, kind: input, shape index: {}]
  %s2 = inlined_call_operand.vmem [shape: f32[256,1], index: 2, kind: input, shape index: {}]
  %s3 = inlined_call_operand.vmem [shape: f32[384,256], index: 3, kind: input, shape index: {}]
  %s4 = inlined_call_operand.vmem [shape: f32[128,1], index: 4, kind: input, shape index: {}]
  %s5 = inlined_call_operand.vmem [shape: f32[256,128], index: 5, kind: input, shape index: {}]
  %s6 = inlined_call_operand.vmem [shape: f32[128,1], index: 6, kind: input, shape index: {}]
  %s7 = inlined_call_operand.vmem [shape: f32[128,128], index: 7, kind: input, shape index: {}]
  %s8 = inlined_call_operand.vmem [shape: f32[128,1], index: 8, kind: input, shape index: {}]
  %s9 = inlined_call_operand.vmem [shape: f32[4], index: 9, kind: input, shape index: {}]
  %s10 = inlined_call_operand.vmem [shape: f32[8,60,384], index: 10, kind: output, shape index: {}]
  %s11 = sld [smem:[#allocation0]]
  $region149: #{spectral_block_apply.1} parent=0
    _
  %s13 = ssub.s32 1, %s11
  %s14 = scalar_select 0, %s13, %s11
  $region1: #{spectral_block_apply.1} parent=0
    #allocation2 [shape = 'u8[131072]{0}', space=vmem, size = 0x20000, scoped, tag = 'input window, operand 0']
    #allocation3 [shape = 'u8[512]{0}', space=smem, size = 0x200, scoped, tag = 'input window, operand 9, single buffered']
    #allocation4 [shape = 's32[2]{0}', space=sflag, size = 0x8, scoped, tag = 'scoped memory for spectral_block_apply.1']
    #allocation5 [shape = 'u8[524288]{0}', space=vmem, size = 0x80000, scoped, tag = 'output window, operand 0']
    %15 = vsyncpa [#allocation4], 0
    loop: start=0, step=1, limit=5
    $region2: #{spectral_block_apply.1} parent=1 // loop_pre_header
      _
    $region3: #{spectral_block_apply.1} parent=1 // loop_header
      %s17 = sphi 0, %s21
      %p18 = scmp.ge.s32.totalorder %s17, 5
      %s27 = sphi 0, %s29
      %s30 = sphi 0, %s27
      %s31 = sphi 0, %s30
      %s47 = sphi 0, %s31
      %s51 = sphi 0, %s51
      %s53 = sphi 0, %s51
      %s54 = sphi 0, %s53
      %s68 = sphi 0, %s54
      %s72 = sphi 0, %s72
      %s74 = sphi 0, %s72
      %s75 = sphi 0, %s74
      %s89 = sphi 0, %s75
      %s93 = sphi 0, %s93
      %s95 = sphi 0, %s93
      %s96 = sphi 0, %s95
      %s110 = sphi 0, %s96
      %s114 = sphi 0, %s114
      %s116 = sphi 0, %s114
      %s117 = sphi 0, %s116
      %s131 = sphi 0, %s117
      %s135 = sphi 0, %s135
      %s137 = sphi 0, %s135
      %s138 = sphi 0, %s137
      %s152 = sphi 0, %s138
      %s156 = sphi 0, %s156
      %s158 = sphi 0, %s156
      %s159 = sphi 0, %s158
      %s173 = sphi 0, %s159
      %s177 = sphi 0, %s177
      %s179 = sphi 0, %s177
      %s180 = sphi 0, %s179
      %s194 = sphi 0, %s180
      %s198 = sphi 0, %s198
      %s200 = sphi 0, %s198
      %s201 = sphi 0, %s200
      %s215 = sphi 0, %s201
      %s219 = sphi 0, %s219
      %s221 = sphi 0, %s219
      %s222 = sphi 0, %s221
      %s236 = sphi 0, %s222
      %s242 = sphi 0, %s244
      %s245 = sphi 0, %s242
      %s246 = sphi 0, %s245
      %s262 = sphi 0, %s246
    $region4: #{spectral_block_apply.1} parent=1 // loop_header_branch
      %20 = sbr.rel (%p18) target = $region8
    $region5: #{spectral_block_apply.1} parent=1 // loop_body
      %s22 = ssub.s32 %s17, 1
      %s23 = ssub.s32 %s17, 2
      %s24 = sadd.s32 %s17, 1
      %s25 = ssub.s32 %s17, %s24
      %p26 = scmp.eq.s32.totalorder %s25, 0
      %s28 = sadd.s32 %s27, 1
      %s29 = scalar_select %p26, %s27, %s28
      %p32 = pneg %p26
      %p33 = scmp.eq.s32.totalorder %s17, 2
      %p34 = por %p32, %p33
      %p35 = scmp.ne.s32.totalorder %s27, %s30
      %p36 = scmp.eq.s32.totalorder %s17, 0
      %p37 = por %p35, %p36
      %p38 = scmp.ne.s32.totalorder %s27, %s30
      %p39 = scmp.eq.s32.totalorder %s22, 2
      %p40 = por %p38, %p39
      %p41 = scmp.ne.s32.totalorder %s30, %s31
      %p42 = scmp.eq.s32.totalorder %s22, 0
      %p43 = por %p41, %p42
      %p44 = scmp.ne.s32.totalorder %s30, %s31
      %p45 = scmp.eq.s32.totalorder %s23, 2
      %p46 = por %p44, %p45
      %p48 = scmp.ne.s32.totalorder %s31, %s47
      %p49 = scmp.eq.s32.totalorder %s23, 0
      %p50 = por %p48, %p49
      %s52 = sadd.s32 %s51, 1
      %p55 = scmp.eq.s32.totalorder %s17, 2
      %p56 = scmp.ne.s32.totalorder %s51, %s53
      %p57 = scmp.eq.s32.totalorder %s17, 0
      %p58 = por %p56, %p57
      %p59 = scmp.ne.s32.totalorder %s51, %s53
      %p60 = scmp.eq.s32.totalorder %s22, 2
      %p61 = por %p59, %p60
      %p62 = scmp.ne.s32.totalorder %s53, %s54
      %p63 = scmp.eq.s32.totalorder %s22, 0
      %p64 = por %p62, %p63
      %p65 = scmp.ne.s32.totalorder %s53, %s54
      %p66 = scmp.eq.s32.totalorder %s23, 2
      %p67 = por %p65, %p66
      %p69 = scmp.ne.s32.totalorder %s54, %s68
      %p70 = scmp.eq.s32.totalorder %s23, 0
      %p71 = por %p69, %p70
      %s73 = sadd.s32 %s72, 1
      %p76 = scmp.eq.s32.totalorder %s17, 2
      %p77 = scmp.ne.s32.totalorder %s72, %s74
      %p78 = scmp.eq.s32.totalorder %s17, 0
      %p79 = por %p77, %p78
      %p80 = scmp.ne.s32.totalorder %s72, %s74
      %p81 = scmp.eq.s32.totalorder %s22, 2
      %p82 = por %p80, %p81
      %p83 = scmp.ne.s32.totalorder %s74, %s75
      %p84 = scmp.eq.s32.totalorder %s22, 0
      %p85 = por %p83, %p84
      %p86 = scmp.ne.s32.totalorder %s74, %s75
      %p87 = scmp.eq.s32.totalorder %s23, 2
      %p88 = por %p86, %p87
      %p90 = scmp.ne.s32.totalorder %s75, %s89
      %p91 = scmp.eq.s32.totalorder %s23, 0
      %p92 = por %p90, %p91
      %s94 = sadd.s32 %s93, 1
      %p97 = scmp.eq.s32.totalorder %s17, 2
      %p98 = scmp.ne.s32.totalorder %s93, %s95
      %p99 = scmp.eq.s32.totalorder %s17, 0
      %p100 = por %p98, %p99
      %p101 = scmp.ne.s32.totalorder %s93, %s95
      %p102 = scmp.eq.s32.totalorder %s22, 2
      %p103 = por %p101, %p102
      %p104 = scmp.ne.s32.totalorder %s95, %s96
      %p105 = scmp.eq.s32.totalorder %s22, 0
      %p106 = por %p104, %p105
      %p107 = scmp.ne.s32.totalorder %s95, %s96
      %p108 = scmp.eq.s32.totalorder %s23, 2
      %p109 = por %p107, %p108
      %p111 = scmp.ne.s32.totalorder %s96, %s110
      %p112 = scmp.eq.s32.totalorder %s23, 0
      %p113 = por %p111, %p112
      %s115 = sadd.s32 %s114, 1
      %p118 = scmp.eq.s32.totalorder %s17, 2
      %p119 = scmp.ne.s32.totalorder %s114, %s116
      %p120 = scmp.eq.s32.totalorder %s17, 0
      %p121 = por %p119, %p120
      %p122 = scmp.ne.s32.totalorder %s114, %s116
      %p123 = scmp.eq.s32.totalorder %s22, 2
      %p124 = por %p122, %p123
      %p125 = scmp.ne.s32.totalorder %s116, %s117
      %p126 = scmp.eq.s32.totalorder %s22, 0
      %p127 = por %p125, %p126
      %p128 = scmp.ne.s32.totalorder %s116, %s117
      %p129 = scmp.eq.s32.totalorder %s23, 2
      %p130 = por %p128, %p129
      %p132 = scmp.ne.s32.totalorder %s117, %s131
      %p133 = scmp.eq.s32.totalorder %s23, 0
      %p134 = por %p132, %p133
      %s136 = sadd.s32 %s135, 1
      %p139 = scmp.eq.s32.totalorder %s17, 2
      %p140 = scmp.ne.s32.totalorder %s135, %s137
      %p141 = scmp.eq.s32.totalorder %s17, 0
      %p142 = por %p140, %p141
      %p143 = scmp.ne.s32.totalorder %s135, %s137
      %p144 = scmp.eq.s32.totalorder %s22, 2
      %p145 = por %p143, %p144
      %p146 = scmp.ne.s32.totalorder %s137, %s138
      %p147 = scmp.eq.s32.totalorder %s22, 0
      %p148 = por %p146, %p147
      %p149 = scmp.ne.s32.totalorder %s137, %s138
      %p150 = scmp.eq.s32.totalorder %s23, 2
      %p151 = por %p149, %p150
      %p153 = scmp.ne.s32.totalorder %s138, %s152
      %p154 = scmp.eq.s32.totalorder %s23, 0
      %p155 = por %p153, %p154
      %s157 = sadd.s32 %s156, 1
      %p160 = scmp.eq.s32.totalorder %s17, 2
      %p161 = scmp.ne.s32.totalorder %s156, %s158
      %p162 = scmp.eq.s32.totalorder %s17, 0
      %p163 = por %p161, %p162
      %p164 = scmp.ne.s32.totalorder %s156, %s158
      %p165 = scmp.eq.s32.totalorder %s22, 2
      %p166 = por %p164, %p165
      %p167 = scmp.ne.s32.totalorder %s158, %s159
      %p168 = scmp.eq.s32.totalorder %s22, 0
      %p169 = por %p167, %p168
      %p170 = scmp.ne.s32.totalorder %s158, %s159
      %p171 = scmp.eq.s32.totalorder %s23, 2
      %p172 = por %p170, %p171
      %p174 = scmp.ne.s32.totalorder %s159, %s173
      %p175 = scmp.eq.s32.totalorder %s23, 0
      %p176 = por %p174, %p175
      %s178 = sadd.s32 %s177, 1
      %p181 = scmp.eq.s32.totalorder %s17, 2
      %p182 = scmp.ne.s32.totalorder %s177, %s179
      %p183 = scmp.eq.s32.totalorder %s17, 0
      %p184 = por %p182, %p183
      %p185 = scmp.ne.s32.totalorder %s177, %s179
      %p186 = scmp.eq.s32.totalorder %s22, 2
      %p187 = por %p185, %p186
      %p188 = scmp.ne.s32.totalorder %s179, %s180
      %p189 = scmp.eq.s32.totalorder %s22, 0
      %p190 = por %p188, %p189
      %p191 = scmp.ne.s32.totalorder %s179, %s180
      %p192 = scmp.eq.s32.totalorder %s23, 2
      %p193 = por %p191, %p192
      %p195 = scmp.ne.s32.totalorder %s180, %s194
      %p196 = scmp.eq.s32.totalorder %s23, 0
      %p197 = por %p195, %p196
      %s199 = sadd.s32 %s198, 1
      %p202 = scmp.eq.s32.totalorder %s17, 2
      %p203 = scmp.ne.s32.totalorder %s198, %s200
      %p204 = scmp.eq.s32.totalorder %s17, 0
      %p205 = por %p203, %p204
      %p206 = scmp.ne.s32.totalorder %s198, %s200
      %p207 = scmp.eq.s32.totalorder %s22, 2
      %p208 = por %p206, %p207
      %p209 = scmp.ne.s32.totalorder %s200, %s201
      %p210 = scmp.eq.s32.totalorder %s22, 0
      %p211 = por %p209, %p210
      %p212 = scmp.ne.s32.totalorder %s200, %s201
      %p213 = scmp.eq.s32.totalorder %s23, 2
      %p214 = por %p212, %p213
      %p216 = scmp.ne.s32.totalorder %s201, %s215
      %p217 = scmp.eq.s32.totalorder %s23, 0
      %p218 = por %p216, %p217
      %s220 = sadd.s32 %s219, 1
      %p223 = scmp.eq.s32.totalorder %s17, 2
      %p224 = scmp.ne.s32.totalorder %s219, %s221
      %p225 = scmp.eq.s32.totalorder %s17, 0
      %p226 = por %p224, %p225
      %p227 = scmp.ne.s32.totalorder %s219, %s221
      %p228 = scmp.eq.s32.totalorder %s22, 2
      %p229 = por %p227, %p228
      %p230 = scmp.ne.s32.totalorder %s221, %s222
      %p231 = scmp.eq.s32.totalorder %s22, 0
      %p232 = por %p230, %p231
      %p233 = scmp.ne.s32.totalorder %s221, %s222
      %p234 = scmp.eq.s32.totalorder %s23, 2
      %p235 = por %p233, %p234
      %p237 = scmp.ne.s32.totalorder %s222, %s236
      %p238 = scmp.eq.s32.totalorder %s23, 0
      %p239 = por %p237, %p238
      %s240 = ssub.s32 %s17, %s24
      %p241 = scmp.eq.s32.totalorder %s240, 0
      %s243 = sadd.s32 %s242, 1
      %s244 = scalar_select %p241, %s242, %s243
      %p247 = pneg %p241
      %p248 = scmp.eq.s32.totalorder %s17, 2
      %p249 = por %p247, %p248
      %p250 = scmp.ne.s32.totalorder %s242, %s245
      %p251 = scmp.eq.s32.totalorder %s17, 0
      %p252 = por %p250, %p251
      %p253 = scmp.ne.s32.totalorder %s242, %s245
      %p254 = scmp.eq.s32.totalorder %s22, 2
      %p255 = por %p253, %p254
      %p256 = scmp.ne.s32.totalorder %s245, %s246
      %p257 = scmp.eq.s32.totalorder %s22, 0
      %p258 = por %p256, %p257
      %p259 = scmp.ne.s32.totalorder %s245, %s246
      %p260 = scmp.eq.s32.totalorder %s23, 2
      %p261 = por %p259, %p260
      %p263 = scmp.ne.s32.totalorder %s246, %s262
      %p264 = scmp.eq.s32.totalorder %s23, 0
      %p265 = por %p263, %p264
      %p266 = scmp.le.s32.totalorder 1, %s17
      %p267 = scmp.lt.s32.totalorder %s17, 4
      %p268 = pnand %p266, %p267
      %p269 = pneg %p268
      // Predicated region
      $region9: #{spectral_block_apply.1} parent=5 // pred_check
        _
      $region10: #{spectral_block_apply.1} parent=5 // pred_check_branch
        %271 = sbr.rel (%p268) target = $region12
      $region11: #{spectral_block_apply.1} parent=5 // pred_region
        %s272 = ssub.s32 %s17, 1
        // Predicated region
        $region13: #{spectral_block_apply.1} parent=11 // pred_check
          %p273 = pneg %p64
        $region14: #{spectral_block_apply.1} parent=11 // pred_check_branch
          %275 = sbr.rel (%p273) target = $region16
        $region15: #{spectral_block_apply.1} parent=11 // pred_region
          _
        $region16: #{spectral_block_apply.1} parent=11 // pred_fallthru
          _
        // Predicated region
        $region17: #{spectral_block_apply.1} parent=11 // pred_check
          %p276 = pneg %p85
        $region18: #{spectral_block_apply.1} parent=11 // pred_check_branch
          %278 = sbr.rel (%p276) target = $region20
        $region19: #{spectral_block_apply.1} parent=11 // pred_region
          _
        $region20: #{spectral_block_apply.1} parent=11 // pred_fallthru
          _
        // Predicated region
        $region21: #{spectral_block_apply.1} parent=11 // pred_check
          %p279 = pneg %p106
        $region22: #{spectral_block_apply.1} parent=11 // pred_check_branch
          %281 = sbr.rel (%p279) target = $region24
        $region23: #{spectral_block_apply.1} parent=11 // pred_region
          _
        $region24: #{spectral_block_apply.1} parent=11 // pred_fallthru
          _
        // Predicated region
        $region25: #{spectral_block_apply.1} parent=11 // pred_check
          %p282 = pneg %p127
        $region26: #{spectral_block_apply.1} parent=11 // pred_check_branch
          %284 = sbr.rel (%p282) target = $region28
        $region27: #{spectral_block_apply.1} parent=11 // pred_region
          _
        $region28: #{spectral_block_apply.1} parent=11 // pred_fallthru
          _
        // Predicated region
        $region29: #{spectral_block_apply.1} parent=11 // pred_check
          %p285 = pneg %p148
        $region30: #{spectral_block_apply.1} parent=11 // pred_check_branch
          %287 = sbr.rel (%p285) target = $region32
        $region31: #{spectral_block_apply.1} parent=11 // pred_region
          _
        $region32: #{spectral_block_apply.1} parent=11 // pred_fallthru
          _
        // Predicated region
        $region33: #{spectral_block_apply.1} parent=11 // pred_check
          %p288 = pneg %p169
        $region34: #{spectral_block_apply.1} parent=11 // pred_check_branch
          %290 = sbr.rel (%p288) target = $region36
        $region35: #{spectral_block_apply.1} parent=11 // pred_region
          _
        $region36: #{spectral_block_apply.1} parent=11 // pred_fallthru
          _
        // Predicated region
        $region37: #{spectral_block_apply.1} parent=11 // pred_check
          %p291 = pneg %p190
        $region38: #{spectral_block_apply.1} parent=11 // pred_check_branch
          %293 = sbr.rel (%p291) target = $region40
        $region39: #{spectral_block_apply.1} parent=11 // pred_region
          _
        $region40: #{spectral_block_apply.1} parent=11 // pred_fallthru
          _
        // Predicated region
        $region41: #{spectral_block_apply.1} parent=11 // pred_check
          %p294 = pneg %p211
        $region42: #{spectral_block_apply.1} parent=11 // pred_check_branch
          %296 = sbr.rel (%p294) target = $region44
        $region43: #{spectral_block_apply.1} parent=11 // pred_region
          _
        $region44: #{spectral_block_apply.1} parent=11 // pred_fallthru
          _
        // Predicated region
        $region45: #{spectral_block_apply.1} parent=11 // pred_check
          %p297 = pneg %p232
        $region46: #{spectral_block_apply.1} parent=11 // pred_check_branch
          %299 = sbr.rel (%p297) target = $region48
        $region47: #{spectral_block_apply.1} parent=11 // pred_region
          %s301 = ssub.s32 16, 16
          %302 = vsyncadd [#allocation4], %s301
          %s304 = sshll.u32 %s9, 4
          %s305 = int_to_ptr.vmem [resolvable:$true] %s304
          %307 = dma.vmem_to_smem %s305, 16, [#allocation3], [#allocation4]
        $region48: #{spectral_block_apply.1} parent=11 // pred_fallthru
          _
      $region12: #{spectral_block_apply.1} parent=5 // pred_fallthru
        _
      %p308 = scmp.lt.s32.totalorder %s17, 3
      // Predicated region
      $region49: #{spectral_block_apply.1} parent=5 // pred_check
        %p309 = pneg %p308
      $region50: #{spectral_block_apply.1} parent=5 // pred_check_branch
        %311 = sbr.rel (%p309) target = $region52
      $region51: #{spectral_block_apply.1} parent=5 // pred_region
        // Predicated region
        $region53: #{spectral_block_apply.1} parent=51 // pred_check
          %p312 = pneg %p37
        $region54: #{spectral_block_apply.1} parent=51 // pred_check_branch
          %314 = sbr.rel (%p312) target = $region56
        $region55: #{spectral_block_apply.1} parent=51 // pred_region
          %s315 = sand.u32 %s27, 1
          %s316 = sand.u32 %s27, 1
          %s317 = smul.addr %s316, 128
          %s318 = scalar_lea.vmem [#allocation2], %s317
          %s319 = smul.addr %s17, 8
          %s320 = scalar_lea.vmem %s0, %s319
          // Predicated region
          $region57: #{spectral_block_apply.1} parent=55 // pred_check
            _
          $region58: #{spectral_block_apply.1} parent=55 // pred_check_branch
            %322 = sbr.rel (0) target = $region60
          $region59: #{spectral_block_apply.1} parent=55 // pred_region
            // Predicated region
            $region61: #{spectral_block_apply.1} parent=59 // pred_check
              _
            $region62: #{spectral_block_apply.1} parent=59 // pred_check_branch
              %324 = sbr.rel (0) target = $region64
            $region63: #{spectral_block_apply.1} parent=59 // pred_region
              // Predicated region
              $region76: #{spectral_block_apply.1} parent=63 // pred_check
                _
              $region77: #{spectral_block_apply.1} parent=63 // pred_check_branch
                %369 = sbr.rel (0) target = $region79
              $region78: #{spectral_block_apply.1} parent=63 // pred_region
                loop: start=0, step=1, limit=1
                $region80: #{spectral_block_apply.1} parent=78 // loop_pre_header
                  _
                $region81: #{spectral_block_apply.1} parent=78 // loop_header
                  %s371 = sphi 0, %s375
                  %p372 = scmp.ge.s32.totalorder %s371, 1
                  %s376 = sphi %s320, %s320
                  %s377 = sphi %s318, %s318
                $region82: #{spectral_block_apply.1} parent=78 // loop_header_branch
                  %374 = sbr.rel (%p372) target = $region86
                $region83: #{spectral_block_apply.1} parent=78 // loop_body
                  %v378 = vld [vmem:[%s376] sm:$0xff]
                  %379 = vst [vmem:[%s377] sm:$0xff] %v378
                  %v380 = vld [vmem:[%s376 + $0x18] sm:$0xff]
                  %381 = vst [vmem:[%s377 + $0x8] sm:$0xff] %v380
                  %v382 = vld [vmem:[%s376 + $0x30] sm:$0xff]
                  %383 = vst [vmem:[%s377 + $0x10] sm:$0xff] %v382
                  %v384 = vld [vmem:[%s376 + $0x48] sm:$0xff]
                  %385 = vst [vmem:[%s377 + $0x18] sm:$0xff] %v384
                  %v386 = vld [vmem:[%s376 + $0x60] sm:$0xff]
                  %387 = vst [vmem:[%s377 + $0x20] sm:$0xff] %v386
                  %v388 = vld [vmem:[%s376 + $0x78] sm:$0xff]
                  %389 = vst [vmem:[%s377 + $0x28] sm:$0xff] %v388
                  %v390 = vld [vmem:[%s376 + $0x90] sm:$0xff]
                  %391 = vst [vmem:[%s377 + $0x30] sm:$0xff] %v390
                  %v392 = vld [vmem:[%s376 + $0xa8] sm:$0xff]
                  %393 = vst [vmem:[%s377 + $0x38] sm:$0xff] %v392
                  %v394 = vld [vmem:[%s376 + $0xc0] sm:$0xff]
                  %395 = vst [vmem:[%s377 + $0x40] sm:$0xff] %v394
                  %v396 = vld [vmem:[%s376 + $0xd8] sm:$0xff]
                  %397 = vst [vmem:[%s377 + $0x48] sm:$0xff] %v396
                  %v398 = vld [vmem:[%s376 + $0xf0] sm:$0xff]
                  %399 = vst [vmem:[%s377 + $0x50] sm:$0xff] %v398
                  %v400 = vld [vmem:[%s376 + $0x108] sm:$0xff]
                  %401 = vst [vmem:[%s377 + $0x58] sm:$0xff] %v400
                  %v402 = vld [vmem:[%s376 + $0x120] sm:$0xff]
                  %403 = vst [vmem:[%s377 + $0x60] sm:$0xff] %v402
                  %v404 = vld [vmem:[%s376 + $0x138] sm:$0xff]
                  %405 = vst [vmem:[%s377 + $0x68] sm:$0xff] %v404
                  %v406 = vld [vmem:[%s376 + $0x150] sm:$0xff]
                  %407 = vst [vmem:[%s377 + $0x70] sm:$0xff] %v406
                  %v408 = vld [vmem:[%s376 + $0x168] sm:$0xff]
                  %409 = vst [vmem:[%s377 + $0x78] sm:$0xff] %v408
                $region84: #{spectral_block_apply.1} parent=78 // loop_footer
                  %s375 = sadd.s32 1, %s371
                $region85: #{spectral_block_apply.1} parent=78 // loop_footer_branch
                  %370 = sbr.rel target = $region81
                $region86: #{spectral_block_apply.1} parent=78 // loop_exit
                  _
              $region79: #{spectral_block_apply.1} parent=63 // pred_fallthru
                _
              // Predicated region
              $region87: #{spectral_block_apply.1} parent=63 // pred_check
                _
              $region88: #{spectral_block_apply.1} parent=63 // pred_check_branch
                %411 = sbr.rel target = $region90
              $region89: #{spectral_block_apply.1} parent=63 // pred_region
                _
              $region90: #{spectral_block_apply.1} parent=63 // pred_fallthru
                _
            $region64: #{spectral_block_apply.1} parent=59 // pred_fallthru
              _
            // Predicated region
            $region65: #{spectral_block_apply.1} parent=59 // pred_check
              _
            $region66: #{spectral_block_apply.1} parent=59 // pred_check_branch
              %326 = sbr.rel target = $region68
            $region67: #{spectral_block_apply.1} parent=59 // pred_region
              loop: start=0, step=1, limit=1
              $region69: #{spectral_block_apply.1} parent=67 // loop_pre_header
                _
              $region70: #{spectral_block_apply.1} parent=67 // loop_header
                %s329 = sphi 0, %s333
                %p330 = scmp.ge.s32.totalorder %s329, 1
                %s334 = sphi %s320, %s320
                %s335 = sphi %s318, %s318
              $region71: #{spectral_block_apply.1} parent=67 // loop_header_branch
                %332 = sbr.rel (%p330) target = $region75
              $region72: #{spectral_block_apply.1} parent=67 // loop_body
                %v336 = vld [vmem:[%s334] sm:$0xff]
                %337 = vst [vmem:[%s335] sm:$0xff] %v336
                %v338 = vld [vmem:[%s334 + $0x18] sm:$0xff]
                %339 = vst [vmem:[%s335 + $0x8] sm:$0xff] %v338
                %v340 = vld [vmem:[%s334 + $0x30] sm:$0xff]
                %341 = vst [vmem:[%s335 + $0x10] sm:$0xff] %v340
                %v342 = vld [vmem:[%s334 + $0x48] sm:$0xff]
                %343 = vst [vmem:[%s335 + $0x18] sm:$0xff] %v342
                %v344 = vld [vmem:[%s334 + $0x60] sm:$0xff]
                %345 = vst [vmem:[%s335 + $0x20] sm:$0xff] %v344
                %v346 = vld [vmem:[%s334 + $0x78] sm:$0xff]
                %347 = vst [vmem:[%s335 + $0x28] sm:$0xff] %v346
                %v348 = vld [vmem:[%s334 + $0x90] sm:$0xff]
                %349 = vst [vmem:[%s335 + $0x30] sm:$0xff] %v348
                %v350 = vld [vmem:[%s334 + $0xa8] sm:$0xff]
                %351 = vst [vmem:[%s335 + $0x38] sm:$0xff] %v350
                %v352 = vld [vmem:[%s334 + $0xc0] sm:$0xff]
                %353 = vst [vmem:[%s335 + $0x40] sm:$0xff] %v352
                %v354 = vld [vmem:[%s334 + $0xd8] sm:$0xff]
                %355 = vst [vmem:[%s335 + $0x48] sm:$0xff] %v354
                %v356 = vld [vmem:[%s334 + $0xf0] sm:$0xff]
                %357 = vst [vmem:[%s335 + $0x50] sm:$0xff] %v356
                %v358 = vld [vmem:[%s334 + $0x108] sm:$0xff]
                %359 = vst [vmem:[%s335 + $0x58] sm:$0xff] %v358
                %v360 = vld [vmem:[%s334 + $0x120] sm:$0xff]
                %361 = vst [vmem:[%s335 + $0x60] sm:$0xff] %v360
                %v362 = vld [vmem:[%s334 + $0x138] sm:$0xff]
                %363 = vst [vmem:[%s335 + $0x68] sm:$0xff] %v362
                %v364 = vld [vmem:[%s334 + $0x150] sm:$0xff]
                %365 = vst [vmem:[%s335 + $0x70] sm:$0xff] %v364
                %v366 = vld [vmem:[%s334 + $0x168] sm:$0xff]
                %367 = vst [vmem:[%s335 + $0x78] sm:$0xff] %v366
              $region73: #{spectral_block_apply.1} parent=67 // loop_footer
                %s333 = sadd.s32 1, %s329
              $region74: #{spectral_block_apply.1} parent=67 // loop_footer_branch
                %328 = sbr.rel target = $region70
              $region75: #{spectral_block_apply.1} parent=67 // loop_exit
                _
            $region68: #{spectral_block_apply.1} parent=59 // pred_fallthru
              _
          $region60: #{spectral_block_apply.1} parent=55 // pred_fallthru
            _
          %412 = vnop
        $region56: #{spectral_block_apply.1} parent=51 // pred_fallthru
          _
      $region52: #{spectral_block_apply.1} parent=5 // pred_fallthru
        _
      %p413 = scmp.le.s32.totalorder 1, %s17
      %p414 = scmp.lt.s32.totalorder %s17, 4
      %p415 = pnand %p413, %p414
      %p416 = pneg %p415
      // Predicated region
      $region91: #{spectral_block_apply.1} parent=5 // pred_check
        _
      $region92: #{spectral_block_apply.1} parent=5 // pred_check_branch
        %418 = sbr.rel (%p415) target = $region94
      $region93: #{spectral_block_apply.1} parent=5 // pred_region
        %s419 = ssub.s32 %s17, 1
        %s420 = sand.u32 %s30, 1
        %s421 = sand.u32 %s30, 1
        %s422 = smul.addr %s421, 128
        %s423 = scalar_lea.vmem [#allocation2], %s422
        // Predicated region
        $region95: #{spectral_block_apply.1} parent=93 // pred_check
          %p424 = pneg %p43
        $region96: #{spectral_block_apply.1} parent=93 // pred_check_branch
          %426 = sbr.rel (%p424) target = $region98
        $region97: #{spectral_block_apply.1} parent=93 // pred_region
          _
        $region98: #{spectral_block_apply.1} parent=93 // pred_fallthru
          _
        // Predicated region
        $region99: #{spectral_block_apply.1} parent=93 // pred_check
          %p427 = pneg %p232
        $region100: #{spectral_block_apply.1} parent=93 // pred_check_branch
          %429 = sbr.rel (%p427) target = $region102
        $region101: #{spectral_block_apply.1} parent=93 // pred_region
          %430 = dma.done [#allocation4], 16
        $region102: #{spectral_block_apply.1} parent=93 // pred_fallthru
          _
        %431 = sfence
        %s432 = sand.u32 %s30, 1
        %s433 = sand.u32 %s30, 1
        %s434 = smul.addr %s433, 128
        %s435 = scalar_lea.vmem [#allocation2], %s434
        %p436 = pneg %p43
        %p437 = pneg %p40
        %p438 = pneg %p64
        %p439 = pneg %p61
        %p440 = pneg %p85
        %p441 = pneg %p82
        %p442 = pneg %p106
        %p443 = pneg %p103
        %p444 = pneg %p127
        %p445 = pneg %p124
        %p446 = pneg %p148
        %p447 = pneg %p145
        %p448 = pneg %p169
        %p449 = pneg %p166
        %p450 = pneg %p190
        %p451 = pneg %p187
        %p452 = pneg %p211
        %p453 = pneg %p208
        %p454 = pneg %p232
        %p455 = pneg %p229
        %p456 = pneg %p258
        %p457 = pneg %p255
        %s458 = sand.u32 %s245, 1
        %s459 = sand.u32 %s245, 1
        %s460 = smul.addr %s459, 512
        %s461 = scalar_lea.vmem [#allocation5], %s460
        %v462 = vld [vmem:[%s423] sm:$0xff]
        %v463 = vld [vmem:[%s423 + $0x8] sm:$0xff]
        %v464 = vld [vmem:[%s423 + $0x10] sm:$0xff]
        %v465 = vld [vmem:[%s423 + $0x18] sm:$0xff]
        %v466 = vld [vmem:[%s423 + $0x20] sm:$0xff]
        %v467 = vld [vmem:[%s423 + $0x28] sm:$0xff]
        %v468 = vld [vmem:[%s423 + $0x30] sm:$0xff]
        %v469 = vld [vmem:[%s423 + $0x38] sm:$0xff]
        %v470 = vld [vmem:[%s423 + $0x40] sm:$0xff]
        %v471 = vld [vmem:[%s423 + $0x48] sm:$0xff]
        %v472 = vld [vmem:[%s423 + $0x50] sm:$0xff]
        %v473 = vld [vmem:[%s423 + $0x58] sm:$0xff]
        %v474 = vld [vmem:[%s423 + $0x60] sm:$0xff]
        %v475 = vld [vmem:[%s423 + $0x68] sm:$0xff]
        %v476 = vld [vmem:[%s423 + $0x70] sm:$0xff]
        %v477 = vld [vmem:[%s423 + $0x78] sm:$0xff]
        %v478 = vld [vmem:[%s1] sm:$0xff]
        %v479 = vld [vmem:[%s1 + $0x8] sm:$0xff]
        %v480 = vld [vmem:[%s1 + $0x10] sm:$0xff]
        %v481 = vld [vmem:[%s1 + $0x18] sm:$0xff]
        %v482 = vld [vmem:[%s1 + $0x20] sm:$0xff]
        %v483 = vld [vmem:[%s1 + $0x28] sm:$0xff]
        %v484 = vld [vmem:[%s1 + $0x30] sm:$0xff]
        %v485 = vld [vmem:[%s1 + $0x38] sm:$0xff]
        %v486 = vld [vmem:[%s1 + $0x40] sm:$0xff]
        %v487 = vld [vmem:[%s1 + $0x48] sm:$0xff]
        %v488 = vld [vmem:[%s1 + $0x50] sm:$0xff]
        %v489 = vld [vmem:[%s1 + $0x58] sm:$0xff]
        %v490 = vld [vmem:[%s1 + $0x60] sm:$0xff]
        %v491 = vld [vmem:[%s1 + $0x68] sm:$0xff]
        %v492 = vld [vmem:[%s1 + $0x70] sm:$0xff]
        %v493 = vld [vmem:[%s1 + $0x78] sm:$0xff]
        %v494 = vld [vmem:[%s1 + $0x80] sm:$0xff]
        %v495 = vld [vmem:[%s1 + $0x88] sm:$0xff]
        %v496 = vld [vmem:[%s1 + $0x90] sm:$0xff]
        %v497 = vld [vmem:[%s1 + $0x98] sm:$0xff]
        %v498 = vld [vmem:[%s1 + $0xa0] sm:$0xff]
        %v499 = vld [vmem:[%s1 + $0xa8] sm:$0xff]
        %v500 = vld [vmem:[%s1 + $0xb0] sm:$0xff]
        %v501 = vld [vmem:[%s1 + $0xb8] sm:$0xff]
        %v502 = vld [vmem:[%s1 + $0xc0] sm:$0xff]
        %v503 = vld [vmem:[%s1 + $0xc8] sm:$0xff]
        %v504 = vld [vmem:[%s1 + $0xd0] sm:$0xff]
        %v505 = vld [vmem:[%s1 + $0xd8] sm:$0xff]
        %v506 = vld [vmem:[%s1 + $0xe0] sm:$0xff]
        %v507 = vld [vmem:[%s1 + $0xe8] sm:$0xff]
        %v508 = vld [vmem:[%s1 + $0xf0] sm:$0xff]
        %v509 = vld [vmem:[%s1 + $0xf8] sm:$0xff]
        %v510 = vld [vmem:[%s2] sm:$0xff]
        %v511 = vld [vmem:[%s2 + $0x8] sm:$0xff]
        %v512 = vld [vmem:[%s2 + $0x10] sm:$0xff]
        %v513 = vld [vmem:[%s2 + $0x18] sm:$0xff]
        %v514 = vld [vmem:[%s2 + $0x20] sm:$0xff]
        %v515 = vld [vmem:[%s2 + $0x28] sm:$0xff]
        %v516 = vld [vmem:[%s2 + $0x30] sm:$0xff]
        %v517 = vld [vmem:[%s2 + $0x38] sm:$0xff]
        %v518 = vld [vmem:[%s2 + $0x40] sm:$0xff]
        %v519 = vld [vmem:[%s2 + $0x48] sm:$0xff]
        %v520 = vld [vmem:[%s2 + $0x50] sm:$0xff]
        %v521 = vld [vmem:[%s2 + $0x58] sm:$0xff]
        %v522 = vld [vmem:[%s2 + $0x60] sm:$0xff]
        %v523 = vld [vmem:[%s2 + $0x68] sm:$0xff]
        %v524 = vld [vmem:[%s2 + $0x70] sm:$0xff]
        %v525 = vld [vmem:[%s2 + $0x78] sm:$0xff]
        %v526 = vld [vmem:[%s2 + $0x80] sm:$0xff]
        %v527 = vld [vmem:[%s2 + $0x88] sm:$0xff]
        %v528 = vld [vmem:[%s2 + $0x90] sm:$0xff]
        %v529 = vld [vmem:[%s2 + $0x98] sm:$0xff]
        %v530 = vld [vmem:[%s2 + $0xa0] sm:$0xff]
        %v531 = vld [vmem:[%s2 + $0xa8] sm:$0xff]
        %v532 = vld [vmem:[%s2 + $0xb0] sm:$0xff]
        %v533 = vld [vmem:[%s2 + $0xb8] sm:$0xff]
        %v534 = vld [vmem:[%s2 + $0xc0] sm:$0xff]
        %v535 = vld [vmem:[%s2 + $0xc8] sm:$0xff]
        %v536 = vld [vmem:[%s2 + $0xd0] sm:$0xff]
        %v537 = vld [vmem:[%s2 + $0xd8] sm:$0xff]
        %v538 = vld [vmem:[%s2 + $0xe0] sm:$0xff]
        %v539 = vld [vmem:[%s2 + $0xe8] sm:$0xff]
        %v540 = vld [vmem:[%s2 + $0xf0] sm:$0xff]
        %v541 = vld [vmem:[%s2 + $0xf8] sm:$0xff]
        %543 = vset.pattern.permute.xlu0 0
        %544 = vperm.xlu0 %543, %v510
        %v545 = vpop.permute.xlu0 %544
        %548 = vset.pattern.permute.xlu0 0
        %549 = vperm.xlu0 %548, %v511
        %v550 = vpop.permute.xlu0 %549
        %553 = vset.pattern.permute.xlu0 0
        %554 = vperm.xlu0 %553, %v512
        %v555 = vpop.permute.xlu0 %554
        %558 = vset.pattern.permute.xlu0 0
        %559 = vperm.xlu0 %558, %v513
        %v560 = vpop.permute.xlu0 %559
        %563 = vset.pattern.permute.xlu0 0
        %564 = vperm.xlu0 %563, %v514
        %v565 = vpop.permute.xlu0 %564
        %568 = vset.pattern.permute.xlu0 0
        %569 = vperm.xlu0 %568, %v515
        %v570 = vpop.permute.xlu0 %569
        %573 = vset.pattern.permute.xlu0 0
        %574 = vperm.xlu0 %573, %v516
        %v575 = vpop.permute.xlu0 %574
        %578 = vset.pattern.permute.xlu0 0
        %579 = vperm.xlu0 %578, %v517
        %v580 = vpop.permute.xlu0 %579
        %583 = vset.pattern.permute.xlu0 0
        %584 = vperm.xlu0 %583, %v518
        %v585 = vpop.permute.xlu0 %584
        %588 = vset.pattern.permute.xlu0 0
        %589 = vperm.xlu0 %588, %v519
        %v590 = vpop.permute.xlu0 %589
        %593 = vset.pattern.permute.xlu0 0
        %594 = vperm.xlu0 %593, %v520
        %v595 = vpop.permute.xlu0 %594
        %598 = vset.pattern.permute.xlu0 0
        %599 = vperm.xlu0 %598, %v521
        %v600 = vpop.permute.xlu0 %599
        %603 = vset.pattern.permute.xlu0 0
        %604 = vperm.xlu0 %603, %v522
        %v605 = vpop.permute.xlu0 %604
        %608 = vset.pattern.permute.xlu0 0
        %609 = vperm.xlu0 %608, %v523
        %v610 = vpop.permute.xlu0 %609
        %613 = vset.pattern.permute.xlu0 0
        %614 = vperm.xlu0 %613, %v524
        %v615 = vpop.permute.xlu0 %614
        %618 = vset.pattern.permute.xlu0 0
        %619 = vperm.xlu0 %618, %v525
        %v620 = vpop.permute.xlu0 %619
        %623 = vset.pattern.permute.xlu0 0
        %624 = vperm.xlu0 %623, %v526
        %v625 = vpop.permute.xlu0 %624
        %628 = vset.pattern.permute.xlu0 0
        %629 = vperm.xlu0 %628, %v527
        %v630 = vpop.permute.xlu0 %629
        %633 = vset.pattern.permute.xlu0 0
        %634 = vperm.xlu0 %633, %v528
        %v635 = vpop.permute.xlu0 %634
        %638 = vset.pattern.permute.xlu0 0
        %639 = vperm.xlu0 %638, %v529
        %v640 = vpop.permute.xlu0 %639
        %643 = vset.pattern.permute.xlu0 0
        %644 = vperm.xlu0 %643, %v530
        %v645 = vpop.permute.xlu0 %644
        %648 = vset.pattern.permute.xlu0 0
        %649 = vperm.xlu0 %648, %v531
        %v650 = vpop.permute.xlu0 %649
        %653 = vset.pattern.permute.xlu0 0
        %654 = vperm.xlu0 %653, %v532
        %v655 = vpop.permute.xlu0 %654
        %658 = vset.pattern.permute.xlu0 0
        %659 = vperm.xlu0 %658, %v533
        %v660 = vpop.permute.xlu0 %659
        %663 = vset.pattern.permute.xlu0 0
        %664 = vperm.xlu0 %663, %v534
        %v665 = vpop.permute.xlu0 %664
        %668 = vset.pattern.permute.xlu0 0
        %669 = vperm.xlu0 %668, %v535
        %v670 = vpop.permute.xlu0 %669
        %673 = vset.pattern.permute.xlu0 0
        %674 = vperm.xlu0 %673, %v536
        %v675 = vpop.permute.xlu0 %674
        %678 = vset.pattern.permute.xlu0 0
        %679 = vperm.xlu0 %678, %v537
        %v680 = vpop.permute.xlu0 %679
        %683 = vset.pattern.permute.xlu0 0
        %684 = vperm.xlu0 %683, %v538
        %v685 = vpop.permute.xlu0 %684
        %688 = vset.pattern.permute.xlu0 0
        %689 = vperm.xlu0 %688, %v539
        %v690 = vpop.permute.xlu0 %689
        %693 = vset.pattern.permute.xlu0 0
        %694 = vperm.xlu0 %693, %v540
        %v695 = vpop.permute.xlu0 %694
        %698 = vset.pattern.permute.xlu0 0
        %699 = vperm.xlu0 %698, %v541
        %v700 = vpop.permute.xlu0 %699
        %702 = vmatprep.subr.mxu0 0.0
        %703 = vmatpush1.msra.mxu0 %v462
        %704 = vmatprep.subr.mxu0 0.0
        %705 = vmatpush1.msra.mxu0 %v463
        %706 = vmatprep.subr.mxu0 0.0
        %707 = vmatpush1.msra.mxu0 %v464
        %708 = vmatprep.subr.mxu0 0.0
        %709 = vmatpush1.msra.mxu0 %v465
        %710 = vmatprep.subr.mxu0 0.0
        %711 = vmatpush1.msra.mxu0 %v466
        %712 = vmatprep.subr.mxu0 0.0
        %713 = vmatpush1.msra.mxu0 %v467
        %714 = vmatprep.subr.mxu0 0.0
        %715 = vmatpush1.msra.mxu0 %v468
        %716 = vmatprep.subr.mxu0 0.0
        %717 = vmatpush1.msra.mxu0 %v469
        %718 = vmatprep.subr.mxu0 0.0
        %719 = vmatpush1.msra.mxu0 %v470
        %720 = vmatprep.subr.mxu0 0.0
        %721 = vmatpush1.msra.mxu0 %v471
        %722 = vmatprep.subr.mxu0 0.0
        %723 = vmatpush1.msra.mxu0 %v472
        %724 = vmatprep.subr.mxu0 0.0
        %725 = vmatpush1.msra.mxu0 %v473
        %726 = vmatprep.subr.mxu0 0.0
        %727 = vmatpush1.msra.mxu0 %v474
        %728 = vmatprep.subr.mxu0 0.0
        %729 = vmatpush1.msra.mxu0 %v475
        %730 = vmatprep.subr.mxu0 0.0
        %731 = vmatpush1.msra.mxu0 %v476
        %732 = vmatprep.subr.mxu0 0.0
        %733 = vmatpush1.msra.mxu0 %v477
        %734 = vmatprep.subr.mxu0 0.0
        %735 = vmatpush1.msra.mxu0 0.0
        %736 = vmatprep.subr.mxu0 0.0
        %737 = vmatpush1.msra.mxu0 0.0
        %738 = vmatprep.subr.mxu0 0.0
        %739 = vmatpush1.msra.mxu0 0.0
        %740 = vmatprep.subr.mxu0 0.0
        %741 = vmatpush1.msra.mxu0 0.0
        %742 = vmatprep.subr.mxu0 0.0
        %743 = vmatpush1.msra.mxu0 0.0
        %744 = vmatprep.subr.mxu0 0.0
        %745 = vmatpush1.msra.mxu0 0.0
        %746 = vmatprep.subr.mxu0 0.0
        %747 = vmatpush1.msra.mxu0 0.0
        %748 = vmatprep.subr.mxu0 0.0
        %749 = vmatpush1.msra.mxu0 0.0
        %750 = vmatprep.subr.mxu0 0.0
        %751 = vmatpush1.msra.mxu0 0.0
        %752 = vmatprep.subr.mxu0 0.0
        %753 = vmatpush1.msra.mxu0 0.0
        %754 = vmatprep.subr.mxu0 0.0
        %755 = vmatpush1.msra.mxu0 0.0
        %756 = vmatprep.subr.mxu0 0.0
        %757 = vmatpush1.msra.mxu0 0.0
        %758 = vmatprep.subr.mxu0 0.0
        %759 = vmatpush1.msra.mxu0 0.0
        %760 = vmatprep.subr.mxu0 0.0
        %761 = vmatpush1.msra.mxu0 0.0
        %762 = vmatprep.subr.mxu0 0.0
        %763 = vmatpush1.msra.mxu0 0.0
        %764 = vmatprep.subr.mxu0 0.0
        %765 = vmatpush1.msra.mxu0 0.0
        %766 = vmatprep.mubr.f32.mxu0 0.0
        %767 = vmatmul.mubr.f32.gmra.mrb[0].mxu0 %v478
        %v768 = vpop.f32.mrb[0].mxu0
        %v769 = vadd.f32 %v545, %v768
        %v770 = vpop.f32.mrb[0].mxu0
        %771 = vmatprep.mubr.f32.mxu0 0.0
        %772 = vmatmul.mubr.f32.gmra.mrb[0].mxu0 %v479
        %v773 = vpop.f32.mrb[0].mxu0
        %v774 = vadd.f32 %v550, %v773
        %v775 = vpop.f32.mrb[0].mxu0
        %776 = vmatprep.mubr.f32.mxu0 0.0
        %777 = vmatmul.mubr.f32.gmra.mrb[0].mxu0 %v480
        %v778 = vpop.f32.mrb[0].mxu0
        %v779 = vadd.f32 %v555, %v778
        %v780 = vpop.f32.mrb[0].mxu0
        %781 = vmatprep.mubr.f32.mxu0 0.0
        %782 = vmatmul.mubr.f32.gmra.mrb[0].mxu0 %v481
        %v783 = vpop.f32.mrb[0].mxu0
        %v784 = vadd.f32 %v560, %v783
        %v785 = vpop.f32.mrb[0].mxu0
        %786 = vmatprep.mubr.f32.mxu0 0.0
        %787 = vmatmul.mubr.f32.gmra.mrb[0].mxu0 %v482
        %v788 = vpop.f32.mrb[0].mxu0
        %v789 = vadd.f32 %v565, %v788
        %v790 = vpop.f32.mrb[0].mxu0
        %791 = vmatprep.mubr.f32.mxu0 0.0
        %792 = vmatmul.mubr.f32.gmra.mrb[0].mxu0 %v483
        %v793 = vpop.f32.mrb[0].mxu0
        %v794 = vadd.f32 %v570, %v793
        %v795 = vpop.f32.mrb[0].mxu0
        %796 = vmatprep.mubr.f32.mxu0 0.0
        %797 = vmatmul.mubr.f32.gmra.mrb[0].mxu0 %v484
        %v798 = vpop.f32.mrb[0].mxu0
        %v799 = vadd.f32 %v575, %v798
        %v800 = vpop.f32.mrb[0].mxu0
        %801 = vmatprep.mubr.f32.mxu0 0.0
        %802 = vmatmul.mubr.f32.gmra.mrb[0].mxu0 %v485
        %v803 = vpop.f32.mrb[0].mxu0
        %v804 = vadd.f32 %v580, %v803
        %v805 = vpop.f32.mrb[0].mxu0
        %806 = vmatprep.mubr.f32.mxu0 0.0
        %807 = vmatmul.mubr.f32.gmra.mrb[0].mxu0 %v486
        %v808 = vpop.f32.mrb[0].mxu0
        %v809 = vadd.f32 %v585, %v808
        %v810 = vpop.f32.mrb[0].mxu0
        %811 = vmatprep.mubr.f32.mxu0 0.0
        %812 = vmatmul.mubr.f32.gmra.mrb[0].mxu0 %v487
        %v813 = vpop.f32.mrb[0].mxu0
        %v814 = vadd.f32 %v590, %v813
        %v815 = vpop.f32.mrb[0].mxu0
        %816 = vmatprep.mubr.f32.mxu0 0.0
        %817 = vmatmul.mubr.f32.gmra.mrb[0].mxu0 %v488
        %v818 = vpop.f32.mrb[0].mxu0
        %v819 = vadd.f32 %v595, %v818
        %v820 = vpop.f32.mrb[0].mxu0
        %821 = vmatprep.mubr.f32.mxu0 0.0
        %822 = vmatmul.mubr.f32.gmra.mrb[0].mxu0 %v489
        %v823 = vpop.f32.mrb[0].mxu0
        %v824 = vadd.f32 %v600, %v823
        %v825 = vpop.f32.mrb[0].mxu0
        %826 = vmatprep.mubr.f32.mxu0 0.0
        %827 = vmatmul.mubr.f32.gmra.mrb[0].mxu0 %v490
        %v828 = vpop.f32.mrb[0].mxu0
        %v829 = vadd.f32 %v605, %v828
        %v830 = vpop.f32.mrb[0].mxu0
        %831 = vmatprep.mubr.f32.mxu0 0.0
        %832 = vmatmul.mubr.f32.gmra.mrb[0].mxu0 %v491
        %v833 = vpop.f32.mrb[0].mxu0
        %v834 = vadd.f32 %v610, %v833
        %v835 = vpop.f32.mrb[0].mxu0
        %836 = vmatprep.mubr.f32.mxu0 0.0
        %837 = vmatmul.mubr.f32.gmra.mrb[0].mxu0 %v492
        %v838 = vpop.f32.mrb[0].mxu0
        %v839 = vadd.f32 %v615, %v838
        %v840 = vpop.f32.mrb[0].mxu0
        %841 = vmatprep.mubr.f32.mxu0 0.0
        %842 = vmatmul.mubr.f32.gmra.mrb[0].mxu0 %v493
        %v843 = vpop.f32.mrb[0].mxu0
        %v844 = vadd.f32 %v620, %v843
        %v845 = vpop.f32.mrb[0].mxu0
        %846 = vmatprep.mubr.f32.mxu0 0.0
        %847 = vmatmul.mubr.f32.gmra.mrb[0].mxu0 %v494
        %v848 = vpop.f32.mrb[0].mxu0
        %v849 = vadd.f32 %v625, %v848
        %v850 = vpop.f32.mrb[0].mxu0
        %851 = vmatprep.mubr.f32.mxu0 0.0
        %852 = vmatmul.mubr.f32.gmra.mrb[0].mxu0 %v495
        %v853 = vpop.f32.mrb[0].mxu0
        %v854 = vadd.f32 %v630, %v853
        %v855 = vpop.f32.mrb[0].mxu0
        %856 = vmatprep.mubr.f32.mxu0 0.0
        %857 = vmatmul.mubr.f32.gmra.mrb[0].mxu0 %v496
        %v858 = vpop.f32.mrb[0].mxu0
        %v859 = vadd.f32 %v635, %v858
        %v860 = vpop.f32.mrb[0].mxu0
        %861 = vmatprep.mubr.f32.mxu0 0.0
        %862 = vmatmul.mubr.f32.gmra.mrb[0].mxu0 %v497
        %v863 = vpop.f32.mrb[0].mxu0
        %v864 = vadd.f32 %v640, %v863
        %v865 = vpop.f32.mrb[0].mxu0
        %866 = vmatprep.mubr.f32.mxu0 0.0
        %867 = vmatmul.mubr.f32.gmra.mrb[0].mxu0 %v498
        %v868 = vpop.f32.mrb[0].mxu0
        %v869 = vadd.f32 %v645, %v868
        %v870 = vpop.f32.mrb[0].mxu0
        %871 = vmatprep.mubr.f32.mxu0 0.0
        %872 = vmatmul.mubr.f32.gmra.mrb[0].mxu0 %v499
        %v873 = vpop.f32.mrb[0].mxu0
        %v874 = vadd.f32 %v650, %v873
        %v875 = vpop.f32.mrb[0].mxu0
        %876 = vmatprep.mubr.f32.mxu0 0.0
        %877 = vmatmul.mubr.f32.gmra.mrb[0].mxu0 %v500
        %v878 = vpop.f32.mrb[0].mxu0
        %v879 = vadd.f32 %v655, %v878
        %v880 = vpop.f32.mrb[0].mxu0
        %881 = vmatprep.mubr.f32.mxu0 0.0
        %882 = vmatmul.mubr.f32.gmra.mrb[0].mxu0 %v501
        %v883 = vpop.f32.mrb[0].mxu0
        %v884 = vadd.f32 %v660, %v883
        %v885 = vpop.f32.mrb[0].mxu0
        %886 = vmatprep.mubr.f32.mxu0 0.0
        %887 = vmatmul.mubr.f32.gmra.mrb[0].mxu0 %v502
        %v888 = vpop.f32.mrb[0].mxu0
        %v889 = vadd.f32 %v665, %v888
        %v890 = vpop.f32.mrb[0].mxu0
        %891 = vmatprep.mubr.f32.mxu0 0.0
        %892 = vmatmul.mubr.f32.gmra.mrb[0].mxu0 %v503
        %v893 = vpop.f32.mrb[0].mxu0
        %v894 = vadd.f32 %v670, %v893
        %v895 = vpop.f32.mrb[0].mxu0
        %896 = vmatprep.mubr.f32.mxu0 0.0
        %897 = vmatmul.mubr.f32.gmra.mrb[0].mxu0 %v504
        %v898 = vpop.f32.mrb[0].mxu0
        %v899 = vadd.f32 %v675, %v898
        %v900 = vpop.f32.mrb[0].mxu0
        %901 = vmatprep.mubr.f32.mxu0 0.0
        %902 = vmatmul.mubr.f32.gmra.mrb[0].mxu0 %v505
        %v903 = vpop.f32.mrb[0].mxu0
        %v904 = vadd.f32 %v680, %v903
        %v905 = vpop.f32.mrb[0].mxu0
        %906 = vmatprep.mubr.f32.mxu0 0.0
        %907 = vmatmul.mubr.f32.gmra.mrb[0].mxu0 %v506
        %v908 = vpop.f32.mrb[0].mxu0
        %v909 = vadd.f32 %v685, %v908
        %v910 = vpop.f32.mrb[0].mxu0
        %911 = vmatprep.mubr.f32.mxu0 0.0
        %912 = vmatmul.mubr.f32.gmra.mrb[0].mxu0 %v507
        %v913 = vpop.f32.mrb[0].mxu0
        %v914 = vadd.f32 %v690, %v913
        %v915 = vpop.f32.mrb[0].mxu0
        %916 = vmatprep.mubr.f32.mxu0 0.0
        %917 = vmatmul.mubr.f32.gmra.mrb[0].mxu0 %v508
        %v918 = vpop.f32.mrb[0].mxu0
        %v919 = vadd.f32 %v695, %v918
        %v920 = vpop.f32.mrb[0].mxu0
        %921 = vmatprep.mubr.f32.mxu0 0.0
        %922 = vmatmul.mubr.f32.gmra.mrb[0].mxu0 %v509
        %v923 = vpop.f32.mrb[0].mxu0
        %v924 = vadd.f32 %v700, %v923
        %v925 = vpop.f32.mrb[0].mxu0
        %926 = vdwg.mxu0
        %s927 = sld [smem:[#allocation3]]
        %vm928 = vcmp.ge.f32.partialorder %v769, 0.0
        %vm929 = vcmp.ge.f32.partialorder %v774, 0.0
        %vm930 = vcmp.ge.f32.partialorder %v779, 0.0
        %vm931 = vcmp.ge.f32.partialorder %v784, 0.0
        %vm932 = vcmp.ge.f32.partialorder %v789, 0.0
        %vm933 = vcmp.ge.f32.partialorder %v794, 0.0
        %vm934 = vcmp.ge.f32.partialorder %v799, 0.0
        %vm935 = vcmp.ge.f32.partialorder %v804, 0.0
        %vm936 = vcmp.ge.f32.partialorder %v809, 0.0
        %vm937 = vcmp.ge.f32.partialorder %v814, 0.0
        %vm938 = vcmp.ge.f32.partialorder %v819, 0.0
        %vm939 = vcmp.ge.f32.partialorder %v824, 0.0
        %vm940 = vcmp.ge.f32.partialorder %v829, 0.0
        %vm941 = vcmp.ge.f32.partialorder %v834, 0.0
        %vm942 = vcmp.ge.f32.partialorder %v839, 0.0
        %vm943 = vcmp.ge.f32.partialorder %v844, 0.0
        %vm944 = vcmp.ge.f32.partialorder %v849, 0.0
        %vm945 = vcmp.ge.f32.partialorder %v854, 0.0
        %vm946 = vcmp.ge.f32.partialorder %v859, 0.0
        %vm947 = vcmp.ge.f32.partialorder %v864, 0.0
        %vm948 = vcmp.ge.f32.partialorder %v869, 0.0
        %vm949 = vcmp.ge.f32.partialorder %v874, 0.0
        %vm950 = vcmp.ge.f32.partialorder %v879, 0.0
        %vm951 = vcmp.ge.f32.partialorder %v884, 0.0
        %vm952 = vcmp.ge.f32.partialorder %v889, 0.0
        %vm953 = vcmp.ge.f32.partialorder %v894, 0.0
        %vm954 = vcmp.ge.f32.partialorder %v899, 0.0
        %vm955 = vcmp.ge.f32.partialorder %v904, 0.0
        %vm956 = vcmp.ge.f32.partialorder %v909, 0.0
        %vm957 = vcmp.ge.f32.partialorder %v914, 0.0
        %vm958 = vcmp.ge.f32.partialorder %v919, 0.0
        %vm959 = vcmp.ge.f32.partialorder %v924, 0.0
        %v960 = vstv %s927
        %v961 = vmul.f32 %v960, %v769
        %v962 = vmul.f32 %v960, %v774
        %v963 = vmul.f32 %v960, %v779
        %v964 = vmul.f32 %v960, %v784
        %v965 = vmul.f32 %v960, %v789
        %v966 = vmul.f32 %v960, %v794
        %v967 = vmul.f32 %v960, %v799
        %v968 = vmul.f32 %v960, %v804
        %v969 = vmul.f32 %v960, %v809
        %v970 = vmul.f32 %v960, %v814
        %v971 = vmul.f32 %v960, %v819
        %v972 = vmul.f32 %v960, %v824
        %v973 = vmul.f32 %v960, %v829
        %v974 = vmul.f32 %v960, %v834
        %v975 = vmul.f32 %v960, %v839
        %v976 = vmul.f32 %v960, %v844
        %v977 = vmul.f32 %v960, %v849
        %v978 = vmul.f32 %v960, %v854
        %v979 = vmul.f32 %v960, %v859
        %v980 = vmul.f32 %v960, %v864
        %v981 = vmul.f32 %v960, %v869
        %v982 = vmul.f32 %v960, %v874
        %v983 = vmul.f32 %v960, %v879
        %v984 = vmul.f32 %v960, %v884
        %v985 = vmul.f32 %v960, %v889
        %v986 = vmul.f32 %v960, %v894
        %v987 = vmul.f32 %v960, %v899
        %v988 = vmul.f32 %v960, %v904
        %v989 = vmul.f32 %v960, %v909
        %v990 = vmul.f32 %v960, %v914
        %v991 = vmul.f32 %v960, %v919
        %v992 = vmul.f32 %v960, %v924
        %v993 = vsel %vm928, %v769, %v961
        %v994 = vsel %vm929, %v774, %v962
        %v995 = vsel %vm930, %v779, %v963
        %v996 = vsel %vm931, %v784, %v964
        %v997 = vsel %vm932, %v789, %v965
        %v998 = vsel %vm933, %v794, %v966
        %v999 = vsel %vm934, %v799, %v967
        %v1000 = vsel %vm935, %v804, %v968
        %v1001 = vsel %vm936, %v809, %v969
        %v1002 = vsel %vm937, %v814, %v970
        %v1003 = vsel %vm938, %v819, %v971
        %v1004 = vsel %vm939, %v824, %v972
        %v1005 = vsel %vm940, %v829, %v973
        %v1006 = vsel %vm941, %v834, %v974
        %v1007 = vsel %vm942, %v839, %v975
        %v1008 = vsel %vm943, %v844, %v976
        %v1009 = vsel %vm944, %v849, %v977
        %v1010 = vsel %vm945, %v854, %v978
        %v1011 = vsel %vm946, %v859, %v979
        %v1012 = vsel %vm947, %v864, %v980
        %v1013 = vsel %vm948, %v869, %v981
        %v1014 = vsel %vm949, %v874, %v982
        %v1015 = vsel %vm950, %v879, %v983
        %v1016 = vsel %vm951, %v884, %v984
        %v1017 = vsel %vm952, %v889, %v985
        %v1018 = vsel %vm953, %v894, %v986
        %v1019 = vsel %vm954, %v899, %v987
        %v1020 = vsel %vm955, %v904, %v988
        %v1021 = vsel %vm956, %v909, %v989
        %v1022 = vsel %vm957, %v914, %v990
        %v1023 = vsel %vm958, %v919, %v991
        %v1024 = vsel %vm959, %v924, %v992
        %v1025 = vld [vmem:[%s3] sm:$0xff]
        %v1026 = vld [vmem:[%s3 + $0x8] sm:$0xff]
        %v1027 = vld [vmem:[%s3 + $0x10] sm:$0xff]
        %v1028 = vld [vmem:[%s3 + $0x18] sm:$0xff]
        %v1029 = vld [vmem:[%s3 + $0x20] sm:$0xff]
        %v1030 = vld [vmem:[%s3 + $0x28] sm:$0xff]
        %v1031 = vld [vmem:[%s3 + $0x30] sm:$0xff]
        %v1032 = vld [vmem:[%s3 + $0x38] sm:$0xff]
        %v1033 = vld [vmem:[%s3 + $0x40] sm:$0xff]
        %v1034 = vld [vmem:[%s3 + $0x48] sm:$0xff]
        %v1035 = vld [vmem:[%s3 + $0x50] sm:$0xff]
        %v1036 = vld [vmem:[%s3 + $0x58] sm:$0xff]
        %v1037 = vld [vmem:[%s3 + $0x60] sm:$0xff]
        %v1038 = vld [vmem:[%s3 + $0x68] sm:$0xff]
        %v1039 = vld [vmem:[%s3 + $0x70] sm:$0xff]
        %v1040 = vld [vmem:[%s3 + $0x78] sm:$0xff]
        %v1041 = vld [vmem:[%s3 + $0x80] sm:$0xff]
        %v1042 = vld [vmem:[%s3 + $0x88] sm:$0xff]
        %v1043 = vld [vmem:[%s3 + $0x90] sm:$0xff]
        %v1044 = vld [vmem:[%s3 + $0x98] sm:$0xff]
        %v1045 = vld [vmem:[%s3 + $0xa0] sm:$0xff]
        %v1046 = vld [vmem:[%s3 + $0xa8] sm:$0xff]
        %v1047 = vld [vmem:[%s3 + $0xb0] sm:$0xff]
        %v1048 = vld [vmem:[%s3 + $0xb8] sm:$0xff]
        %v1049 = vld [vmem:[%s3 + $0xc0] sm:$0xff]
        %v1050 = vld [vmem:[%s3 + $0xc8] sm:$0xff]
        %v1051 = vld [vmem:[%s3 + $0xd0] sm:$0xff]
        %v1052 = vld [vmem:[%s3 + $0xd8] sm:$0xff]
        %v1053 = vld [vmem:[%s3 + $0xe0] sm:$0xff]
        %v1054 = vld [vmem:[%s3 + $0xe8] sm:$0xff]
        %v1055 = vld [vmem:[%s3 + $0xf0] sm:$0xff]
        %v1056 = vld [vmem:[%s3 + $0xf8] sm:$0xff]
        %v1057 = vld [vmem:[%s3 + $0x100] sm:$0xff]
        %v1058 = vld [vmem:[%s3 + $0x108] sm:$0xff]
        %v1059 = vld [vmem:[%s3 + $0x110] sm:$0xff]
        %v1060 = vld [vmem:[%s3 + $0x118] sm:$0xff]
        %v1061 = vld [vmem:[%s3 + $0x120] sm:$0xff]
        %v1062 = vld [vmem:[%s3 + $0x128] sm:$0xff]
        %v1063 = vld [vmem:[%s3 + $0x130] sm:$0xff]
        %v1064 = vld [vmem:[%s3 + $0x138] sm:$0xff]
        %v1065 = vld [vmem:[%s3 + $0x140] sm:$0xff]
        %v1066 = vld [vmem:[%s3 + $0x148] sm:$0xff]
        %v1067 = vld [vmem:[%s3 + $0x150] sm:$0xff]
        %v1068 = vld [vmem:[%s3 + $0x158] sm:$0xff]
        %v1069 = vld [vmem:[%s3 + $0x160] sm:$0xff]
        %v1070 = vld [vmem:[%s3 + $0x168] sm:$0xff]
        %v1071 = vld [vmem:[%s3 + $0x170] sm:$0xff]
        %v1072 = vld [vmem:[%s3 + $0x178] sm:$0xff]
        %v1073 = vld [vmem:[%s3 + $0x180] sm:$0xff]
        %v1074 = vld [vmem:[%s3 + $0x188] sm:$0xff]
        %v1075 = vld [vmem:[%s3 + $0x190] sm:$0xff]
        %v1076 = vld [vmem:[%s3 + $0x198] sm:$0xff]
        %v1077 = vld [vmem:[%s3 + $0x1a0] sm:$0xff]
        %v1078 = vld [vmem:[%s3 + $0x1a8] sm:$0xff]
        %v1079 = vld [vmem:[%s3 + $0x1b0] sm:$0xff]
        %v1080 = vld [vmem:[%s3 + $0x1b8] sm:$0xff]
        %v1081 = vld [vmem:[%s3 + $0x1c0] sm:$0xff]
        %v1082 = vld [vmem:[%s3 + $0x1c8] sm:$0xff]
        %v1083 = vld [vmem:[%s3 + $0x1d0] sm:$0xff]
        %v1084 = vld [vmem:[%s3 + $0x1d8] sm:$0xff]
        %v1085 = vld [vmem:[%s3 + $0x1e0] sm:$0xff]
        %v1086 = vld [vmem:[%s3 + $0x1e8] sm:$0xff]
        %v1087 = vld [vmem:[%s3 + $0x1f0] sm:$0xff]
        %v1088 = vld [vmem:[%s3 + $0x1f8] sm:$0xff]
        %v1089 = vld [vmem:[%s3 + $0x200] sm:$0xff]
        %v1090 = vld [vmem:[%s3 + $0x208] sm:$0xff]
        %v1091 = vld [vmem:[%s3 + $0x210] sm:$0xff]
        %v1092 = vld [vmem:[%s3 + $0x218] sm:$0xff]
        %v1093 = vld [vmem:[%s3 + $0x220] sm:$0xff]
        %v1094 = vld [vmem:[%s3 + $0x228] sm:$0xff]
        %v1095 = vld [vmem:[%s3 + $0x230] sm:$0xff]
        %v1096 = vld [vmem:[%s3 + $0x238] sm:$0xff]
        %v1097 = vld [vmem:[%s3 + $0x240] sm:$0xff]
        %v1098 = vld [vmem:[%s3 + $0x248] sm:$0xff]
        %v1099 = vld [vmem:[%s3 + $0x250] sm:$0xff]
        %v1100 = vld [vmem:[%s3 + $0x258] sm:$0xff]
        %v1101 = vld [vmem:[%s3 + $0x260] sm:$0xff]
        %v1102 = vld [vmem:[%s3 + $0x268] sm:$0xff]
        %v1103 = vld [vmem:[%s3 + $0x270] sm:$0xff]
        %v1104 = vld [vmem:[%s3 + $0x278] sm:$0xff]
        %v1105 = vld [vmem:[%s3 + $0x280] sm:$0xff]
        %v1106 = vld [vmem:[%s3 + $0x288] sm:$0xff]
        %v1107 = vld [vmem:[%s3 + $0x290] sm:$0xff]
        %v1108 = vld [vmem:[%s3 + $0x298] sm:$0xff]
        %v1109 = vld [vmem:[%s3 + $0x2a0] sm:$0xff]
        %v1110 = vld [vmem:[%s3 + $0x2a8] sm:$0xff]
        %v1111 = vld [vmem:[%s3 + $0x2b0] sm:$0xff]
        %v1112 = vld [vmem:[%s3 + $0x2b8] sm:$0xff]
        %v1113 = vld [vmem:[%s3 + $0x2c0] sm:$0xff]
        %v1114 = vld [vmem:[%s3 + $0x2c8] sm:$0xff]
        %v1115 = vld [vmem:[%s3 + $0x2d0] sm:$0xff]
        %v1116 = vld [vmem:[%s3 + $0x2d8] sm:$0xff]
        %v1117 = vld [vmem:[%s3 + $0x2e0] sm:$0xff]
        %v1118 = vld [vmem:[%s3 + $0x2e8] sm:$0xff]
        %v1119 = vld [vmem:[%s3 + $0x2f0] sm:$0xff]
        %v1120 = vld [vmem:[%s3 + $0x2f8] sm:$0xff]
        %1121 = vmatprep.subr.mxu0 0.0
        %1122 = vmatpush1.msra.mxu0 %v993
        %1123 = vmatprep.subr.mxu0 0.0
        %1124 = vmatpush1.msra.mxu0 %v994
        %1125 = vmatprep.subr.mxu0 0.0
        %1126 = vmatpush1.msra.mxu0 %v995
        %1127 = vmatprep.subr.mxu0 0.0
        %1128 = vmatpush1.msra.mxu0 %v996
        %1129 = vmatprep.subr.mxu0 0.0
        %1130 = vmatpush1.msra.mxu0 %v997
        %1131 = vmatprep.subr.mxu0 0.0
        %1132 = vmatpush1.msra.mxu0 %v998
        %1133 = vmatprep.subr.mxu0 0.0
        %1134 = vmatpush1.msra.mxu0 %v999
        %1135 = vmatprep.subr.mxu0 0.0
        %1136 = vmatpush1.msra.mxu0 %v1000
        %1137 = vmatprep.subr.mxu0 0.0
        %1138 = vmatpush1.msra.mxu0 %v1001
        %1139 = vmatprep.subr.mxu0 0.0
        %1140 = vmatpush1.msra.mxu0 %v1002
        %1141 = vmatprep.subr.mxu0 0.0
        %1142 = vmatpush1.msra.mxu0 %v1003
        %1143 = vmatprep.subr.mxu0 0.0
        %1144 = vmatpush1.msra.mxu0 %v1004
        %1145 = vmatprep.subr.mxu0 0.0
        %1146 = vmatpush1.msra.mxu0 %v1005
        %1147 = vmatprep.subr.mxu0 0.0
        %1148 = vmatpush1.msra.mxu0 %v1006
        %1149 = vmatprep.subr.mxu0 0.0
        %1150 = vmatpush1.msra.mxu0 %v1007
        %1151 = vmatprep.subr.mxu0 0.0
        %1152 = vmatpush1.msra.mxu0 %v1008
        %1153 = vmatprep.subr.mxu0 0.0
        %1154 = vmatpush1.msra.mxu0 %v1009
        %1155 = vmatprep.subr.mxu0 0.0
        %1156 = vmatpush1.msra.mxu0 %v1010
        %1157 = vmatprep.subr.mxu0 0.0
        %1158 = vmatpush1.msra.mxu0 %v1011
        %1159 = vmatprep.subr.mxu0 0.0
        %1160 = vmatpush1.msra.mxu0 %v1012
        %1161 = vmatprep.subr.mxu0 0.0
        %1162 = vmatpush1.msra.mxu0 %v1013
        %1163 = vmatprep.subr.mxu0 0.0
        %1164 = vmatpush1.msra.mxu0 %v1014
        %1165 = vmatprep.subr.mxu0 0.0
        %1166 = vmatpush1.msra.mxu0 %v1015
        %1167 = vmatprep.subr.mxu0 0.0
        %1168 = vmatpush1.msra.mxu0 %v1016
        %1169 = vmatprep.subr.mxu0 0.0
        %1170 = vmatpush1.msra.mxu0 %v1017
        %1171 = vmatprep.subr.mxu0 0.0
        %1172 = vmatpush1.msra.mxu0 %v1018
        %1173 = vmatprep.subr.mxu0 0.0
        %1174 = vmatpush1.msra.mxu0 %v1019
        %1175 = vmatprep.subr.mxu0 0.0
        %1176 = vmatpush1.msra.mxu0 %v1020
        %1177 = vmatprep.subr.mxu0 0.0
        %1178 = vmatpush1.msra.mxu0 %v1021
        %1179 = vmatprep.subr.mxu0 0.0
        %1180 = vmatpush1.msra.mxu0 %v1022
        %1181 = vmatprep.subr.mxu0 0.0
        %1182 = vmatpush1.msra.mxu0 %v1023
        %1183 = vmatprep.subr.mxu0 0.0
        %1184 = vmatpush1.msra.mxu0 %v1024
        %1185 = vmatprep.mubr.f32.mxu0 %v1026
        %1186 = vmatmul.mubr.f32.gmra.mrb[0].mxu0 %v1025
        %v1187 = vpop.f32.mrb[0].mxu0
        %v1188 = vadd.f32 0.0, %v1187
        %v1189 = vpop.f32.mrb[0].mxu0
        %1190 = vmatprep.mubr.f32.mxu0 %v1028
        %1191 = vmatmul.mubr.f32.gmra.mrb[0].mxu0 %v1027
        %v1192 = vpop.f32.mrb[0].mxu0
        %v1193 = vadd.f32 0.0, %v1192
        %v1194 = vpop.f32.mrb[0].mxu0
        %1195 = vmatprep.mubr.f32.mxu0 %v1030
        %1196 = vmatmul.mubr.f32.gmra.mrb[0].mxu0 %v1029
        %v1197 = vpop.f32.mrb[0].mxu0
        %v1198 = vadd.f32 0.0, %v1197
        %v1199 = vpop.f32.mrb[0].mxu0
        %1200 = vmatprep.mubr.f32.mxu0 %v1032
        %1201 = vmatmul.mubr.f32.gmra.mrb[0].mxu0 %v1031
        %v1202 = vpop.f32.mrb[0].mxu0
        %v1203 = vadd.f32 0.0, %v1202
        %v1204 = vpop.f32.mrb[0].mxu0
        %1205 = vmatprep.mubr.f32.mxu0 %v1034
        %1206 = vmatmul.mubr.f32.gmra.mrb[0].mxu0 %v1033
        %v1207 = vpop.f32.mrb[0].mxu0
        %v1208 = vadd.f32 0.0, %v1207
        %v1209 = vpop.f32.mrb[0].mxu0
        %1210 = vmatprep.mubr.f32.mxu0 %v1036
        %1211 = vmatmul.mubr.f32.gmra.mrb[0].mxu0 %v1035
        %v1212 = vpop.f32.mrb[0].mxu0
        %v1213 = vadd.f32 0.0, %v1212
        %v1214 = vpop.f32.mrb[0].mxu0
        %1215 = vmatprep.mubr.f32.mxu0 %v1038
        %1216 = vmatmul.mubr.f32.gmra.mrb[0].mxu0 %v1037
        %v1217 = vpop.f32.mrb[0].mxu0
        %v1218 = vadd.f32 0.0, %v1217
        %v1219 = vpop.f32.mrb[0].mxu0
        %1220 = vmatprep.mubr.f32.mxu0 %v1040
        %1221 = vmatmul.mubr.f32.gmra.mrb[0].mxu0 %v1039
        %v1222 = vpop.f32.mrb[0].mxu0
        %v1223 = vadd.f32 0.0, %v1222
        %v1224 = vpop.f32.mrb[0].mxu0
        %1225 = vmatprep.mubr.f32.mxu0 %v1042
        %1226 = vmatmul.mubr.f32.gmra.mrb[0].mxu0 %v1041
        %v1227 = vpop.f32.mrb[0].mxu0
        %v1228 = vadd.f32 0.0, %v1227
        %v1229 = vpop.f32.mrb[0].mxu0
        %1230 = vmatprep.mubr.f32.mxu0 %v1044
        %1231 = vmatmul.mubr.f32.gmra.mrb[0].mxu0 %v1043
        %v1232 = vpop.f32.mrb[0].mxu0
        %v1233 = vadd.f32 0.0, %v1232
        %v1234 = vpop.f32.mrb[0].mxu0
        %1235 = vmatprep.mubr.f32.mxu0 %v1046
        %1236 = vmatmul.mubr.f32.gmra.mrb[0].mxu0 %v1045
        %v1237 = vpop.f32.mrb[0].mxu0
        %v1238 = vadd.f32 0.0, %v1237
        %v1239 = vpop.f32.mrb[0].mxu0
        %1240 = vmatprep.mubr.f32.mxu0 %v1048
        %1241 = vmatmul.mubr.f32.gmra.mrb[0].mxu0 %v1047
        %v1242 = vpop.f32.mrb[0].mxu0
        %v1243 = vadd.f32 0.0, %v1242
        %v1244 = vpop.f32.mrb[0].mxu0
        %1245 = vmatprep.mubr.f32.mxu0 %v1050
        %1246 = vmatmul.mubr.f32.gmra.mrb[0].mxu0 %v1049
        %v1247 = vpop.f32.mrb[0].mxu0
        %v1248 = vadd.f32 0.0, %v1247
        %v1249 = vpop.f32.mrb[0].mxu0
        %1250 = vmatprep.mubr.f32.mxu0 %v1052
        %1251 = vmatmul.mubr.f32.gmra.mrb[0].mxu0 %v1051
        %v1252 = vpop.f32.mrb[0].mxu0
        %v1253 = vadd.f32 0.0, %v1252
        %v1254 = vpop.f32.mrb[0].mxu0
        %1255 = vmatprep.mubr.f32.mxu0 %v1054
        %1256 = vmatmul.mubr.f32.gmra.mrb[0].mxu0 %v1053
        %v1257 = vpop.f32.mrb[0].mxu0
        %v1258 = vadd.f32 0.0, %v1257
        %v1259 = vpop.f32.mrb[0].mxu0
        %1260 = vmatprep.mubr.f32.mxu0 %v1056
        %1261 = vmatmul.mubr.f32.gmra.mrb[0].mxu0 %v1055
        %v1262 = vpop.f32.mrb[0].mxu0
        %v1263 = vadd.f32 0.0, %v1262
        %v1264 = vpop.f32.mrb[0].mxu0
        %1265 = vmatprep.mubr.f32.mxu0 %v1058
        %1266 = vmatmul.mubr.f32.gmra.mrb[0].mxu0 %v1057
        %v1267 = vpop.f32.mrb[0].mxu0
        %v1268 = vadd.f32 0.0, %v1267
        %v1269 = vpop.f32.mrb[0].mxu0
        %1270 = vmatprep.mubr.f32.mxu0 %v1060
        %1271 = vmatmul.mubr.f32.gmra.mrb[0].mxu0 %v1059
        %v1272 = vpop.f32.mrb[0].mxu0
        %v1273 = vadd.f32 0.0, %v1272
        %v1274 = vpop.f32.mrb[0].mxu0
        %1275 = vmatprep.mubr.f32.mxu0 %v1062
        %1276 = vmatmul.mubr.f32.gmra.mrb[0].mxu0 %v1061
        %v1277 = vpop.f32.mrb[0].mxu0
        %v1278 = vadd.f32 0.0, %v1277
        %v1279 = vpop.f32.mrb[0].mxu0
        %1280 = vmatprep.mubr.f32.mxu0 %v1064
        %1281 = vmatmul.mubr.f32.gmra.mrb[0].mxu0 %v1063
        %v1282 = vpop.f32.mrb[0].mxu0
        %v1283 = vadd.f32 0.0, %v1282
        %v1284 = vpop.f32.mrb[0].mxu0
        %1285 = vmatprep.mubr.f32.mxu0 %v1066
        %1286 = vmatmul.mubr.f32.gmra.mrb[0].mxu0 %v1065
        %v1287 = vpop.f32.mrb[0].mxu0
        %v1288 = vadd.f32 0.0, %v1287
        %v1289 = vpop.f32.mrb[0].mxu0
        %1290 = vmatprep.mubr.f32.mxu0 %v1068
        %1291 = vmatmul.mubr.f32.gmra.mrb[0].mxu0 %v1067
        %v1292 = vpop.f32.mrb[0].mxu0
        %v1293 = vadd.f32 0.0, %v1292
        %v1294 = vpop.f32.mrb[0].mxu0
        %1295 = vmatprep.mubr.f32.mxu0 %v1070
        %1296 = vmatmul.mubr.f32.gmra.mrb[0].mxu0 %v1069
        %v1297 = vpop.f32.mrb[0].mxu0
        %v1298 = vadd.f32 0.0, %v1297
        %v1299 = vpop.f32.mrb[0].mxu0
        %1300 = vmatprep.mubr.f32.mxu0 %v1072
        %1301 = vmatmul.mubr.f32.gmra.mrb[0].mxu0 %v1071
        %v1302 = vpop.f32.mrb[0].mxu0
        %v1303 = vadd.f32 0.0, %v1302
        %v1304 = vpop.f32.mrb[0].mxu0
        %1305 = vmatprep.mubr.f32.mxu0 %v1074
        %1306 = vmatmul.mubr.f32.gmra.mrb[0].mxu0 %v1073
        %v1307 = vpop.f32.mrb[0].mxu0
        %v1308 = vadd.f32 0.0, %v1307
        %v1309 = vpop.f32.mrb[0].mxu0
        %1310 = vmatprep.mubr.f32.mxu0 %v1076
        %1311 = vmatmul.mubr.f32.gmra.mrb[0].mxu0 %v1075
        %v1312 = vpop.f32.mrb[0].mxu0
        %v1313 = vadd.f32 0.0, %v1312
        %v1314 = vpop.f32.mrb[0].mxu0
        %1315 = vmatprep.mubr.f32.mxu0 %v1078
        %1316 = vmatmul.mubr.f32.gmra.mrb[0].mxu0 %v1077
        %v1317 = vpop.f32.mrb[0].mxu0
        %v1318 = vadd.f32 0.0, %v1317
        %v1319 = vpop.f32.mrb[0].mxu0
        %1320 = vmatprep.mubr.f32.mxu0 %v1080
        %1321 = vmatmul.mubr.f32.gmra.mrb[0].mxu0 %v1079
        %v1322 = vpop.f32.mrb[0].mxu0
        %v1323 = vadd.f32 0.0, %v1322
        %v1324 = vpop.f32.mrb[0].mxu0
        %1325 = vmatprep.mubr.f32.mxu0 %v1082
        %1326 = vmatmul.mubr.f32.gmra.mrb[0].mxu0 %v1081
        %v1327 = vpop.f32.mrb[0].mxu0
        %v1328 = vadd.f32 0.0, %v1327
        %v1329 = vpop.f32.mrb[0].mxu0
        %1330 = vmatprep.mubr.f32.mxu0 %v1084
        %1331 = vmatmul.mubr.f32.gmra.mrb[0].mxu0 %v1083
        %v1332 = vpop.f32.mrb[0].mxu0
        %v1333 = vadd.f32 0.0, %v1332
        %v1334 = vpop.f32.mrb[0].mxu0
        %1335 = vmatprep.mubr.f32.mxu0 %v1086
        %1336 = vmatmul.mubr.f32.gmra.mrb[0].mxu0 %v1085
        %v1337 = vpop.f32.mrb[0].mxu0
        %v1338 = vadd.f32 0.0, %v1337
        %v1339 = vpop.f32.mrb[0].mxu0
        %1340 = vmatprep.mubr.f32.mxu0 %v1088
        %1341 = vmatmul.mubr.f32.gmra.mrb[0].mxu0 %v1087
        %v1342 = vpop.f32.mrb[0].mxu0
        %v1343 = vadd.f32 0.0, %v1342
        %v1344 = vpop.f32.mrb[0].mxu0
        %1345 = vmatprep.mubr.f32.mxu0 %v1090
        %1346 = vmatmul.mubr.f32.gmra.mrb[0].mxu0 %v1089
        %v1347 = vpop.f32.mrb[0].mxu0
        %v1348 = vadd.f32 0.0, %v1347
        %v1349 = vpop.f32.mrb[0].mxu0
        %1350 = vmatprep.mubr.f32.mxu0 %v1092
        %1351 = vmatmul.mubr.f32.gmra.mrb[0].mxu0 %v1091
        %v1352 = vpop.f32.mrb[0].mxu0
        %v1353 = vadd.f32 0.0, %v1352
        %v1354 = vpop.f32.mrb[0].mxu0
        %1355 = vmatprep.mubr.f32.mxu0 %v1094
        %1356 = vmatmul.mubr.f32.gmra.mrb[0].mxu0 %v1093
        %v1357 = vpop.f32.mrb[0].mxu0
        %v1358 = vadd.f32 0.0, %v1357
        %v1359 = vpop.f32.mrb[0].mxu0
        %1360 = vmatprep.mubr.f32.mxu0 %v1096
        %1361 = vmatmul.mubr.f32.gmra.mrb[0].mxu0 %v1095
        %v1362 = vpop.f32.mrb[0].mxu0
        %v1363 = vadd.f32 0.0, %v1362
        %v1364 = vpop.f32.mrb[0].mxu0
        %1365 = vmatprep.mubr.f32.mxu0 %v1098
        %1366 = vmatmul.mubr.f32.gmra.mrb[0].mxu0 %v1097
        %v1367 = vpop.f32.mrb[0].mxu0
        %v1368 = vadd.f32 0.0, %v1367
        %v1369 = vpop.f32.mrb[0].mxu0
        %1370 = vmatprep.mubr.f32.mxu0 %v1100
        %1371 = vmatmul.mubr.f32.gmra.mrb[0].mxu0 %v1099
        %v1372 = vpop.f32.mrb[0].mxu0
        %v1373 = vadd.f32 0.0, %v1372
        %v1374 = vpop.f32.mrb[0].mxu0
        %1375 = vmatprep.mubr.f32.mxu0 %v1102
        %1376 = vmatmul.mubr.f32.gmra.mrb[0].mxu0 %v1101
        %v1377 = vpop.f32.mrb[0].mxu0
        %v1378 = vadd.f32 0.0, %v1377
        %v1379 = vpop.f32.mrb[0].mxu0
        %1380 = vmatprep.mubr.f32.mxu0 %v1104
        %1381 = vmatmul.mubr.f32.gmra.mrb[0].mxu0 %v1103
        %v1382 = vpop.f32.mrb[0].mxu0
        %v1383 = vadd.f32 0.0, %v1382
        %v1384 = vpop.f32.mrb[0].mxu0
        %1385 = vmatprep.mubr.f32.mxu0 %v1106
        %1386 = vmatmul.mubr.f32.gmra.mrb[0].mxu0 %v1105
        %v1387 = vpop.f32.mrb[0].mxu0
        %v1388 = vadd.f32 0.0, %v1387
        %v1389 = vpop.f32.mrb[0].mxu0
        %1390 = vmatprep.mubr.f32.mxu0 %v1108
        %1391 = vmatmul.mubr.f32.gmra.mrb[0].mxu0 %v1107
        %v1392 = vpop.f32.mrb[0].mxu0
        %v1393 = vadd.f32 0.0, %v1392
        %v1394 = vpop.f32.mrb[0].mxu0
        %1395 = vmatprep.mubr.f32.mxu0 %v1110
        %1396 = vmatmul.mubr.f32.gmra.mrb[0].mxu0 %v1109
        %v1397 = vpop.f32.mrb[0].mxu0
        %v1398 = vadd.f32 0.0, %v1397
        %v1399 = vpop.f32.mrb[0].mxu0
        %1400 = vmatprep.mubr.f32.mxu0 %v1112
        %1401 = vmatmul.mubr.f32.gmra.mrb[0].mxu0 %v1111
        %v1402 = vpop.f32.mrb[0].mxu0
        %v1403 = vadd.f32 0.0, %v1402
        %v1404 = vpop.f32.mrb[0].mxu0
        %1405 = vmatprep.mubr.f32.mxu0 %v1114
        %1406 = vmatmul.mubr.f32.gmra.mrb[0].mxu0 %v1113
        %v1407 = vpop.f32.mrb[0].mxu0
        %v1408 = vadd.f32 0.0, %v1407
        %v1409 = vpop.f32.mrb[0].mxu0
        %1410 = vmatprep.mubr.f32.mxu0 %v1116
        %1411 = vmatmul.mubr.f32.gmra.mrb[0].mxu0 %v1115
        %v1412 = vpop.f32.mrb[0].mxu0
        %v1413 = vadd.f32 0.0, %v1412
        %v1414 = vpop.f32.mrb[0].mxu0
        %1415 = vmatprep.mubr.f32.mxu0 %v1118
        %1416 = vmatmul.mubr.f32.gmra.mrb[0].mxu0 %v1117
        %v1417 = vpop.f32.mrb[0].mxu0
        %v1418 = vadd.f32 0.0, %v1417
        %v1419 = vpop.f32.mrb[0].mxu0
        %1420 = vmatprep.mubr.f32.mxu0 %v1120
        %1421 = vmatmul.mubr.f32.gmra.mrb[0].mxu0 %v1119
        %v1422 = vpop.f32.mrb[0].mxu0
        %v1423 = vadd.f32 0.0, %v1422
        %v1424 = vpop.f32.mrb[0].mxu0
        %1425 = vdwg.mxu0
        %v1426 = vld [vmem:[%s4] sm:$0xff]
        %v1427 = vld [vmem:[%s4 + $0x8] sm:$0xff]
        %v1428 = vld [vmem:[%s4 + $0x10] sm:$0xff]
        %v1429 = vld [vmem:[%s4 + $0x18] sm:$0xff]
        %v1430 = vld [vmem:[%s4 + $0x20] sm:$0xff]
        %v1431 = vld [vmem:[%s4 + $0x28] sm:$0xff]
        %v1432 = vld [vmem:[%s4 + $0x30] sm:$0xff]
        %v1433 = vld [vmem:[%s4 + $0x38] sm:$0xff]
        %v1434 = vld [vmem:[%s4 + $0x40] sm:$0xff]
        %v1435 = vld [vmem:[%s4 + $0x48] sm:$0xff]
        %v1436 = vld [vmem:[%s4 + $0x50] sm:$0xff]
        %v1437 = vld [vmem:[%s4 + $0x58] sm:$0xff]
        %v1438 = vld [vmem:[%s4 + $0x60] sm:$0xff]
        %v1439 = vld [vmem:[%s4 + $0x68] sm:$0xff]
        %v1440 = vld [vmem:[%s4 + $0x70] sm:$0xff]
        %v1441 = vld [vmem:[%s4 + $0x78] sm:$0xff]
        %1443 = vset.pattern.permute.xlu0 0
        %1444 = vperm.xlu0 %1443, %v1426
        %v1445 = vpop.permute.xlu0 %1444
        %1448 = vset.pattern.permute.xlu0 0
        %1449 = vperm.xlu0 %1448, %v1427
        %v1450 = vpop.permute.xlu0 %1449
        %1453 = vset.pattern.permute.xlu0 0
        %1454 = vperm.xlu0 %1453, %v1428
        %v1455 = vpop.permute.xlu0 %1454
        %1458 = vset.pattern.permute.xlu0 0
        %1459 = vperm.xlu0 %1458, %v1429
        %v1460 = vpop.permute.xlu0 %1459
        %1463 = vset.pattern.permute.xlu0 0
        %1464 = vperm.xlu0 %1463, %v1430
        %v1465 = vpop.permute.xlu0 %1464
        %1468 = vset.pattern.permute.xlu0 0
        %1469 = vperm.xlu0 %1468, %v1431
        %v1470 = vpop.permute.xlu0 %1469
        %1473 = vset.pattern.permute.xlu0 0
        %1474 = vperm.xlu0 %1473, %v1432
        %v1475 = vpop.permute.xlu0 %1474
        %1478 = vset.pattern.permute.xlu0 0
        %1479 = vperm.xlu0 %1478, %v1433
        %v1480 = vpop.permute.xlu0 %1479
        %1483 = vset.pattern.permute.xlu0 0
        %1484 = vperm.xlu0 %1483, %v1434
        %v1485 = vpop.permute.xlu0 %1484
        %1488 = vset.pattern.permute.xlu0 0
        %1489 = vperm.xlu0 %1488, %v1435
        %v1490 = vpop.permute.xlu0 %1489
        %1493 = vset.pattern.permute.xlu0 0
        %1494 = vperm.xlu0 %1493, %v1436
        %v1495 = vpop.permute.xlu0 %1494
        %1498 = vset.pattern.permute.xlu0 0
        %1499 = vperm.xlu0 %1498, %v1437
        %v1500 = vpop.permute.xlu0 %1499
        %1503 = vset.pattern.permute.xlu0 0
        %1504 = vperm.xlu0 %1503, %v1438
        %v1505 = vpop.permute.xlu0 %1504
        %1508 = vset.pattern.permute.xlu0 0
        %1509 = vperm.xlu0 %1508, %v1439
        %v1510 = vpop.permute.xlu0 %1509
        %1513 = vset.pattern.permute.xlu0 0
        %1514 = vperm.xlu0 %1513, %v1440
        %v1515 = vpop.permute.xlu0 %1514
        %1518 = vset.pattern.permute.xlu0 0
        %1519 = vperm.xlu0 %1518, %v1441
        %v1520 = vpop.permute.xlu0 %1519
        %v1522 = vadd.f32 %v1188, %v1445
        %v1523 = vadd.f32 %v1193, %v1450
        %v1524 = vadd.f32 %v1198, %v1455
        %v1525 = vadd.f32 %v1203, %v1460
        %v1526 = vadd.f32 %v1208, %v1465
        %v1527 = vadd.f32 %v1213, %v1470
        %v1528 = vadd.f32 %v1218, %v1475
        %v1529 = vadd.f32 %v1223, %v1480
        %v1530 = vadd.f32 %v1228, %v1485
        %v1531 = vadd.f32 %v1233, %v1490
        %v1532 = vadd.f32 %v1238, %v1495
        %v1533 = vadd.f32 %v1243, %v1500
        %v1534 = vadd.f32 %v1248, %v1505
        %v1535 = vadd.f32 %v1253, %v1510
        %v1536 = vadd.f32 %v1258, %v1515
        %v1537 = vadd.f32 %v1263, %v1520
        %s1538 = sld [smem:[#allocation3 + $0x1]]
        %vm1539 = vcmp.ge.f32.partialorder %v1522, 0.0
        %vm1540 = vcmp.ge.f32.partialorder %v1523, 0.0
        %vm1541 = vcmp.ge.f32.partialorder %v1524, 0.0
        %vm1542 = vcmp.ge.f32.partialorder %v1525, 0.0
        %vm1543 = vcmp.ge.f32.partialorder %v1526, 0.0
        %vm1544 = vcmp.ge.f32.partialorder %v1527, 0.0
        %vm1545 = vcmp.ge.f32.partialorder %v1528, 0.0
        %vm1546 = vcmp.ge.f32.partialorder %v1529, 0.0
        %vm1547 = vcmp.ge.f32.partialorder %v1530, 0.0
        %vm1548 = vcmp.ge.f32.partialorder %v1531, 0.0
        %vm1549 = vcmp.ge.f32.partialorder %v1532, 0.0
        %vm1550 = vcmp.ge.f32.partialorder %v1533, 0.0
        %vm1551 = vcmp.ge.f32.partialorder %v1534, 0.0
        %vm1552 = vcmp.ge.f32.partialorder %v1535, 0.0
        %vm1553 = vcmp.ge.f32.partialorder %v1536, 0.0
        %vm1554 = vcmp.ge.f32.partialorder %v1537, 0.0
        %v1555 = vstv %s1538
        %v1556 = vmul.f32 %v1555, %v1522
        %v1557 = vmul.f32 %v1555, %v1523
        %v1558 = vmul.f32 %v1555, %v1524
        %v1559 = vmul.f32 %v1555, %v1525
        %v1560 = vmul.f32 %v1555, %v1526
        %v1561 = vmul.f32 %v1555, %v1527
        %v1562 = vmul.f32 %v1555, %v1528
        %v1563 = vmul.f32 %v1555, %v1529
        %v1564 = vmul.f32 %v1555, %v1530
        %v1565 = vmul.f32 %v1555, %v1531
        %v1566 = vmul.f32 %v1555, %v1532
        %v1567 = vmul.f32 %v1555, %v1533
        %v1568 = vmul.f32 %v1555, %v1534
        %v1569 = vmul.f32 %v1555, %v1535
        %v1570 = vmul.f32 %v1555, %v1536
        %v1571 = vmul.f32 %v1555, %v1537
        %v1572 = vsel %vm1539, %v1522, %v1556
        %v1573 = vsel %vm1540, %v1523, %v1557
        %v1574 = vsel %vm1541, %v1524, %v1558
        %v1575 = vsel %vm1542, %v1525, %v1559
        %v1576 = vsel %vm1543, %v1526, %v1560
        %v1577 = vsel %vm1544, %v1527, %v1561
        %v1578 = vsel %vm1545, %v1528, %v1562
        %v1579 = vsel %vm1546, %v1529, %v1563
        %v1580 = vsel %vm1547, %v1530, %v1564
        %v1581 = vsel %vm1548, %v1531, %v1565
        %v1582 = vsel %vm1549, %v1532, %v1566
        %v1583 = vsel %vm1550, %v1533, %v1567
        %v1584 = vsel %vm1551, %v1534, %v1568
        %v1585 = vsel %vm1552, %v1535, %v1569
        %v1586 = vsel %vm1553, %v1536, %v1570
        %v1587 = vsel %vm1554, %v1537, %v1571
        %v1588 = vld [vmem:[%s5] sm:$0xff]
        %v1589 = vld [vmem:[%s5 + $0x8] sm:$0xff]
        %v1590 = vld [vmem:[%s5 + $0x10] sm:$0xff]
        %v1591 = vld [vmem:[%s5 + $0x18] sm:$0xff]
        %v1592 = vld [vmem:[%s5 + $0x20] sm:$0xff]
        %v1593 = vld [vmem:[%s5 + $0x28] sm:$0xff]
        %v1594 = vld [vmem:[%s5 + $0x30] sm:$0xff]
        %v1595 = vld [vmem:[%s5 + $0x38] sm:$0xff]
        %v1596 = vld [vmem:[%s5 + $0x40] sm:$0xff]
        %v1597 = vld [vmem:[%s5 + $0x48] sm:$0xff]
        %v1598 = vld [vmem:[%s5 + $0x50] sm:$0xff]
        %v1599 = vld [vmem:[%s5 + $0x58] sm:$0xff]
        %v1600 = vld [vmem:[%s5 + $0x60] sm:$0xff]
        %v1601 = vld [vmem:[%s5 + $0x68] sm:$0xff]
        %v1602 = vld [vmem:[%s5 + $0x70] sm:$0xff]
        %v1603 = vld [vmem:[%s5 + $0x78] sm:$0xff]
        %v1604 = vld [vmem:[%s5 + $0x80] sm:$0xff]
        %v1605 = vld [vmem:[%s5 + $0x88] sm:$0xff]
        %v1606 = vld [vmem:[%s5 + $0x90] sm:$0xff]
        %v1607 = vld [vmem:[%s5 + $0x98] sm:$0xff]
        %v1608 = vld [vmem:[%s5 + $0xa0] sm:$0xff]
        %v1609 = vld [vmem:[%s5 + $0xa8] sm:$0xff]
        %v1610 = vld [vmem:[%s5 + $0xb0] sm:$0xff]
        %v1611 = vld [vmem:[%s5 + $0xb8] sm:$0xff]
        %v1612 = vld [vmem:[%s5 + $0xc0] sm:$0xff]
        %v1613 = vld [vmem:[%s5 + $0xc8] sm:$0xff]
        %v1614 = vld [vmem:[%s5 + $0xd0] sm:$0xff]
        %v1615 = vld [vmem:[%s5 + $0xd8] sm:$0xff]
        %v1616 = vld [vmem:[%s5 + $0xe0] sm:$0xff]
        %v1617 = vld [vmem:[%s5 + $0xe8] sm:$0xff]
        %v1618 = vld [vmem:[%s5 + $0xf0] sm:$0xff]
        %v1619 = vld [vmem:[%s5 + $0xf8] sm:$0xff]
        %1620 = vmatprep.subr.mxu0 0.0
        %1621 = vmatpush1.msra.mxu0 %v1572
        %1622 = vmatprep.subr.mxu0 0.0
        %1623 = vmatpush1.msra.mxu0 %v1573
        %1624 = vmatprep.subr.mxu0 0.0
        %1625 = vmatpush1.msra.mxu0 %v1574
        %1626 = vmatprep.subr.mxu0 0.0
        %1627 = vmatpush1.msra.mxu0 %v1575
        %1628 = vmatprep.subr.mxu0 0.0
        %1629 = vmatpush1.msra.mxu0 %v1576
        %1630 = vmatprep.subr.mxu0 0.0
        %1631 = vmatpush1.msra.mxu0 %v1577
        %1632 = vmatprep.subr.mxu0 0.0
        %1633 = vmatpush1.msra.mxu0 %v1578
        %1634 = vmatprep.subr.mxu0 0.0
        %1635 = vmatpush1.msra.mxu0 %v1579
        %1636 = vmatprep.subr.mxu0 0.0
        %1637 = vmatpush1.msra.mxu0 %v1580
        %1638 = vmatprep.subr.mxu0 0.0
        %1639 = vmatpush1.msra.mxu0 %v1581
        %1640 = vmatprep.subr.mxu0 0.0
        %1641 = vmatpush1.msra.mxu0 %v1582
        %1642 = vmatprep.subr.mxu0 0.0
        %1643 = vmatpush1.msra.mxu0 %v1583
        %1644 = vmatprep.subr.mxu0 0.0
        %1645 = vmatpush1.msra.mxu0 %v1584
        %1646 = vmatprep.subr.mxu0 0.0
        %1647 = vmatpush1.msra.mxu0 %v1585
        %1648 = vmatprep.subr.mxu0 0.0
        %1649 = vmatpush1.msra.mxu0 %v1586
        %1650 = vmatprep.subr.mxu0 0.0
        %1651 = vmatpush1.msra.mxu0 %v1587
        %1652 = vmatprep.subr.mxu0 0.0
        %1653 = vmatpush1.msra.mxu0 0.0
        %1654 = vmatprep.subr.mxu0 0.0
        %1655 = vmatpush1.msra.mxu0 0.0
        %1656 = vmatprep.subr.mxu0 0.0
        %1657 = vmatpush1.msra.mxu0 0.0
        %1658 = vmatprep.subr.mxu0 0.0
        %1659 = vmatpush1.msra.mxu0 0.0
        %1660 = vmatprep.subr.mxu0 0.0
        %1661 = vmatpush1.msra.mxu0 0.0
        %1662 = vmatprep.subr.mxu0 0.0
        %1663 = vmatpush1.msra.mxu0 0.0
        %1664 = vmatprep.subr.mxu0 0.0
        %1665 = vmatpush1.msra.mxu0 0.0
        %1666 = vmatprep.subr.mxu0 0.0
        %1667 = vmatpush1.msra.mxu0 0.0
        %1668 = vmatprep.subr.mxu0 0.0
        %1669 = vmatpush1.msra.mxu0 0.0
        %1670 = vmatprep.subr.mxu0 0.0
        %1671 = vmatpush1.msra.mxu0 0.0
        %1672 = vmatprep.subr.mxu0 0.0
        %1673 = vmatpush1.msra.mxu0 0.0
        %1674 = vmatprep.subr.mxu0 0.0
        %1675 = vmatpush1.msra.mxu0 0.0
        %1676 = vmatprep.subr.mxu0 0.0
        %1677 = vmatpush1.msra.mxu0 0.0
        %1678 = vmatprep.subr.mxu0 0.0
        %1679 = vmatpush1.msra.mxu0 0.0
        %1680 = vmatprep.subr.mxu0 0.0
        %1681 = vmatpush1.msra.mxu0 0.0
        %1682 = vmatprep.subr.mxu0 0.0
        %1683 = vmatpush1.msra.mxu0 0.0
        %1684 = vmatprep.mubr.f32.mxu0 0.0
        %1685 = vmatmul.mubr.f32.gmra.mrb[0].mxu0 %v1588
        %v1686 = vpop.f32.mrb[0].mxu0
        %v1687 = vadd.f32 0.0, %v1686
        %v1688 = vpop.f32.mrb[0].mxu0
        %1689 = vmatprep.mubr.f32.mxu0 0.0
        %1690 = vmatmul.mubr.f32.gmra.mrb[0].mxu0 %v1589
        %v1691 = vpop.f32.mrb[0].mxu0
        %v1692 = vadd.f32 0.0, %v1691
        %v1693 = vpop.f32.mrb[0].mxu0
        %1694 = vmatprep.mubr.f32.mxu0 0.0
        %1695 = vmatmul.mubr.f32.gmra.mrb[0].mxu0 %v1590
        %v1696 = vpop.f32.mrb[0].mxu0
        %v1697 = vadd.f32 0.0, %v1696
        %v1698 = vpop.f32.mrb[0].mxu0
        %1699 = vmatprep.mubr.f32.mxu0 0.0
        %1700 = vmatmul.mubr.f32.gmra.mrb[0].mxu0 %v1591
        %v1701 = vpop.f32.mrb[0].mxu0
        %v1702 = vadd.f32 0.0, %v1701
        %v1703 = vpop.f32.mrb[0].mxu0
        %1704 = vmatprep.mubr.f32.mxu0 0.0
        %1705 = vmatmul.mubr.f32.gmra.mrb[0].mxu0 %v1592
        %v1706 = vpop.f32.mrb[0].mxu0
        %v1707 = vadd.f32 0.0, %v1706
        %v1708 = vpop.f32.mrb[0].mxu0
        %1709 = vmatprep.mubr.f32.mxu0 0.0
        %1710 = vmatmul.mubr.f32.gmra.mrb[0].mxu0 %v1593
        %v1711 = vpop.f32.mrb[0].mxu0
        %v1712 = vadd.f32 0.0, %v1711
        %v1713 = vpop.f32.mrb[0].mxu0
        %1714 = vmatprep.mubr.f32.mxu0 0.0
        %1715 = vmatmul.mubr.f32.gmra.mrb[0].mxu0 %v1594
        %v1716 = vpop.f32.mrb[0].mxu0
        %v1717 = vadd.f32 0.0, %v1716
        %v1718 = vpop.f32.mrb[0].mxu0
        %1719 = vmatprep.mubr.f32.mxu0 0.0
        %1720 = vmatmul.mubr.f32.gmra.mrb[0].mxu0 %v1595
        %v1721 = vpop.f32.mrb[0].mxu0
        %v1722 = vadd.f32 0.0, %v1721
        %v1723 = vpop.f32.mrb[0].mxu0
        %1724 = vmatprep.mubr.f32.mxu0 0.0
        %1725 = vmatmul.mubr.f32.gmra.mrb[0].mxu0 %v1596
        %v1726 = vpop.f32.mrb[0].mxu0
        %v1727 = vadd.f32 0.0, %v1726
        %v1728 = vpop.f32.mrb[0].mxu0
        %1729 = vmatprep.mubr.f32.mxu0 0.0
        %1730 = vmatmul.mubr.f32.gmra.mrb[0].mxu0 %v1597
        %v1731 = vpop.f32.mrb[0].mxu0
        %v1732 = vadd.f32 0.0, %v1731
        %v1733 = vpop.f32.mrb[0].mxu0
        %1734 = vmatprep.mubr.f32.mxu0 0.0
        %1735 = vmatmul.mubr.f32.gmra.mrb[0].mxu0 %v1598
        %v1736 = vpop.f32.mrb[0].mxu0
        %v1737 = vadd.f32 0.0, %v1736
        %v1738 = vpop.f32.mrb[0].mxu0
        %1739 = vmatprep.mubr.f32.mxu0 0.0
        %1740 = vmatmul.mubr.f32.gmra.mrb[0].mxu0 %v1599
        %v1741 = vpop.f32.mrb[0].mxu0
        %v1742 = vadd.f32 0.0, %v1741
        %v1743 = vpop.f32.mrb[0].mxu0
        %1744 = vmatprep.mubr.f32.mxu0 0.0
        %1745 = vmatmul.mubr.f32.gmra.mrb[0].mxu0 %v1600
        %v1746 = vpop.f32.mrb[0].mxu0
        %v1747 = vadd.f32 0.0, %v1746
        %v1748 = vpop.f32.mrb[0].mxu0
        %1749 = vmatprep.mubr.f32.mxu0 0.0
        %1750 = vmatmul.mubr.f32.gmra.mrb[0].mxu0 %v1601
        %v1751 = vpop.f32.mrb[0].mxu0
        %v1752 = vadd.f32 0.0, %v1751
        %v1753 = vpop.f32.mrb[0].mxu0
        %1754 = vmatprep.mubr.f32.mxu0 0.0
        %1755 = vmatmul.mubr.f32.gmra.mrb[0].mxu0 %v1602
        %v1756 = vpop.f32.mrb[0].mxu0
        %v1757 = vadd.f32 0.0, %v1756
        %v1758 = vpop.f32.mrb[0].mxu0
        %1759 = vmatprep.mubr.f32.mxu0 0.0
        %1760 = vmatmul.mubr.f32.gmra.mrb[0].mxu0 %v1603
        %v1761 = vpop.f32.mrb[0].mxu0
        %v1762 = vadd.f32 0.0, %v1761
        %v1763 = vpop.f32.mrb[0].mxu0
        %1764 = vmatprep.mubr.f32.mxu0 0.0
        %1765 = vmatmul.mubr.f32.gmra.mrb[0].mxu0 %v1604
        %v1766 = vpop.f32.mrb[0].mxu0
        %v1767 = vadd.f32 0.0, %v1766
        %v1768 = vpop.f32.mrb[0].mxu0
        %1769 = vmatprep.mubr.f32.mxu0 0.0
        %1770 = vmatmul.mubr.f32.gmra.mrb[0].mxu0 %v1605
        %v1771 = vpop.f32.mrb[0].mxu0
        %v1772 = vadd.f32 0.0, %v1771
        %v1773 = vpop.f32.mrb[0].mxu0
        %1774 = vmatprep.mubr.f32.mxu0 0.0
        %1775 = vmatmul.mubr.f32.gmra.mrb[0].mxu0 %v1606
        %v1776 = vpop.f32.mrb[0].mxu0
        %v1777 = vadd.f32 0.0, %v1776
        %v1778 = vpop.f32.mrb[0].mxu0
        %1779 = vmatprep.mubr.f32.mxu0 0.0
        %1780 = vmatmul.mubr.f32.gmra.mrb[0].mxu0 %v1607
        %v1781 = vpop.f32.mrb[0].mxu0
        %v1782 = vadd.f32 0.0, %v1781
        %v1783 = vpop.f32.mrb[0].mxu0
        %1784 = vmatprep.mubr.f32.mxu0 0.0
        %1785 = vmatmul.mubr.f32.gmra.mrb[0].mxu0 %v1608
        %v1786 = vpop.f32.mrb[0].mxu0
        %v1787 = vadd.f32 0.0, %v1786
        %v1788 = vpop.f32.mrb[0].mxu0
        %1789 = vmatprep.mubr.f32.mxu0 0.0
        %1790 = vmatmul.mubr.f32.gmra.mrb[0].mxu0 %v1609
        %v1791 = vpop.f32.mrb[0].mxu0
        %v1792 = vadd.f32 0.0, %v1791
        %v1793 = vpop.f32.mrb[0].mxu0
        %1794 = vmatprep.mubr.f32.mxu0 0.0
        %1795 = vmatmul.mubr.f32.gmra.mrb[0].mxu0 %v1610
        %v1796 = vpop.f32.mrb[0].mxu0
        %v1797 = vadd.f32 0.0, %v1796
        %v1798 = vpop.f32.mrb[0].mxu0
        %1799 = vmatprep.mubr.f32.mxu0 0.0
        %1800 = vmatmul.mubr.f32.gmra.mrb[0].mxu0 %v1611
        %v1801 = vpop.f32.mrb[0].mxu0
        %v1802 = vadd.f32 0.0, %v1801
        %v1803 = vpop.f32.mrb[0].mxu0
        %1804 = vmatprep.mubr.f32.mxu0 0.0
        %1805 = vmatmul.mubr.f32.gmra.mrb[0].mxu0 %v1612
        %v1806 = vpop.f32.mrb[0].mxu0
        %v1807 = vadd.f32 0.0, %v1806
        %v1808 = vpop.f32.mrb[0].mxu0
        %1809 = vmatprep.mubr.f32.mxu0 0.0
        %1810 = vmatmul.mubr.f32.gmra.mrb[0].mxu0 %v1613
        %v1811 = vpop.f32.mrb[0].mxu0
        %v1812 = vadd.f32 0.0, %v1811
        %v1813 = vpop.f32.mrb[0].mxu0
        %1814 = vmatprep.mubr.f32.mxu0 0.0
        %1815 = vmatmul.mubr.f32.gmra.mrb[0].mxu0 %v1614
        %v1816 = vpop.f32.mrb[0].mxu0
        %v1817 = vadd.f32 0.0, %v1816
        %v1818 = vpop.f32.mrb[0].mxu0
        %1819 = vmatprep.mubr.f32.mxu0 0.0
        %1820 = vmatmul.mubr.f32.gmra.mrb[0].mxu0 %v1615
        %v1821 = vpop.f32.mrb[0].mxu0
        %v1822 = vadd.f32 0.0, %v1821
        %v1823 = vpop.f32.mrb[0].mxu0
        %1824 = vmatprep.mubr.f32.mxu0 0.0
        %1825 = vmatmul.mubr.f32.gmra.mrb[0].mxu0 %v1616
        %v1826 = vpop.f32.mrb[0].mxu0
        %v1827 = vadd.f32 0.0, %v1826
        %v1828 = vpop.f32.mrb[0].mxu0
        %1829 = vmatprep.mubr.f32.mxu0 0.0
        %1830 = vmatmul.mubr.f32.gmra.mrb[0].mxu0 %v1617
        %v1831 = vpop.f32.mrb[0].mxu0
        %v1832 = vadd.f32 0.0, %v1831
        %v1833 = vpop.f32.mrb[0].mxu0
        %1834 = vmatprep.mubr.f32.mxu0 0.0
        %1835 = vmatmul.mubr.f32.gmra.mrb[0].mxu0 %v1618
        %v1836 = vpop.f32.mrb[0].mxu0
        %v1837 = vadd.f32 0.0, %v1836
        %v1838 = vpop.f32.mrb[0].mxu0
        %1839 = vmatprep.mubr.f32.mxu0 0.0
        %1840 = vmatmul.mubr.f32.gmra.mrb[0].mxu0 %v1619
        %v1841 = vpop.f32.mrb[0].mxu0
        %v1842 = vadd.f32 0.0, %v1841
        %v1843 = vpop.f32.mrb[0].mxu0
        %1844 = vdwg.mxu0
        %v1845 = vadd.f32 %v1268, %v1687
        %v1846 = vadd.f32 %v1273, %v1692
        %v1847 = vadd.f32 %v1278, %v1697
        %v1848 = vadd.f32 %v1283, %v1702
        %v1849 = vadd.f32 %v1288, %v1707
        %v1850 = vadd.f32 %v1293, %v1712
        %v1851 = vadd.f32 %v1298, %v1717
        %v1852 = vadd.f32 %v1303, %v1722
        %v1853 = vadd.f32 %v1308, %v1727
        %v1854 = vadd.f32 %v1313, %v1732
        %v1855 = vadd.f32 %v1318, %v1737
        %v1856 = vadd.f32 %v1323, %v1742
        %v1857 = vadd.f32 %v1328, %v1747
        %v1858 = vadd.f32 %v1333, %v1752
        %v1859 = vadd.f32 %v1338, %v1757
        %v1860 = vadd.f32 %v1343, %v1762
        %v1861 = vld [vmem:[%s6] sm:$0xff]
        %v1862 = vld [vmem:[%s6 + $0x8] sm:$0xff]
        %v1863 = vld [vmem:[%s6 + $0x10] sm:$0xff]
        %v1864 = vld [vmem:[%s6 + $0x18] sm:$0xff]
        %v1865 = vld [vmem:[%s6 + $0x20] sm:$0xff]
        %v1866 = vld [vmem:[%s6 + $0x28] sm:$0xff]
        %v1867 = vld [vmem:[%s6 + $0x30] sm:$0xff]
        %v1868 = vld [vmem:[%s6 + $0x38] sm:$0xff]
        %v1869 = vld [vmem:[%s6 + $0x40] sm:$0xff]
        %v1870 = vld [vmem:[%s6 + $0x48] sm:$0xff]
        %v1871 = vld [vmem:[%s6 + $0x50] sm:$0xff]
        %v1872 = vld [vmem:[%s6 + $0x58] sm:$0xff]
        %v1873 = vld [vmem:[%s6 + $0x60] sm:$0xff]
        %v1874 = vld [vmem:[%s6 + $0x68] sm:$0xff]
        %v1875 = vld [vmem:[%s6 + $0x70] sm:$0xff]
        %v1876 = vld [vmem:[%s6 + $0x78] sm:$0xff]
        %1878 = vset.pattern.permute.xlu0 0
        %1879 = vperm.xlu0 %1878, %v1861
        %v1880 = vpop.permute.xlu0 %1879
        %1883 = vset.pattern.permute.xlu0 0
        %1884 = vperm.xlu0 %1883, %v1862
        %v1885 = vpop.permute.xlu0 %1884
        %1888 = vset.pattern.permute.xlu0 0
        %1889 = vperm.xlu0 %1888, %v1863
        %v1890 = vpop.permute.xlu0 %1889
        %1893 = vset.pattern.permute.xlu0 0
        %1894 = vperm.xlu0 %1893, %v1864
        %v1895 = vpop.permute.xlu0 %1894
        %1898 = vset.pattern.permute.xlu0 0
        %1899 = vperm.xlu0 %1898, %v1865
        %v1900 = vpop.permute.xlu0 %1899
        %1903 = vset.pattern.permute.xlu0 0
        %1904 = vperm.xlu0 %1903, %v1866
        %v1905 = vpop.permute.xlu0 %1904
        %1908 = vset.pattern.permute.xlu0 0
        %1909 = vperm.xlu0 %1908, %v1867
        %v1910 = vpop.permute.xlu0 %1909
        %1913 = vset.pattern.permute.xlu0 0
        %1914 = vperm.xlu0 %1913, %v1868
        %v1915 = vpop.permute.xlu0 %1914
        %1918 = vset.pattern.permute.xlu0 0
        %1919 = vperm.xlu0 %1918, %v1869
        %v1920 = vpop.permute.xlu0 %1919
        %1923 = vset.pattern.permute.xlu0 0
        %1924 = vperm.xlu0 %1923, %v1870
        %v1925 = vpop.permute.xlu0 %1924
        %1928 = vset.pattern.permute.xlu0 0
        %1929 = vperm.xlu0 %1928, %v1871
        %v1930 = vpop.permute.xlu0 %1929
        %1933 = vset.pattern.permute.xlu0 0
        %1934 = vperm.xlu0 %1933, %v1872
        %v1935 = vpop.permute.xlu0 %1934
        %1938 = vset.pattern.permute.xlu0 0
        %1939 = vperm.xlu0 %1938, %v1873
        %v1940 = vpop.permute.xlu0 %1939
        %1943 = vset.pattern.permute.xlu0 0
        %1944 = vperm.xlu0 %1943, %v1874
        %v1945 = vpop.permute.xlu0 %1944
        %1948 = vset.pattern.permute.xlu0 0
        %1949 = vperm.xlu0 %1948, %v1875
        %v1950 = vpop.permute.xlu0 %1949
        %1953 = vset.pattern.permute.xlu0 0
        %1954 = vperm.xlu0 %1953, %v1876
        %v1955 = vpop.permute.xlu0 %1954
        %v1957 = vadd.f32 %v1845, %v1880
        %v1958 = vadd.f32 %v1846, %v1885
        %v1959 = vadd.f32 %v1847, %v1890
        %v1960 = vadd.f32 %v1848, %v1895
        %v1961 = vadd.f32 %v1849, %v1900
        %v1962 = vadd.f32 %v1850, %v1905
        %v1963 = vadd.f32 %v1851, %v1910
        %v1964 = vadd.f32 %v1852, %v1915
        %v1965 = vadd.f32 %v1853, %v1920
        %v1966 = vadd.f32 %v1854, %v1925
        %v1967 = vadd.f32 %v1855, %v1930
        %v1968 = vadd.f32 %v1856, %v1935
        %v1969 = vadd.f32 %v1857, %v1940
        %v1970 = vadd.f32 %v1858, %v1945
        %v1971 = vadd.f32 %v1859, %v1950
        %v1972 = vadd.f32 %v1860, %v1955
        %s1973 = sld [smem:[#allocation3 + $0x2]]
        %vm1974 = vcmp.ge.f32.partialorder %v1957, 0.0
        %vm1975 = vcmp.ge.f32.partialorder %v1958, 0.0
        %vm1976 = vcmp.ge.f32.partialorder %v1959, 0.0
        %vm1977 = vcmp.ge.f32.partialorder %v1960, 0.0
        %vm1978 = vcmp.ge.f32.partialorder %v1961, 0.0
        %vm1979 = vcmp.ge.f32.partialorder %v1962, 0.0
        %vm1980 = vcmp.ge.f32.partialorder %v1963, 0.0
        %vm1981 = vcmp.ge.f32.partialorder %v1964, 0.0
        %vm1982 = vcmp.ge.f32.partialorder %v1965, 0.0
        %vm1983 = vcmp.ge.f32.partialorder %v1966, 0.0
        %vm1984 = vcmp.ge.f32.partialorder %v1967, 0.0
        %vm1985 = vcmp.ge.f32.partialorder %v1968, 0.0
        %vm1986 = vcmp.ge.f32.partialorder %v1969, 0.0
        %vm1987 = vcmp.ge.f32.partialorder %v1970, 0.0
        %vm1988 = vcmp.ge.f32.partialorder %v1971, 0.0
        %vm1989 = vcmp.ge.f32.partialorder %v1972, 0.0
        %v1990 = vstv %s1973
        %v1991 = vmul.f32 %v1990, %v1957
        %v1992 = vmul.f32 %v1990, %v1958
        %v1993 = vmul.f32 %v1990, %v1959
        %v1994 = vmul.f32 %v1990, %v1960
        %v1995 = vmul.f32 %v1990, %v1961
        %v1996 = vmul.f32 %v1990, %v1962
        %v1997 = vmul.f32 %v1990, %v1963
        %v1998 = vmul.f32 %v1990, %v1964
        %v1999 = vmul.f32 %v1990, %v1965
        %v2000 = vmul.f32 %v1990, %v1966
        %v2001 = vmul.f32 %v1990, %v1967
        %v2002 = vmul.f32 %v1990, %v1968
        %v2003 = vmul.f32 %v1990, %v1969
        %v2004 = vmul.f32 %v1990, %v1970
        %v2005 = vmul.f32 %v1990, %v1971
        %v2006 = vmul.f32 %v1990, %v1972
        %v2007 = vsel %vm1974, %v1957, %v1991
        %v2008 = vsel %vm1975, %v1958, %v1992
        %v2009 = vsel %vm1976, %v1959, %v1993
        %v2010 = vsel %vm1977, %v1960, %v1994
        %v2011 = vsel %vm1978, %v1961, %v1995
        %v2012 = vsel %vm1979, %v1962, %v1996
        %v2013 = vsel %vm1980, %v1963, %v1997
        %v2014 = vsel %vm1981, %v1964, %v1998
        %v2015 = vsel %vm1982, %v1965, %v1999
        %v2016 = vsel %vm1983, %v1966, %v2000
        %v2017 = vsel %vm1984, %v1967, %v2001
        %v2018 = vsel %vm1985, %v1968, %v2002
        %v2019 = vsel %vm1986, %v1969, %v2003
        %v2020 = vsel %vm1987, %v1970, %v2004
        %v2021 = vsel %vm1988, %v1971, %v2005
        %v2022 = vsel %vm1989, %v1972, %v2006
        %v2023 = vadd.f32 %v1348, %v1767
        %v2024 = vadd.f32 %v1353, %v1772
        %v2025 = vadd.f32 %v1358, %v1777
        %v2026 = vadd.f32 %v1363, %v1782
        %v2027 = vadd.f32 %v1368, %v1787
        %v2028 = vadd.f32 %v1373, %v1792
        %v2029 = vadd.f32 %v1378, %v1797
        %v2030 = vadd.f32 %v1383, %v1802
        %v2031 = vadd.f32 %v1388, %v1807
        %v2032 = vadd.f32 %v1393, %v1812
        %v2033 = vadd.f32 %v1398, %v1817
        %v2034 = vadd.f32 %v1403, %v1822
        %v2035 = vadd.f32 %v1408, %v1827
        %v2036 = vadd.f32 %v1413, %v1832
        %v2037 = vadd.f32 %v1418, %v1837
        %v2038 = vadd.f32 %v1423, %v1842
        %v2039 = vld [vmem:[%s7] sm:$0xff]
        %v2040 = vld [vmem:[%s7 + $0x8] sm:$0xff]
        %v2041 = vld [vmem:[%s7 + $0x10] sm:$0xff]
        %v2042 = vld [vmem:[%s7 + $0x18] sm:$0xff]
        %v2043 = vld [vmem:[%s7 + $0x20] sm:$0xff]
        %v2044 = vld [vmem:[%s7 + $0x28] sm:$0xff]
        %v2045 = vld [vmem:[%s7 + $0x30] sm:$0xff]
        %v2046 = vld [vmem:[%s7 + $0x38] sm:$0xff]
        %v2047 = vld [vmem:[%s7 + $0x40] sm:$0xff]
        %v2048 = vld [vmem:[%s7 + $0x48] sm:$0xff]
        %v2049 = vld [vmem:[%s7 + $0x50] sm:$0xff]
        %v2050 = vld [vmem:[%s7 + $0x58] sm:$0xff]
        %v2051 = vld [vmem:[%s7 + $0x60] sm:$0xff]
        %v2052 = vld [vmem:[%s7 + $0x68] sm:$0xff]
        %v2053 = vld [vmem:[%s7 + $0x70] sm:$0xff]
        %v2054 = vld [vmem:[%s7 + $0x78] sm:$0xff]
        %2055 = vmatprep.subr.mxu0 0.0
        %2056 = vmatpush1.msra.mxu0 %v2007
        %2057 = vmatprep.subr.mxu0 0.0
        %2058 = vmatpush1.msra.mxu0 %v2008
        %2059 = vmatprep.subr.mxu0 0.0
        %2060 = vmatpush1.msra.mxu0 %v2009
        %2061 = vmatprep.subr.mxu0 0.0
        %2062 = vmatpush1.msra.mxu0 %v2010
        %2063 = vmatprep.subr.mxu0 0.0
        %2064 = vmatpush1.msra.mxu0 %v2011
        %2065 = vmatprep.subr.mxu0 0.0
        %2066 = vmatpush1.msra.mxu0 %v2012
        %2067 = vmatprep.subr.mxu0 0.0
        %2068 = vmatpush1.msra.mxu0 %v2013
        %2069 = vmatprep.subr.mxu0 0.0
        %2070 = vmatpush1.msra.mxu0 %v2014
        %2071 = vmatprep.subr.mxu0 0.0
        %2072 = vmatpush1.msra.mxu0 %v2015
        %2073 = vmatprep.subr.mxu0 0.0
        %2074 = vmatpush1.msra.mxu0 %v2016
        %2075 = vmatprep.subr.mxu0 0.0
        %2076 = vmatpush1.msra.mxu0 %v2017
        %2077 = vmatprep.subr.mxu0 0.0
        %2078 = vmatpush1.msra.mxu0 %v2018
        %2079 = vmatprep.subr.mxu0 0.0
        %2080 = vmatpush1.msra.mxu0 %v2019
        %2081 = vmatprep.subr.mxu0 0.0
        %2082 = vmatpush1.msra.mxu0 %v2020
        %2083 = vmatprep.subr.mxu0 0.0
        %2084 = vmatpush1.msra.mxu0 %v2021
        %2085 = vmatprep.subr.mxu0 0.0
        %2086 = vmatpush1.msra.mxu0 %v2022
        %2087 = vmatprep.subr.mxu0 0.0
        %2088 = vmatpush1.msra.mxu0 0.0
        %2089 = vmatprep.subr.mxu0 0.0
        %2090 = vmatpush1.msra.mxu0 0.0
        %2091 = vmatprep.subr.mxu0 0.0
        %2092 = vmatpush1.msra.mxu0 0.0
        %2093 = vmatprep.subr.mxu0 0.0
        %2094 = vmatpush1.msra.mxu0 0.0
        %2095 = vmatprep.subr.mxu0 0.0
        %2096 = vmatpush1.msra.mxu0 0.0
        %2097 = vmatprep.subr.mxu0 0.0
        %2098 = vmatpush1.msra.mxu0 0.0
        %2099 = vmatprep.subr.mxu0 0.0
        %2100 = vmatpush1.msra.mxu0 0.0
        %2101 = vmatprep.subr.mxu0 0.0
        %2102 = vmatpush1.msra.mxu0 0.0
        %2103 = vmatprep.subr.mxu0 0.0
        %2104 = vmatpush1.msra.mxu0 0.0
        %2105 = vmatprep.subr.mxu0 0.0
        %2106 = vmatpush1.msra.mxu0 0.0
        %2107 = vmatprep.subr.mxu0 0.0
        %2108 = vmatpush1.msra.mxu0 0.0
        %2109 = vmatprep.subr.mxu0 0.0
        %2110 = vmatpush1.msra.mxu0 0.0
        %2111 = vmatprep.subr.mxu0 0.0
        %2112 = vmatpush1.msra.mxu0 0.0
        %2113 = vmatprep.subr.mxu0 0.0
        %2114 = vmatpush1.msra.mxu0 0.0
        %2115 = vmatprep.subr.mxu0 0.0
        %2116 = vmatpush1.msra.mxu0 0.0
        %2117 = vmatprep.subr.mxu0 0.0
        %2118 = vmatpush1.msra.mxu0 0.0
        %2119 = vmatprep.mubr.f32.mxu0 0.0
        %2120 = vmatmul.mubr.f32.gmra.mrb[0].mxu0 %v2039
        %v2121 = vpop.f32.mrb[0].mxu0
        %v2122 = vadd.f32 0.0, %v2121
        %v2123 = vpop.f32.mrb[0].mxu0
        %2124 = vmatprep.mubr.f32.mxu0 0.0
        %2125 = vmatmul.mubr.f32.gmra.mrb[0].mxu0 %v2040
        %v2126 = vpop.f32.mrb[0].mxu0
        %v2127 = vadd.f32 0.0, %v2126
        %v2128 = vpop.f32.mrb[0].mxu0
        %2129 = vmatprep.mubr.f32.mxu0 0.0
        %2130 = vmatmul.mubr.f32.gmra.mrb[0].mxu0 %v2041
        %v2131 = vpop.f32.mrb[0].mxu0
        %v2132 = vadd.f32 0.0, %v2131
        %v2133 = vpop.f32.mrb[0].mxu0
        %2134 = vmatprep.mubr.f32.mxu0 0.0
        %2135 = vmatmul.mubr.f32.gmra.mrb[0].mxu0 %v2042
        %v2136 = vpop.f32.mrb[0].mxu0
        %v2137 = vadd.f32 0.0, %v2136
        %v2138 = vpop.f32.mrb[0].mxu0
        %2139 = vmatprep.mubr.f32.mxu0 0.0
        %2140 = vmatmul.mubr.f32.gmra.mrb[0].mxu0 %v2043
        %v2141 = vpop.f32.mrb[0].mxu0
        %v2142 = vadd.f32 0.0, %v2141
        %v2143 = vpop.f32.mrb[0].mxu0
        %2144 = vmatprep.mubr.f32.mxu0 0.0
        %2145 = vmatmul.mubr.f32.gmra.mrb[0].mxu0 %v2044
        %v2146 = vpop.f32.mrb[0].mxu0
        %v2147 = vadd.f32 0.0, %v2146
        %v2148 = vpop.f32.mrb[0].mxu0
        %2149 = vmatprep.mubr.f32.mxu0 0.0
        %2150 = vmatmul.mubr.f32.gmra.mrb[0].mxu0 %v2045
        %v2151 = vpop.f32.mrb[0].mxu0
        %v2152 = vadd.f32 0.0, %v2151
        %v2153 = vpop.f32.mrb[0].mxu0
        %2154 = vmatprep.mubr.f32.mxu0 0.0
        %2155 = vmatmul.mubr.f32.gmra.mrb[0].mxu0 %v2046
        %v2156 = vpop.f32.mrb[0].mxu0
        %v2157 = vadd.f32 0.0, %v2156
        %v2158 = vpop.f32.mrb[0].mxu0
        %2159 = vmatprep.mubr.f32.mxu0 0.0
        %2160 = vmatmul.mubr.f32.gmra.mrb[0].mxu0 %v2047
        %v2161 = vpop.f32.mrb[0].mxu0
        %v2162 = vadd.f32 0.0, %v2161
        %v2163 = vpop.f32.mrb[0].mxu0
        %2164 = vmatprep.mubr.f32.mxu0 0.0
        %2165 = vmatmul.mubr.f32.gmra.mrb[0].mxu0 %v2048
        %v2166 = vpop.f32.mrb[0].mxu0
        %v2167 = vadd.f32 0.0, %v2166
        %v2168 = vpop.f32.mrb[0].mxu0
        %2169 = vmatprep.mubr.f32.mxu0 0.0
        %2170 = vmatmul.mubr.f32.gmra.mrb[0].mxu0 %v2049
        %v2171 = vpop.f32.mrb[0].mxu0
        %v2172 = vadd.f32 0.0, %v2171
        %v2173 = vpop.f32.mrb[0].mxu0
        %2174 = vmatprep.mubr.f32.mxu0 0.0
        %2175 = vmatmul.mubr.f32.gmra.mrb[0].mxu0 %v2050
        %v2176 = vpop.f32.mrb[0].mxu0
        %v2177 = vadd.f32 0.0, %v2176
        %v2178 = vpop.f32.mrb[0].mxu0
        %2179 = vmatprep.mubr.f32.mxu0 0.0
        %2180 = vmatmul.mubr.f32.gmra.mrb[0].mxu0 %v2051
        %v2181 = vpop.f32.mrb[0].mxu0
        %v2182 = vadd.f32 0.0, %v2181
        %v2183 = vpop.f32.mrb[0].mxu0
        %2184 = vmatprep.mubr.f32.mxu0 0.0
        %2185 = vmatmul.mubr.f32.gmra.mrb[0].mxu0 %v2052
        %v2186 = vpop.f32.mrb[0].mxu0
        %v2187 = vadd.f32 0.0, %v2186
        %v2188 = vpop.f32.mrb[0].mxu0
        %2189 = vmatprep.mubr.f32.mxu0 0.0
        %2190 = vmatmul.mubr.f32.gmra.mrb[0].mxu0 %v2053
        %v2191 = vpop.f32.mrb[0].mxu0
        %v2192 = vadd.f32 0.0, %v2191
        %v2193 = vpop.f32.mrb[0].mxu0
        %2194 = vmatprep.mubr.f32.mxu0 0.0
        %2195 = vmatmul.mubr.f32.gmra.mrb[0].mxu0 %v2054
        %v2196 = vpop.f32.mrb[0].mxu0
        %v2197 = vadd.f32 0.0, %v2196
        %v2198 = vpop.f32.mrb[0].mxu0
        %2199 = vdwg.mxu0
        %v2200 = vadd.f32 %v2023, %v2122
        %v2201 = vadd.f32 %v2024, %v2127
        %v2202 = vadd.f32 %v2025, %v2132
        %v2203 = vadd.f32 %v2026, %v2137
        %v2204 = vadd.f32 %v2027, %v2142
        %v2205 = vadd.f32 %v2028, %v2147
        %v2206 = vadd.f32 %v2029, %v2152
        %v2207 = vadd.f32 %v2030, %v2157
        %v2208 = vadd.f32 %v2031, %v2162
        %v2209 = vadd.f32 %v2032, %v2167
        %v2210 = vadd.f32 %v2033, %v2172
        %v2211 = vadd.f32 %v2034, %v2177
        %v2212 = vadd.f32 %v2035, %v2182
        %v2213 = vadd.f32 %v2036, %v2187
        %v2214 = vadd.f32 %v2037, %v2192
        %v2215 = vadd.f32 %v2038, %v2197
        %v2216 = vld [vmem:[%s8] sm:$0xff]
        %v2217 = vld [vmem:[%s8 + $0x8] sm:$0xff]
        %v2218 = vld [vmem:[%s8 + $0x10] sm:$0xff]
        %v2219 = vld [vmem:[%s8 + $0x18] sm:$0xff]
        %v2220 = vld [vmem:[%s8 + $0x20] sm:$0xff]
        %v2221 = vld [vmem:[%s8 + $0x28] sm:$0xff]
        %v2222 = vld [vmem:[%s8 + $0x30] sm:$0xff]
        %v2223 = vld [vmem:[%s8 + $0x38] sm:$0xff]
        %v2224 = vld [vmem:[%s8 + $0x40] sm:$0xff]
        %v2225 = vld [vmem:[%s8 + $0x48] sm:$0xff]
        %v2226 = vld [vmem:[%s8 + $0x50] sm:$0xff]
        %v2227 = vld [vmem:[%s8 + $0x58] sm:$0xff]
        %v2228 = vld [vmem:[%s8 + $0x60] sm:$0xff]
        %v2229 = vld [vmem:[%s8 + $0x68] sm:$0xff]
        %v2230 = vld [vmem:[%s8 + $0x70] sm:$0xff]
        %v2231 = vld [vmem:[%s8 + $0x78] sm:$0xff]
        %2233 = vset.pattern.permute.xlu0 0
        %2234 = vperm.xlu0 %2233, %v2216
        %v2235 = vpop.permute.xlu0 %2234
        %2238 = vset.pattern.permute.xlu0 0
        %2239 = vperm.xlu0 %2238, %v2217
        %v2240 = vpop.permute.xlu0 %2239
        %2243 = vset.pattern.permute.xlu0 0
        %2244 = vperm.xlu0 %2243, %v2218
        %v2245 = vpop.permute.xlu0 %2244
        %2248 = vset.pattern.permute.xlu0 0
        %2249 = vperm.xlu0 %2248, %v2219
        %v2250 = vpop.permute.xlu0 %2249
        %2253 = vset.pattern.permute.xlu0 0
        %2254 = vperm.xlu0 %2253, %v2220
        %v2255 = vpop.permute.xlu0 %2254
        %2258 = vset.pattern.permute.xlu0 0
        %2259 = vperm.xlu0 %2258, %v2221
        %v2260 = vpop.permute.xlu0 %2259
        %2263 = vset.pattern.permute.xlu0 0
        %2264 = vperm.xlu0 %2263, %v2222
        %v2265 = vpop.permute.xlu0 %2264
        %2268 = vset.pattern.permute.xlu0 0
        %2269 = vperm.xlu0 %2268, %v2223
        %v2270 = vpop.permute.xlu0 %2269
        %2273 = vset.pattern.permute.xlu0 0
        %2274 = vperm.xlu0 %2273, %v2224
        %v2275 = vpop.permute.xlu0 %2274
        %2278 = vset.pattern.permute.xlu0 0
        %2279 = vperm.xlu0 %2278, %v2225
        %v2280 = vpop.permute.xlu0 %2279
        %2283 = vset.pattern.permute.xlu0 0
        %2284 = vperm.xlu0 %2283, %v2226
        %v2285 = vpop.permute.xlu0 %2284
        %2288 = vset.pattern.permute.xlu0 0
        %2289 = vperm.xlu0 %2288, %v2227
        %v2290 = vpop.permute.xlu0 %2289
        %2293 = vset.pattern.permute.xlu0 0
        %2294 = vperm.xlu0 %2293, %v2228
        %v2295 = vpop.permute.xlu0 %2294
        %2298 = vset.pattern.permute.xlu0 0
        %2299 = vperm.xlu0 %2298, %v2229
        %v2300 = vpop.permute.xlu0 %2299
        %2303 = vset.pattern.permute.xlu0 0
        %2304 = vperm.xlu0 %2303, %v2230
        %v2305 = vpop.permute.xlu0 %2304
        %2308 = vset.pattern.permute.xlu0 0
        %2309 = vperm.xlu0 %2308, %v2231
        %v2310 = vpop.permute.xlu0 %2309
        %v2312 = vadd.f32 %v2200, %v2235
        %v2313 = vadd.f32 %v2201, %v2240
        %v2314 = vadd.f32 %v2202, %v2245
        %v2315 = vadd.f32 %v2203, %v2250
        %v2316 = vadd.f32 %v2204, %v2255
        %v2317 = vadd.f32 %v2205, %v2260
        %v2318 = vadd.f32 %v2206, %v2265
        %v2319 = vadd.f32 %v2207, %v2270
        %v2320 = vadd.f32 %v2208, %v2275
        %v2321 = vadd.f32 %v2209, %v2280
        %v2322 = vadd.f32 %v2210, %v2285
        %v2323 = vadd.f32 %v2211, %v2290
        %v2324 = vadd.f32 %v2212, %v2295
        %v2325 = vadd.f32 %v2213, %v2300
        %v2326 = vadd.f32 %v2214, %v2305
        %v2327 = vadd.f32 %v2215, %v2310
        %s2328 = sld [smem:[#allocation3 + $0x3]]
        %vm2329 = vcmp.ge.f32.partialorder %v2312, 0.0
        %vm2330 = vcmp.ge.f32.partialorder %v2313, 0.0
        %vm2331 = vcmp.ge.f32.partialorder %v2314, 0.0
        %vm2332 = vcmp.ge.f32.partialorder %v2315, 0.0
        %vm2333 = vcmp.ge.f32.partialorder %v2316, 0.0
        %vm2334 = vcmp.ge.f32.partialorder %v2317, 0.0
        %vm2335 = vcmp.ge.f32.partialorder %v2318, 0.0
        %vm2336 = vcmp.ge.f32.partialorder %v2319, 0.0
        %vm2337 = vcmp.ge.f32.partialorder %v2320, 0.0
        %vm2338 = vcmp.ge.f32.partialorder %v2321, 0.0
        %vm2339 = vcmp.ge.f32.partialorder %v2322, 0.0
        %vm2340 = vcmp.ge.f32.partialorder %v2323, 0.0
        %vm2341 = vcmp.ge.f32.partialorder %v2324, 0.0
        %vm2342 = vcmp.ge.f32.partialorder %v2325, 0.0
        %vm2343 = vcmp.ge.f32.partialorder %v2326, 0.0
        %vm2344 = vcmp.ge.f32.partialorder %v2327, 0.0
        %v2345 = vstv %s2328
        %v2346 = vmul.f32 %v2345, %v2312
        %v2347 = vmul.f32 %v2345, %v2313
        %v2348 = vmul.f32 %v2345, %v2314
        %v2349 = vmul.f32 %v2345, %v2315
        %v2350 = vmul.f32 %v2345, %v2316
        %v2351 = vmul.f32 %v2345, %v2317
        %v2352 = vmul.f32 %v2345, %v2318
        %v2353 = vmul.f32 %v2345, %v2319
        %v2354 = vmul.f32 %v2345, %v2320
        %v2355 = vmul.f32 %v2345, %v2321
        %v2356 = vmul.f32 %v2345, %v2322
        %v2357 = vmul.f32 %v2345, %v2323
        %v2358 = vmul.f32 %v2345, %v2324
        %v2359 = vmul.f32 %v2345, %v2325
        %v2360 = vmul.f32 %v2345, %v2326
        %v2361 = vmul.f32 %v2345, %v2327
        %v2362 = vsel %vm2329, %v2312, %v2346
        %v2363 = vsel %vm2330, %v2313, %v2347
        %v2364 = vsel %vm2331, %v2314, %v2348
        %v2365 = vsel %vm2332, %v2315, %v2349
        %v2366 = vsel %vm2333, %v2316, %v2350
        %v2367 = vsel %vm2334, %v2317, %v2351
        %v2368 = vsel %vm2335, %v2318, %v2352
        %v2369 = vsel %vm2336, %v2319, %v2353
        %v2370 = vsel %vm2337, %v2320, %v2354
        %v2371 = vsel %vm2338, %v2321, %v2355
        %v2372 = vsel %vm2339, %v2322, %v2356
        %v2373 = vsel %vm2340, %v2323, %v2357
        %v2374 = vsel %vm2341, %v2324, %v2358
        %v2375 = vsel %vm2342, %v2325, %v2359
        %v2376 = vsel %vm2343, %v2326, %v2360
        %v2377 = vsel %vm2344, %v2327, %v2361
        %2378 = vst [vmem:[%s461] sm:$0xff] %v993
        %2379 = vst [vmem:[%s461 + $0x8] sm:$0xff] %v994
        %2380 = vst [vmem:[%s461 + $0x10] sm:$0xff] %v995
        %2381 = vst [vmem:[%s461 + $0x18] sm:$0xff] %v1572
        %2382 = vst [vmem:[%s461 + $0x20] sm:$0xf] %v1573
        %2383 = vst [vmem:[%s461 + $0x24] sm:$0xff] %v2007
        %2384 = vst [vmem:[%s461 + $0x2c] sm:$0xf] %v2008
        %2385 = vst [vmem:[%s461 + $0x30] sm:$0xff] %v2362
        %2386 = vst [vmem:[%s461 + $0x38] sm:$0xf] %v2363
        %s2387 = scalar_lea.vmem %s461, 64 [#allocation5]
        %2388 = vst [vmem:[%s2387] sm:$0xff] %v997
        %2389 = vst [vmem:[%s2387 + $0x8] sm:$0xff] %v998
        %2390 = vst [vmem:[%s2387 + $0x10] sm:$0xff] %v999
        %2391 = vst [vmem:[%s2387 + $0x18] sm:$0xff] %v1574
        %2392 = vst [vmem:[%s2387 + $0x20] sm:$0xf] %v1575
        %2393 = vst [vmem:[%s2387 + $0x24] sm:$0xff] %v2009
        %2394 = vst [vmem:[%s2387 + $0x2c] sm:$0xf] %v2010
        %2395 = vst [vmem:[%s2387 + $0x30] sm:$0xff] %v2364
        %2396 = vst [vmem:[%s2387 + $0x38] sm:$0xf] %v2365
        %s2397 = scalar_lea.vmem %s461, 128 [#allocation5]
        %2398 = vst [vmem:[%s2397] sm:$0xff] %v1001
        %2399 = vst [vmem:[%s2397 + $0x8] sm:$0xff] %v1002
        %2400 = vst [vmem:[%s2397 + $0x10] sm:$0xff] %v1003
        %2401 = vst [vmem:[%s2397 + $0x18] sm:$0xff] %v1576
        %2402 = vst [vmem:[%s2397 + $0x20] sm:$0xf] %v1577
        %2403 = vst [vmem:[%s2397 + $0x24] sm:$0xff] %v2011
        %2404 = vst [vmem:[%s2397 + $0x2c] sm:$0xf] %v2012
        %2405 = vst [vmem:[%s2397 + $0x30] sm:$0xff] %v2366
        %2406 = vst [vmem:[%s2397 + $0x38] sm:$0xf] %v2367
        %s2407 = scalar_lea.vmem %s461, 192 [#allocation5]
        %2408 = vst [vmem:[%s2407] sm:$0xff] %v1005
        %2409 = vst [vmem:[%s2407 + $0x8] sm:$0xff] %v1006
        %2410 = vst [vmem:[%s2407 + $0x10] sm:$0xff] %v1007
        %2411 = vst [vmem:[%s2407 + $0x18] sm:$0xff] %v1578
        %2412 = vst [vmem:[%s2407 + $0x20] sm:$0xf] %v1579
        %2413 = vst [vmem:[%s2407 + $0x24] sm:$0xff] %v2013
        %2414 = vst [vmem:[%s2407 + $0x2c] sm:$0xf] %v2014
        %2415 = vst [vmem:[%s2407 + $0x30] sm:$0xff] %v2368
        %2416 = vst [vmem:[%s2407 + $0x38] sm:$0xf] %v2369
        %s2417 = scalar_lea.vmem %s461, 256 [#allocation5]
        %2418 = vst [vmem:[%s2417] sm:$0xff] %v1009
        %2419 = vst [vmem:[%s2417 + $0x8] sm:$0xff] %v1010
        %2420 = vst [vmem:[%s2417 + $0x10] sm:$0xff] %v1011
        %2421 = vst [vmem:[%s2417 + $0x18] sm:$0xff] %v1580
        %2422 = vst [vmem:[%s2417 + $0x20] sm:$0xf] %v1581
        %2423 = vst [vmem:[%s2417 + $0x24] sm:$0xff] %v2015
        %2424 = vst [vmem:[%s2417 + $0x2c] sm:$0xf] %v2016
        %2425 = vst [vmem:[%s2417 + $0x30] sm:$0xff] %v2370
        %2426 = vst [vmem:[%s2417 + $0x38] sm:$0xf] %v2371
        %s2427 = scalar_lea.vmem %s461, 320 [#allocation5]
        %2428 = vst [vmem:[%s2427] sm:$0xff] %v1013
        %2429 = vst [vmem:[%s2427 + $0x8] sm:$0xff] %v1014
        %2430 = vst [vmem:[%s2427 + $0x10] sm:$0xff] %v1015
        %2431 = vst [vmem:[%s2427 + $0x18] sm:$0xff] %v1582
        %2432 = vst [vmem:[%s2427 + $0x20] sm:$0xf] %v1583
        %2433 = vst [vmem:[%s2427 + $0x24] sm:$0xff] %v2017
        %2434 = vst [vmem:[%s2427 + $0x2c] sm:$0xf] %v2018
        %2435 = vst [vmem:[%s2427 + $0x30] sm:$0xff] %v2372
        %2436 = vst [vmem:[%s2427 + $0x38] sm:$0xf] %v2373
        %s2437 = scalar_lea.vmem %s461, 384 [#allocation5]
        %2438 = vst [vmem:[%s2437] sm:$0xff] %v1017
        %2439 = vst [vmem:[%s2437 + $0x8] sm:$0xff] %v1018
        %2440 = vst [vmem:[%s2437 + $0x10] sm:$0xff] %v1019
        %2441 = vst [vmem:[%s2437 + $0x18] sm:$0xff] %v1584
        %2442 = vst [vmem:[%s2437 + $0x20] sm:$0xf] %v1585
        %2443 = vst [vmem:[%s2437 + $0x24] sm:$0xff] %v2019
        %2444 = vst [vmem:[%s2437 + $0x2c] sm:$0xf] %v2020
        %2445 = vst [vmem:[%s2437 + $0x30] sm:$0xff] %v2374
        %2446 = vst [vmem:[%s2437 + $0x38] sm:$0xf] %v2375
        %s2447 = scalar_lea.vmem %s461, 448 [#allocation5]
        %2448 = vst [vmem:[%s2447] sm:$0xff] %v1021
        %2449 = vst [vmem:[%s2447 + $0x8] sm:$0xff] %v1022
        %2450 = vst [vmem:[%s2447 + $0x10] sm:$0xff] %v1023
        %2451 = vst [vmem:[%s2447 + $0x18] sm:$0xff] %v1586
        %2452 = vst [vmem:[%s2447 + $0x20] sm:$0xf] %v1587
        %2453 = vst [vmem:[%s2447 + $0x24] sm:$0xff] %v2021
        %2454 = vst [vmem:[%s2447 + $0x2c] sm:$0xf] %v2022
        %2455 = vst [vmem:[%s2447 + $0x30] sm:$0xff] %v2376
        %2456 = vst [vmem:[%s2447 + $0x38] sm:$0xf] %v2377
        %s2457 = sand.u32 %s245, 1
        %s2458 = sand.u32 %s245, 1
        %s2459 = smul.addr %s2458, 512
        %s2460 = scalar_lea.vmem [#allocation5], %s2459
        // Predicated region
        $region103: #{spectral_block_apply.1} parent=93 // pred_check
          %p2461 = pneg %p255
        $region104: #{spectral_block_apply.1} parent=93 // pred_check_branch
          %2463 = sbr.rel (%p2461) target = $region106
        $region105: #{spectral_block_apply.1} parent=93 // pred_region
          %s2464 = smul.addr %s22, 8
          %s2465 = scalar_lea.vmem %s10, %s2464
          // Predicated region
          $region107: #{spectral_block_apply.1} parent=105 // pred_check
            _
          $region108: #{spectral_block_apply.1} parent=105 // pred_check_branch
            %2467 = sbr.rel (0) target = $region110
          $region109: #{spectral_block_apply.1} parent=105 // pred_region
            // Predicated region
            $region111: #{spectral_block_apply.1} parent=109 // pred_check
              _
            $region112: #{spectral_block_apply.1} parent=109 // pred_check_branch
              %2469 = sbr.rel (0) target = $region114
            $region113: #{spectral_block_apply.1} parent=109 // pred_region
              // Predicated region
              $region126: #{spectral_block_apply.1} parent=113 // pred_check
                _
              $region127: #{spectral_block_apply.1} parent=113 // pred_check_branch
                %2610 = sbr.rel (0) target = $region129
              $region128: #{spectral_block_apply.1} parent=113 // pred_region
                loop: start=0, step=1, limit=1
                $region130: #{spectral_block_apply.1} parent=128 // loop_pre_header
                  _
                $region131: #{spectral_block_apply.1} parent=128 // loop_header
                  %s2612 = sphi 0, %s2616
                  %p2613 = scmp.ge.s32.totalorder %s2612, 1
                  %s2617 = sphi %s2460, %s2460
                  %s2618 = sphi %s2465, %s2465
                $region132: #{spectral_block_apply.1} parent=128 // loop_header_branch
                  %2615 = sbr.rel (%p2613) target = $region136
                $region133: #{spectral_block_apply.1} parent=128 // loop_body
                  %v2619 = vld [vmem:[%s2617] sm:$0xff]
                  %2620 = vst [vmem:[%s2618] sm:$0xff] %v2619
                  %v2621 = vld [vmem:[%s2617 + $0x8] sm:$0xff]
                  %2622 = vst [vmem:[%s2618 + $0x18] sm:$0xff] %v2621
                  %v2623 = vld [vmem:[%s2617 + $0x10] sm:$0xff]
                  %2624 = vst [vmem:[%s2618 + $0x30] sm:$0xff] %v2623
                  %v2625 = vld [vmem:[%s2617 + $0x18] sm:$0xff]
                  %2626 = vst [vmem:[%s2618 + $0x48] sm:$0xff] %v2625
                  %v2627 = vld [vmem:[%s2617 + $0x20] sm:$0xff]
                  %2628 = vst [vmem:[%s2618 + $0x60] sm:$0xff] %v2627
                  %v2629 = vld [vmem:[%s2617 + $0x28] sm:$0xff]
                  %2630 = vst [vmem:[%s2618 + $0x78] sm:$0xff] %v2629
                  %v2631 = vld [vmem:[%s2617 + $0x30] sm:$0xff]
                  %2632 = vst [vmem:[%s2618 + $0x90] sm:$0xff] %v2631
                  %v2633 = vld [vmem:[%s2617 + $0x38] sm:$0xff]
                  %2634 = vst [vmem:[%s2618 + $0xa8] sm:$0xff] %v2633
                  %v2635 = vld [vmem:[%s2617 + $0x40] sm:$0xff]
                  %2636 = vst [vmem:[%s2618 + $0xc0] sm:$0xff] %v2635
                  %v2637 = vld [vmem:[%s2617 + $0x48] sm:$0xff]
                  %2638 = vst [vmem:[%s2618 + $0xd8] sm:$0xff] %v2637
                  %v2639 = vld [vmem:[%s2617 + $0x50] sm:$0xff]
                  %2640 = vst [vmem:[%s2618 + $0xf0] sm:$0xff] %v2639
                  %v2641 = vld [vmem:[%s2617 + $0x58] sm:$0xff]
                  %2642 = vst [vmem:[%s2618 + $0x108] sm:$0xff] %v2641
                  %v2643 = vld [vmem:[%s2617 + $0x60] sm:$0xff]
                  %2644 = vst [vmem:[%s2618 + $0x120] sm:$0xff] %v2643
                  %v2645 = vld [vmem:[%s2617 + $0x68] sm:$0xff]
                  %2646 = vst [vmem:[%s2618 + $0x138] sm:$0xff] %v2645
                  %v2647 = vld [vmem:[%s2617 + $0x70] sm:$0xff]
                  %2648 = vst [vmem:[%s2618 + $0x150] sm:$0xff] %v2647
                  %v2649 = vld [vmem:[%s2617 + $0x78] sm:$0xff]
                  %2650 = vst [vmem:[%s2618 + $0x168] sm:$0xff] %v2649
                  %v2651 = vld [vmem:[%s2617 + $0x80] sm:$0xff]
                  %2652 = vst [vmem:[%s2618 + $0x180] sm:$0xff] %v2651
                  %v2653 = vld [vmem:[%s2617 + $0x88] sm:$0xff]
                  %2654 = vst [vmem:[%s2618 + $0x198] sm:$0xff] %v2653
                  %v2655 = vld [vmem:[%s2617 + $0x90] sm:$0xff]
                  %2656 = vst [vmem:[%s2618 + $0x1b0] sm:$0xff] %v2655
                  %v2657 = vld [vmem:[%s2617 + $0x98] sm:$0xff]
                  %2658 = vst [vmem:[%s2618 + $0x1c8] sm:$0xff] %v2657
                  %v2659 = vld [vmem:[%s2617 + $0xa0] sm:$0xff]
                  %2660 = vst [vmem:[%s2618 + $0x1e0] sm:$0xff] %v2659
                  %v2661 = vld [vmem:[%s2617 + $0xa8] sm:$0xff]
                  %2662 = vst [vmem:[%s2618 + $0x1f8] sm:$0xff] %v2661
                  %v2663 = vld [vmem:[%s2617 + $0xb0] sm:$0xff]
                  %2664 = vst [vmem:[%s2618 + $0x210] sm:$0xff] %v2663
                  %v2665 = vld [vmem:[%s2617 + $0xb8] sm:$0xff]
                  %2666 = vst [vmem:[%s2618 + $0x228] sm:$0xff] %v2665
                  %v2667 = vld [vmem:[%s2617 + $0xc0] sm:$0xff]
                  %2668 = vst [vmem:[%s2618 + $0x240] sm:$0xff] %v2667
                  %v2669 = vld [vmem:[%s2617 + $0xc8] sm:$0xff]
                  %2670 = vst [vmem:[%s2618 + $0x258] sm:$0xff] %v2669
                  %v2671 = vld [vmem:[%s2617 + $0xd0] sm:$0xff]
                  %2672 = vst [vmem:[%s2618 + $0x270] sm:$0xff] %v2671
                  %v2673 = vld [vmem:[%s2617 + $0xd8] sm:$0xff]
                  %2674 = vst [vmem:[%s2618 + $0x288] sm:$0xff] %v2673
                  %v2675 = vld [vmem:[%s2617 + $0xe0] sm:$0xff]
                  %2676 = vst [vmem:[%s2618 + $0x2a0] sm:$0xff] %v2675
                  %v2677 = vld [vmem:[%s2617 + $0xe8] sm:$0xff]
                  %2678 = vst [vmem:[%s2618 + $0x2b8] sm:$0xff] %v2677
                  %v2679 = vld [vmem:[%s2617 + $0xf0] sm:$0xff]
                  %2680 = vst [vmem:[%s2618 + $0x2d0] sm:$0xff] %v2679
                  %v2681 = vld [vmem:[%s2617 + $0xf8] sm:$0xff]
                  %2682 = vst [vmem:[%s2618 + $0x2e8] sm:$0xff] %v2681
                  %v2683 = vld [vmem:[%s2617 + $0x100] sm:$0xff]
                  %2684 = vst [vmem:[%s2618 + $0x300] sm:$0xff] %v2683
                  %v2685 = vld [vmem:[%s2617 + $0x108] sm:$0xff]
                  %2686 = vst [vmem:[%s2618 + $0x318] sm:$0xff] %v2685
                  %v2687 = vld [vmem:[%s2617 + $0x110] sm:$0xff]
                  %2688 = vst [vmem:[%s2618 + $0x330] sm:$0xff] %v2687
                  %v2689 = vld [vmem:[%s2617 + $0x118] sm:$0xff]
                  %2690 = vst [vmem:[%s2618 + $0x348] sm:$0xff] %v2689
                  %v2691 = vld [vmem:[%s2617 + $0x120] sm:$0xff]
                  %2692 = vst [vmem:[%s2618 + $0x360] sm:$0xff] %v2691
                  %v2693 = vld [vmem:[%s2617 + $0x128] sm:$0xff]
                  %2694 = vst [vmem:[%s2618 + $0x378] sm:$0xff] %v2693
                  %v2695 = vld [vmem:[%s2617 + $0x130] sm:$0xff]
                  %2696 = vst [vmem:[%s2618 + $0x390] sm:$0xff] %v2695
                  %v2697 = vld [vmem:[%s2617 + $0x138] sm:$0xff]
                  %2698 = vst [vmem:[%s2618 + $0x3a8] sm:$0xff] %v2697
                  %v2699 = vld [vmem:[%s2617 + $0x140] sm:$0xff]
                  %2700 = vst [vmem:[%s2618 + $0x3c0] sm:$0xff] %v2699
                  %v2701 = vld [vmem:[%s2617 + $0x148] sm:$0xff]
                  %2702 = vst [vmem:[%s2618 + $0x3d8] sm:$0xff] %v2701
                  %v2703 = vld [vmem:[%s2617 + $0x150] sm:$0xff]
                  %2704 = vst [vmem:[%s2618 + $0x3f0] sm:$0xff] %v2703
                  %v2705 = vld [vmem:[%s2617 + $0x158] sm:$0xff]
                  %2706 = vst [vmem:[%s2618 + $0x408] sm:$0xff] %v2705
                  %v2707 = vld [vmem:[%s2617 + $0x160] sm:$0xff]
                  %2708 = vst [vmem:[%s2618 + $0x420] sm:$0xff] %v2707
                  %v2709 = vld [vmem:[%s2617 + $0x168] sm:$0xff]
                  %2710 = vst [vmem:[%s2618 + $0x438] sm:$0xff] %v2709
                  %v2711 = vld [vmem:[%s2617 + $0x170] sm:$0xff]
                  %2712 = vst [vmem:[%s2618 + $0x450] sm:$0xff] %v2711
                  %v2713 = vld [vmem:[%s2617 + $0x178] sm:$0xff]
                  %2714 = vst [vmem:[%s2618 + $0x468] sm:$0xff] %v2713
                  %v2715 = vld [vmem:[%s2617 + $0x180] sm:$0xff]
                  %2716 = vst [vmem:[%s2618 + $0x480] sm:$0xff] %v2715
                  %v2717 = vld [vmem:[%s2617 + $0x188] sm:$0xff]
                  %2718 = vst [vmem:[%s2618 + $0x498] sm:$0xff] %v2717
                  %v2719 = vld [vmem:[%s2617 + $0x190] sm:$0xff]
                  %2720 = vst [vmem:[%s2618 + $0x4b0] sm:$0xff] %v2719
                  %v2721 = vld [vmem:[%s2617 + $0x198] sm:$0xff]
                  %2722 = vst [vmem:[%s2618 + $0x4c8] sm:$0xff] %v2721
                  %v2723 = vld [vmem:[%s2617 + $0x1a0] sm:$0xff]
                  %2724 = vst [vmem:[%s2618 + $0x4e0] sm:$0xff] %v2723
                  %v2725 = vld [vmem:[%s2617 + $0x1a8] sm:$0xff]
                  %2726 = vst [vmem:[%s2618 + $0x4f8] sm:$0xff] %v2725
                  %v2727 = vld [vmem:[%s2617 + $0x1b0] sm:$0xff]
                  %2728 = vst [vmem:[%s2618 + $0x510] sm:$0xff] %v2727
                  %v2729 = vld [vmem:[%s2617 + $0x1b8] sm:$0xff]
                  %2730 = vst [vmem:[%s2618 + $0x528] sm:$0xff] %v2729
                  %v2731 = vld [vmem:[%s2617 + $0x1c0] sm:$0xff]
                  %2732 = vst [vmem:[%s2618 + $0x540] sm:$0xff] %v2731
                  %v2733 = vld [vmem:[%s2617 + $0x1c8] sm:$0xff]
                  %2734 = vst [vmem:[%s2618 + $0x558] sm:$0xff] %v2733
                  %v2735 = vld [vmem:[%s2617 + $0x1d0] sm:$0xff]
                  %2736 = vst [vmem:[%s2618 + $0x570] sm:$0xff] %v2735
                  %v2737 = vld [vmem:[%s2617 + $0x1d8] sm:$0xff]
                  %2738 = vst [vmem:[%s2618 + $0x588] sm:$0xff] %v2737
                  %v2739 = vld [vmem:[%s2617 + $0x1e0] sm:$0xff]
                  %2740 = vst [vmem:[%s2618 + $0x5a0] sm:$0xff] %v2739
                  %v2741 = vld [vmem:[%s2617 + $0x1e8] sm:$0xff]
                  %2742 = vst [vmem:[%s2618 + $0x5b8] sm:$0xff] %v2741
                  %v2743 = vld [vmem:[%s2617 + $0x1f0] sm:$0xff]
                  %2744 = vst [vmem:[%s2618 + $0x5d0] sm:$0xff] %v2743
                  %v2745 = vld [vmem:[%s2617 + $0x1f8] sm:$0xff]
                  %2746 = vst [vmem:[%s2618 + $0x5e8] sm:$0xff] %v2745
                $region134: #{spectral_block_apply.1} parent=128 // loop_footer
                  %s2616 = sadd.s32 1, %s2612
                $region135: #{spectral_block_apply.1} parent=128 // loop_footer_branch
                  %2611 = sbr.rel target = $region131
                $region136: #{spectral_block_apply.1} parent=128 // loop_exit
                  _
              $region129: #{spectral_block_apply.1} parent=113 // pred_fallthru
                _
              // Predicated region
              $region137: #{spectral_block_apply.1} parent=113 // pred_check
                _
              $region138: #{spectral_block_apply.1} parent=113 // pred_check_branch
                %2748 = sbr.rel target = $region140
              $region139: #{spectral_block_apply.1} parent=113 // pred_region
                _
              $region140: #{spectral_block_apply.1} parent=113 // pred_fallthru
                _
            $region114: #{spectral_block_apply.1} parent=109 // pred_fallthru
              _
            // Predicated region
            $region115: #{spectral_block_apply.1} parent=109 // pred_check
              _
            $region116: #{spectral_block_apply.1} parent=109 // pred_check_branch
              %2471 = sbr.rel target = $region118
            $region117: #{spectral_block_apply.1} parent=109 // pred_region
              loop: start=0, step=1, limit=1
              $region119: #{spectral_block_apply.1} parent=117 // loop_pre_header
                _
              $region120: #{spectral_block_apply.1} parent=117 // loop_header
                %s2474 = sphi 0, %s2478
                %p2475 = scmp.ge.s32.totalorder %s2474, 1
                %s2479 = sphi %s2460, %s2460
                %s2480 = sphi %s2465, %s2465
              $region121: #{spectral_block_apply.1} parent=117 // loop_header_branch
                %2477 = sbr.rel (%p2475) target = $region125
              $region122: #{spectral_block_apply.1} parent=117 // loop_body
                %v2481 = vld [vmem:[%s2479] sm:$0xff]
                %2482 = vst [vmem:[%s2480] sm:$0xff] %v2481
                %v2483 = vld [vmem:[%s2479 + $0x8] sm:$0xff]
                %2484 = vst [vmem:[%s2480 + $0x18] sm:$0xff] %v2483
                %v2485 = vld [vmem:[%s2479 + $0x10] sm:$0xff]
                %2486 = vst [vmem:[%s2480 + $0x30] sm:$0xff] %v2485
                %v2487 = vld [vmem:[%s2479 + $0x18] sm:$0xff]
                %2488 = vst [vmem:[%s2480 + $0x48] sm:$0xff] %v2487
                %v2489 = vld [vmem:[%s2479 + $0x20] sm:$0xff]
                %2490 = vst [vmem:[%s2480 + $0x60] sm:$0xff] %v2489
                %v2491 = vld [vmem:[%s2479 + $0x28] sm:$0xff]
                %2492 = vst [vmem:[%s2480 + $0x78] sm:$0xff] %v2491
                %v2493 = vld [vmem:[%s2479 + $0x30] sm:$0xff]
                %2494 = vst [vmem:[%s2480 + $0x90] sm:$0xff] %v2493
                %v2495 = vld [vmem:[%s2479 + $0x38] sm:$0xff]
                %2496 = vst [vmem:[%s2480 + $0xa8] sm:$0xff] %v2495
                %v2497 = vld [vmem:[%s2479 + $0x40] sm:$0xff]
                %2498 = vst [vmem:[%s2480 + $0xc0] sm:$0xff] %v2497
                %v2499 = vld [vmem:[%s2479 + $0x48] sm:$0xff]
                %2500 = vst [vmem:[%s2480 + $0xd8] sm:$0xff] %v2499
                %v2501 = vld [vmem:[%s2479 + $0x50] sm:$0xff]
                %2502 = vst [vmem:[%s2480 + $0xf0] sm:$0xff] %v2501
                %v2503 = vld [vmem:[%s2479 + $0x58] sm:$0xff]
                %2504 = vst [vmem:[%s2480 + $0x108] sm:$0xff] %v2503
                %v2505 = vld [vmem:[%s2479 + $0x60] sm:$0xff]
                %2506 = vst [vmem:[%s2480 + $0x120] sm:$0xff] %v2505
                %v2507 = vld [vmem:[%s2479 + $0x68] sm:$0xff]
                %2508 = vst [vmem:[%s2480 + $0x138] sm:$0xff] %v2507
                %v2509 = vld [vmem:[%s2479 + $0x70] sm:$0xff]
                %2510 = vst [vmem:[%s2480 + $0x150] sm:$0xff] %v2509
                %v2511 = vld [vmem:[%s2479 + $0x78] sm:$0xff]
                %2512 = vst [vmem:[%s2480 + $0x168] sm:$0xff] %v2511
                %v2513 = vld [vmem:[%s2479 + $0x80] sm:$0xff]
                %2514 = vst [vmem:[%s2480 + $0x180] sm:$0xff] %v2513
                %v2515 = vld [vmem:[%s2479 + $0x88] sm:$0xff]
                %2516 = vst [vmem:[%s2480 + $0x198] sm:$0xff] %v2515
                %v2517 = vld [vmem:[%s2479 + $0x90] sm:$0xff]
                %2518 = vst [vmem:[%s2480 + $0x1b0] sm:$0xff] %v2517
                %v2519 = vld [vmem:[%s2479 + $0x98] sm:$0xff]
                %2520 = vst [vmem:[%s2480 + $0x1c8] sm:$0xff] %v2519
                %v2521 = vld [vmem:[%s2479 + $0xa0] sm:$0xff]
                %2522 = vst [vmem:[%s2480 + $0x1e0] sm:$0xff] %v2521
                %v2523 = vld [vmem:[%s2479 + $0xa8] sm:$0xff]
                %2524 = vst [vmem:[%s2480 + $0x1f8] sm:$0xff] %v2523
                %v2525 = vld [vmem:[%s2479 + $0xb0] sm:$0xff]
                %2526 = vst [vmem:[%s2480 + $0x210] sm:$0xff] %v2525
                %v2527 = vld [vmem:[%s2479 + $0xb8] sm:$0xff]
                %2528 = vst [vmem:[%s2480 + $0x228] sm:$0xff] %v2527
                %v2529 = vld [vmem:[%s2479 + $0xc0] sm:$0xff]
                %2530 = vst [vmem:[%s2480 + $0x240] sm:$0xff] %v2529
                %v2531 = vld [vmem:[%s2479 + $0xc8] sm:$0xff]
                %2532 = vst [vmem:[%s2480 + $0x258] sm:$0xff] %v2531
                %v2533 = vld [vmem:[%s2479 + $0xd0] sm:$0xff]
                %2534 = vst [vmem:[%s2480 + $0x270] sm:$0xff] %v2533
                %v2535 = vld [vmem:[%s2479 + $0xd8] sm:$0xff]
                %2536 = vst [vmem:[%s2480 + $0x288] sm:$0xff] %v2535
                %v2537 = vld [vmem:[%s2479 + $0xe0] sm:$0xff]
                %2538 = vst [vmem:[%s2480 + $0x2a0] sm:$0xff] %v2537
                %v2539 = vld [vmem:[%s2479 + $0xe8] sm:$0xff]
                %2540 = vst [vmem:[%s2480 + $0x2b8] sm:$0xff] %v2539
                %v2541 = vld [vmem:[%s2479 + $0xf0] sm:$0xff]
                %2542 = vst [vmem:[%s2480 + $0x2d0] sm:$0xff] %v2541
                %v2543 = vld [vmem:[%s2479 + $0xf8] sm:$0xff]
                %2544 = vst [vmem:[%s2480 + $0x2e8] sm:$0xff] %v2543
                %v2545 = vld [vmem:[%s2479 + $0x100] sm:$0xff]
                %2546 = vst [vmem:[%s2480 + $0x300] sm:$0xff] %v2545
                %v2547 = vld [vmem:[%s2479 + $0x108] sm:$0xff]
                %2548 = vst [vmem:[%s2480 + $0x318] sm:$0xff] %v2547
                %v2549 = vld [vmem:[%s2479 + $0x110] sm:$0xff]
                %2550 = vst [vmem:[%s2480 + $0x330] sm:$0xff] %v2549
                %v2551 = vld [vmem:[%s2479 + $0x118] sm:$0xff]
                %2552 = vst [vmem:[%s2480 + $0x348] sm:$0xff] %v2551
                %v2553 = vld [vmem:[%s2479 + $0x120] sm:$0xff]
                %2554 = vst [vmem:[%s2480 + $0x360] sm:$0xff] %v2553
                %v2555 = vld [vmem:[%s2479 + $0x128] sm:$0xff]
                %2556 = vst [vmem:[%s2480 + $0x378] sm:$0xff] %v2555
                %v2557 = vld [vmem:[%s2479 + $0x130] sm:$0xff]
                %2558 = vst [vmem:[%s2480 + $0x390] sm:$0xff] %v2557
                %v2559 = vld [vmem:[%s2479 + $0x138] sm:$0xff]
                %2560 = vst [vmem:[%s2480 + $0x3a8] sm:$0xff] %v2559
                %v2561 = vld [vmem:[%s2479 + $0x140] sm:$0xff]
                %2562 = vst [vmem:[%s2480 + $0x3c0] sm:$0xff] %v2561
                %v2563 = vld [vmem:[%s2479 + $0x148] sm:$0xff]
                %2564 = vst [vmem:[%s2480 + $0x3d8] sm:$0xff] %v2563
                %v2565 = vld [vmem:[%s2479 + $0x150] sm:$0xff]
                %2566 = vst [vmem:[%s2480 + $0x3f0] sm:$0xff] %v2565
                %v2567 = vld [vmem:[%s2479 + $0x158] sm:$0xff]
                %2568 = vst [vmem:[%s2480 + $0x408] sm:$0xff] %v2567
                %v2569 = vld [vmem:[%s2479 + $0x160] sm:$0xff]
                %2570 = vst [vmem:[%s2480 + $0x420] sm:$0xff] %v2569
                %v2571 = vld [vmem:[%s2479 + $0x168] sm:$0xff]
                %2572 = vst [vmem:[%s2480 + $0x438] sm:$0xff] %v2571
                %v2573 = vld [vmem:[%s2479 + $0x170] sm:$0xff]
                %2574 = vst [vmem:[%s2480 + $0x450] sm:$0xff] %v2573
                %v2575 = vld [vmem:[%s2479 + $0x178] sm:$0xff]
                %2576 = vst [vmem:[%s2480 + $0x468] sm:$0xff] %v2575
                %v2577 = vld [vmem:[%s2479 + $0x180] sm:$0xff]
                %2578 = vst [vmem:[%s2480 + $0x480] sm:$0xff] %v2577
                %v2579 = vld [vmem:[%s2479 + $0x188] sm:$0xff]
                %2580 = vst [vmem:[%s2480 + $0x498] sm:$0xff] %v2579
                %v2581 = vld [vmem:[%s2479 + $0x190] sm:$0xff]
                %2582 = vst [vmem:[%s2480 + $0x4b0] sm:$0xff] %v2581
                %v2583 = vld [vmem:[%s2479 + $0x198] sm:$0xff]
                %2584 = vst [vmem:[%s2480 + $0x4c8] sm:$0xff] %v2583
                %v2585 = vld [vmem:[%s2479 + $0x1a0] sm:$0xff]
                %2586 = vst [vmem:[%s2480 + $0x4e0] sm:$0xff] %v2585
                %v2587 = vld [vmem:[%s2479 + $0x1a8] sm:$0xff]
                %2588 = vst [vmem:[%s2480 + $0x4f8] sm:$0xff] %v2587
                %v2589 = vld [vmem:[%s2479 + $0x1b0] sm:$0xff]
                %2590 = vst [vmem:[%s2480 + $0x510] sm:$0xff] %v2589
                %v2591 = vld [vmem:[%s2479 + $0x1b8] sm:$0xff]
                %2592 = vst [vmem:[%s2480 + $0x528] sm:$0xff] %v2591
                %v2593 = vld [vmem:[%s2479 + $0x1c0] sm:$0xff]
                %2594 = vst [vmem:[%s2480 + $0x540] sm:$0xff] %v2593
                %v2595 = vld [vmem:[%s2479 + $0x1c8] sm:$0xff]
                %2596 = vst [vmem:[%s2480 + $0x558] sm:$0xff] %v2595
                %v2597 = vld [vmem:[%s2479 + $0x1d0] sm:$0xff]
                %2598 = vst [vmem:[%s2480 + $0x570] sm:$0xff] %v2597
                %v2599 = vld [vmem:[%s2479 + $0x1d8] sm:$0xff]
                %2600 = vst [vmem:[%s2480 + $0x588] sm:$0xff] %v2599
                %v2601 = vld [vmem:[%s2479 + $0x1e0] sm:$0xff]
                %2602 = vst [vmem:[%s2480 + $0x5a0] sm:$0xff] %v2601
                %v2603 = vld [vmem:[%s2479 + $0x1e8] sm:$0xff]
                %2604 = vst [vmem:[%s2480 + $0x5b8] sm:$0xff] %v2603
                %v2605 = vld [vmem:[%s2479 + $0x1f0] sm:$0xff]
                %2606 = vst [vmem:[%s2480 + $0x5d0] sm:$0xff] %v2605
                %v2607 = vld [vmem:[%s2479 + $0x1f8] sm:$0xff]
                %2608 = vst [vmem:[%s2480 + $0x5e8] sm:$0xff] %v2607
              $region123: #{spectral_block_apply.1} parent=117 // loop_footer
                %s2478 = sadd.s32 1, %s2474
              $region124: #{spectral_block_apply.1} parent=117 // loop_footer_branch
                %2473 = sbr.rel target = $region120
              $region125: #{spectral_block_apply.1} parent=117 // loop_exit
                _
            $region118: #{spectral_block_apply.1} parent=109 // pred_fallthru
              _
          $region110: #{spectral_block_apply.1} parent=105 // pred_fallthru
            _
          %2749 = vnop
        $region106: #{spectral_block_apply.1} parent=93 // pred_fallthru
          _
      $region94: #{spectral_block_apply.1} parent=5 // pred_fallthru
        _
      %p2750 = scmp.le.s32.totalorder 2, %s17
      // Predicated region
      $region141: #{spectral_block_apply.1} parent=5 // pred_check
        %p2751 = pneg %p2750
      $region142: #{spectral_block_apply.1} parent=5 // pred_check_branch
        %2753 = sbr.rel (%p2751) target = $region144
      $region143: #{spectral_block_apply.1} parent=5 // pred_region
        %s2754 = ssub.s32 %s17, 2
        // Predicated region
        $region145: #{spectral_block_apply.1} parent=143 // pred_check
          %p2755 = pneg %p261
        $region146: #{spectral_block_apply.1} parent=143 // pred_check_branch
          %2757 = sbr.rel (%p2755) target = $region148
        $region147: #{spectral_block_apply.1} parent=143 // pred_region
          %s2758 = sand.u32 %s246, 1
          %s2759 = sand.u32 %s246, 1
          %s2760 = smul.addr %s2759, 512
          %s2761 = scalar_lea.vmem [#allocation5], %s2760
        $region148: #{spectral_block_apply.1} parent=143 // pred_fallthru
          _
      $region144: #{spectral_block_apply.1} parent=5 // pred_fallthru
        _
    $region6: #{spectral_block_apply.1} parent=1 // loop_footer
      %s21 = sadd.s32 1, %s17
    $region7: #{spectral_block_apply.1} parent=1 // loop_footer_branch
      %16 = sbr.rel target = $region3
    $region8: #{spectral_block_apply.1} parent=1 // loop_exit
      _
    %2762 = vsyncpa [#allocation4], 1
    %s2763 = scalar_lea.sflag [#allocation4], 1
    %2764 = vsyncpa %s2763, 1

</llo_original>
